<compile_context>
chip_gen: v7x
topology: tpu7x:2x2x1
jax: 0.10.0
libtpu: 0.0.40
codegen_flags: <defaults>
</compile_context>

<pallas_src>
import functools
import numpy as np
import jax
import jax.numpy as jnp
from jax.experimental import pallas as pl
from jax.experimental.pallas import tpu as pltpu


# ----------------------------- constant builders -----------------------------

def _bilinear_matrix(n_in, scale=2):
    """1-D PyTorch nn.Upsample(mode='bilinear', align_corners=False) weights."""
    n_out = n_in * scale
    m = np.zeros((n_out, n_in), dtype=np.float32)
    for o in range(n_out):
        src = max((o + 0.5) / scale - 0.5, 0.0)
        i0 = min(int(np.floor(src)), n_in - 1)
        frac = src - i0
        i1 = min(i0 + 1, n_in - 1)
        m[o, i0] += 1.0 - frac
        m[o, i1] += frac
    return m


def _conv_taps(H, W, k, stride=1):
    """Per-tap lane-roll offsets + 0/1 boundary masks for a 'same' KxK conv.

    stride > 1 means the conv runs on the stride-subsampled grid while staying
    in the full-resolution lane layout (outputs valid only at lanes where
    h % stride == 0 and w % stride == 0); offsets/bounds are scaled to match.
    """
    p = k // 2
    hh, ww = np.meshgrid(np.arange(H), np.arange(W), indexing="ij")
    on_grid = (hh % stride == 0) & (ww % stride == 0)
    offs, rows = [], []
    for di in range(k):
        for dj in range(k):
            dh, dw = (di - p) * stride, (dj - p) * stride
            offs.append(dh * W + dw)
            ok = (on_grid & (hh + dh >= 0) & (hh + dh < H)
                  & (ww + dw >= 0) & (ww + dw < W))
            rows.append(ok.reshape(H * W).astype(np.float32))
    return tuple(offs), np.stack(rows, 0)


def _upsample_taps(H, W):
    """Bilinear 2x upsample (align_corners=False) reading the sparse even-lane
    pooled layout, expressed as lane rolls + per-lane coefficients:
        out[q] = sum_t coefs[t, q] * in[q + offs[t]]        (per image)
    coefs[t, q] is zero whenever the source falls outside the image, so roll
    wrap across image/vector boundaries never contributes.
    """
    Hp, Wp = H // 2, W // 2
    mh = _bilinear_matrix(Hp)   # (H, Hp)
    mw = _bilinear_matrix(Wp)   # (W, Wp)
    taps = {}
    for qh in range(H):
        for qw in range(W):
            q = qh * W + qw
            for sh in range(Hp):
                wh = float(mh[qh, sh])
                if wh == 0.0:
                    continue
                for sw in range(Wp):
                    wv = float(mw[qw, sw])
                    if wv == 0.0:
                        continue
                    off = (2 * sh - qh) * W + (2 * sw - qw)
                    taps.setdefault(off, np.zeros(H * W, np.float32))[q] += wh * wv
    offs = tuple(sorted(taps))
    coefs = np.stack([taps[o] for o in offs], 0)
    return offs, coefs


def _tile_rows(rows, B):
    """(T, H*W) per-image rows -> (T, 1, B*H*W) lane-packed VMEM constant."""
    t, hw = rows.shape
    return jnp.asarray(np.tile(rows, (1, B)).reshape(t, 1, B * hw))


def _prep_conv(w_oihw, b, cin_pad=None):
    """(Cout,Cin,k,k) -> K-stacked (Cout, k*k*Cin') weights; bias -> (Cout,1).

    Column block t = di*k + dj holds the Cin' channels of tap (di, dj),
    matching the tap-concatenation order used in the kernel.
    """
    cout, cin, k, _ = w_oihw.shape
    if cin_pad is not None and cin_pad > cin:
        w_oihw = jnp.pad(w_oihw, ((0, 0), (0, cin_pad - cin), (0, 0), (0, 0)))
        cin = cin_pad
    w2d = jnp.transpose(w_oihw, (0, 2, 3, 1)).reshape(cout, k * k * cin)
    return w2d, b.reshape(cout, 1)


# --------------------------------- the kernel ---------------------------------

def _net_kernel(x_ref, w1_ref, b1_ref, w2_ref, b2_ref, w3_ref, b3_ref,
                w4_ref, b4_ref, m3_ref, m3s_ref, m5_ref, upc_ref, o_ref,
                *, W, off3, off3s, off5, offu):
    L = x_ref.shape[-1]                      # packed lane width = B * H * W

    def roll(v, off):
        return v if off % L == 0 else pltpu.roll(v, shift=(-off) % L, axis=1)

    def conv(a, w_ref, b_ref, mask_ref, offs, relu):
        # K-stacked 'same' conv: taps built with lane rolls + precomputed 0/1
        # masks, concatenated on the contraction axis -> ONE MXU dot.
        taps = [roll(a, off) * mask_ref[t] for t, off in enumerate(offs)]
        y = jnp.dot(w_ref[...], jnp.concatenate(taps, axis=0),
                    preferred_element_type=jnp.float32) + b_ref[...]
        return jnp.maximum(y, 0.0) if relu else y

    a = x_ref[0]                                            # (8,  L) ch-padded
    a = conv(a, w1_ref, b1_ref, m3_ref, off3, relu=True)    # (16, L)
    a = conv(a, w2_ref, b2_ref, m3_ref, off3, relu=True)    # (32, L)

    # 2x2 stride-2 max-pool, kept in the full-res lane layout: results are
    # valid at even (h, w) lanes; all other lanes are don't-care and are
    # zeroed by downstream masks / upsample coefficients.
    m = a
    for off in (1, W, W + 1):
        m = jnp.maximum(m, roll(a, off))

    # conv3 on the pooled (half-res) grid == stride-2 roll conv in this layout.
    a = conv(m, w3_ref, b3_ref, m3s_ref, off3s, relu=True)  # (16, L) sparse

    # Bilinear 2x upsample (align_corners=False): weighted sum of lane rolls.
    u = jnp.zeros_like(a)
    for t, off in enumerate(offu):
        u = u + roll(a, off) * upc_ref[t]

    a = conv(u, w4_ref, b4_ref, m5_ref, off5, relu=False)   # (2, L)

    # Softmax2d over the 2 channels: sigmoid-style, no sublane reduction.
    a0, a1 = a[0:1, :], a[1:2, :]
    mx = jnp.maximum(a0, a1)
    e0 = jnp.exp(a0 - mx)
    e1 = jnp.exp(a1 - mx)
    p0 = e0 * pl.reciprocal(e0 + e1, approx=True)
    o_ref[0] = jnp.concatenate([p0, 1.0 - p0], axis=0).astype(o_ref.dtype)


# ------------------------------ params & forward ------------------------------

def init_params(key):
    ks = jax.random.split(key, 8)

    def conv_p(kw, kb, cout, cin, ksz):
        fan_in = cin * ksz * ksz
        bound = 1.0 / np.sqrt(fan_in)
        w = jax.random.uniform(kw, (cout, cin, ksz, ksz), jnp.float32, -bound, bound)
        b = jax.random.uniform(kb, (cout,), jnp.float32, -bound, bound)
        return w, b

    return {
        "conv1": conv_p(ks[0], ks[1], 16, 3, 3),
        "conv2": conv_p(ks[2], ks[3], 32, 16, 3),
        "conv3": conv_p(ks[4], ks[5], 16, 32, 3),
        "conv4": conv_p(ks[6], ks[7], 2, 16, 5),
    }


def net_forward(params, x_nchw, *, images_per_step=None):
    N, cin, H, W = x_nchw.shape
    assert cin == 3, "Net expects 3 input channels"
    assert H % 2 == 0 and W % 2 == 0, "MaxPool2d(2,2) needs even H, W"
    HW = H * W

    if images_per_step is None:
        # Pack the batch along lanes; keep >= 2 grid steps so both v7x
        # TensorCores stay busy; cap the pack so packed constants stay small.
        images_per_step = max(1, min(8, (N + 1) // 2))
    B = images_per_step
    G = -(-N // B)
    Npad = G * B
    L = B * HW
    assert L % 128 == 0, "packed lane width must be a multiple of 128"

    cin_pad = 8  # conv1 input channels zero-padded 3 -> 8 for aligned stacking

    # K-stacked weights / biases.
    w1, b1 = _prep_conv(*params["conv1"], cin_pad=cin_pad)   # (16, 72)
    w2, b2 = _prep_conv(*params["conv2"])                    # (32, 144)
    w3, b3 = _prep_conv(*params["conv3"])                    # (16, 288)
    w4, b4 = _prep_conv(*params["conv4"])                    # (2, 400)

    # Per-tap roll offsets + per-lane masks/coefficients (periodic per image).
    off3, m3_rows = _conv_taps(H, W, 3)               # conv1 & conv2 share
    off3s, m3s_rows = _conv_taps(H, W, 3, stride=2)   # conv3 on pooled grid
    off5, m5_rows = _conv_taps(H, W, 5)               # conv4
    offu, upc_rows = _upsample_taps(H, W)             # bilinear 2x upsample

    m3 = _tile_rows(m3_rows, B)
    m3s = _tile_rows(m3s_rows, B)
    m5 = _tile_rows(m5_rows, B)
    upc = _tile_rows(upc_rows, B)

    # Pack B images side by side along the lane axis: (G, cin_pad, B*HW).
    x = x_nchw.astype(jnp.float32).reshape(N, cin, HW)
    x = jnp.pad(x, ((0, Npad - N), (0, cin_pad - cin), (0, 0)))
    x = x.reshape(G, B, cin_pad, HW).transpose(0, 2, 1, 3).reshape(G, cin_pad, L)

    def _const_spec(a):
        nd = a.ndim
        return pl.BlockSpec(a.shape, lambda g, nd=nd: (0,) * nd)

    out = pl.pallas_call(
        functools.partial(_net_kernel, W=W, off3=off3, off3s=off3s,
                          off5=off5, offu=offu),
        out_shape=jax.ShapeDtypeStruct((G, 2, L), jnp.float32),
        grid_spec=pltpu.PrefetchScalarGridSpec(
            num_scalar_prefetch=0,
            grid=(G,),
            in_specs=[
                pl.BlockSpec((1, cin_pad, L), lambda g: (g, 0, 0)),
                _const_spec(w1), _const_spec(b1),
                _const_spec(w2), _const_spec(b2),
                _const_spec(w3), _const_spec(b3),
                _const_spec(w4), _const_spec(b4),
                _const_spec(m3), _const_spec(m3s), _const_spec(m5),
                _const_spec(upc),
            ],
            out_specs=pl.BlockSpec((1, 2, L), lambda g: (g, 0, 0)),
        ),
        compiler_params=pltpu.CompilerParams(
            dimension_semantics=("parallel",)),
    )(x, w1, b1, w2, b2, w3, b3, w4, b4, m3, m3s, m5, upc)

    out = out.reshape(G, 2, B, HW).transpose(0, 2, 1, 3).reshape(Npad, 2, H, W)
    return out[:N]


# ------------------------- pure-JAX reference (for test) -----------------------

def net_reference(params, x):
    def conv2d(x, w, b, pad):
        y = jax.lax.conv_general_dilated(
            x, w, window_strides=(1, 1), padding=[(pad, pad), (pad, pad)],
            dimension_numbers=("NCHW", "OIHW", "NCHW"),
            precision=jax.lax.Precision.HIGHEST)
        return y + b[None, :, None, None]

    x = jax.nn.relu(conv2d(x, *params["conv1"], 1))
    x = jax.nn.relu(conv2d(x, *params["conv2"], 1))
    x = jax.lax.reduce_window(x, -jnp.inf, jax.lax.max,
                              (1, 1, 2, 2), (1, 1, 2, 2), "VALID")
    x = jax.nn.relu(conv2d(x, *params["conv3"], 1))
    _, _, Hp, Wp = x.shape
    mh = jnp.asarray(_bilinear_matrix(Hp))
    mw = jnp.asarray(_bilinear_matrix(Wp))
    x = jnp.einsum("oh,nchw,pw->ncop", mh, x, mw,
                   precision=jax.lax.Precision.HIGHEST)
    x = conv2d(x, *params["conv4"], 2)
    return jax.nn.softmax(x, axis=1)


if __name__ == "__main__":
    key = jax.random.PRNGKey(0)
    kp, kx = jax.random.split(key)
    params = init_params(kp)

    N, H, W = 4, 16, 16
    x = jax.random.normal(kx, (N, 3, H, W), jnp.float32)     # NCHW input

    out = jax.block_until_ready(jax.jit(net_forward)(params, x))
    assert out.shape == (N, 2, H, W), out.shape

    # Regression test: packed-lane kernel vs independent pure-JAX reference.
    ref = jax.block_until_ready(jax.jit(net_reference)(params, x))
    max_err = float(jnp.max(jnp.abs(out - ref)))
    assert max_err < 2e-2, f"kernel vs reference max abs err = {max_err}"

    chan_sums = np.asarray(jnp.sum(out, axis=1))
    assert np.allclose(chan_sums, 1.0, atol=1e-4), "Softmax2d channel sums != 1"
    assert np.isfinite(np.asarray(out)).all(), "non-finite outputs"
    print("KERNEL_OK")
</pallas_src>

<mosaic_0001>
module attributes {stable_mosaic.version = 11 : i64} {
  func.func @_net_kernel(%arg0: i32, %arg1: memref<1x8x512xf32, #tpu.memory_space<vmem>>, %arg2: memref<16x72xf32, #tpu.memory_space<vmem>>, %arg3: memref<16x1xf32, #tpu.memory_space<vmem>>, %arg4: memref<32x144xf32, #tpu.memory_space<vmem>>, %arg5: memref<32x1xf32, #tpu.memory_space<vmem>>, %arg6: memref<16x288xf32, #tpu.memory_space<vmem>>, %arg7: memref<16x1xf32, #tpu.memory_space<vmem>>, %arg8: memref<2x400xf32, #tpu.memory_space<vmem>>, %arg9: memref<2x1xf32, #tpu.memory_space<vmem>>, %arg10: memref<9x1x512xf32, #tpu.memory_space<vmem>>, %arg11: memref<9x1x512xf32, #tpu.memory_space<vmem>>, %arg12: memref<25x1x512xf32, #tpu.memory_space<vmem>>, %arg13: memref<16x1x512xf32, #tpu.memory_space<vmem>>, %arg14: memref<1x2x512xf32, #tpu.memory_space<vmem>>) attributes {dimension_semantics = [#tpu.dimension_semantics<parallel>], iteration_bounds = array<i64: 2>, scalar_prefetch = 0 : i64, scratch_operands = 0 : i64, tpu.core_type = #tpu.core_type<tc>, window_params = [{transform_indices = @transform_0, window_bounds = array<i64: 1, 8, 512>}, {pipeline_mode = #tpu.pipeline_mode<synchronous>, transform_indices = @transform_1, window_bounds = array<i64: 16, 72>}, {pipeline_mode = #tpu.pipeline_mode<synchronous>, transform_indices = @transform_2, window_bounds = array<i64: 16, 1>}, {pipeline_mode = #tpu.pipeline_mode<synchronous>, transform_indices = @transform_3, window_bounds = array<i64: 32, 144>}, {pipeline_mode = #tpu.pipeline_mode<synchronous>, transform_indices = @transform_4, window_bounds = array<i64: 32, 1>}, {pipeline_mode = #tpu.pipeline_mode<synchronous>, transform_indices = @transform_5, window_bounds = array<i64: 16, 288>}, {pipeline_mode = #tpu.pipeline_mode<synchronous>, transform_indices = @transform_6, window_bounds = array<i64: 16, 1>}, {pipeline_mode = #tpu.pipeline_mode<synchronous>, transform_indices = @transform_7, window_bounds = array<i64: 2, 400>}, {pipeline_mode = #tpu.pipeline_mode<synchronous>, transform_indices = @transform_8, window_bounds = array<i64: 2, 1>}, {pipeline_mode = #tpu.pipeline_mode<synchronous>, transform_indices = @transform_9, window_bounds = array<i64: 9, 1, 512>}, {pipeline_mode = #tpu.pipeline_mode<synchronous>, transform_indices = @transform_10, window_bounds = array<i64: 9, 1, 512>}, {pipeline_mode = #tpu.pipeline_mode<synchronous>, transform_indices = @transform_11, window_bounds = array<i64: 25, 1, 512>}, {pipeline_mode = #tpu.pipeline_mode<synchronous>, transform_indices = @transform_12, window_bounds = array<i64: 16, 1, 512>}, {transform_indices = @transform_13, window_bounds = array<i64: 1, 2, 512>}]} {
    %c0 = arith.constant 0 : index
    %c0_0 = arith.constant 0 : index
    %c0_1 = arith.constant 0 : index
    %0 = vector.load %arg1[%c0, %c0_0, %c0_1] : memref<1x8x512xf32, #tpu.memory_space<vmem>>, vector<1x8x512xf32>
    %1 = vector.shape_cast %0 : vector<1x8x512xf32> to vector<8x512xf32>
    %c17_i32 = arith.constant 17 : i32
    %2 = tpu.dynamic_rotate %1 by %c17_i32 dim 1 : vector<8x512xf32>, i32 -> vector<8x512xf32>
    %c0_2 = arith.constant 0 : index
    %c0_3 = arith.constant 0 : index
    %c0_4 = arith.constant 0 : index
    %3 = vector.load %arg10[%c0_2, %c0_3, %c0_4] : memref<9x1x512xf32, #tpu.memory_space<vmem>>, vector<1x1x512xf32>
    %4 = vector.shape_cast %3 : vector<1x1x512xf32> to vector<1x512xf32>
    %5 = vector.broadcast %4 : vector<1x512xf32> to vector<8x512xf32>
    %6 = arith.mulf %2, %5 : vector<8x512xf32>
    %c16_i32 = arith.constant 16 : i32
    %7 = tpu.dynamic_rotate %1 by %c16_i32 dim 1 : vector<8x512xf32>, i32 -> vector<8x512xf32>
    %c1 = arith.constant 1 : index
    %c0_5 = arith.constant 0 : index
    %c0_6 = arith.constant 0 : index
    %8 = vector.load %arg10[%c1, %c0_5, %c0_6] : memref<9x1x512xf32, #tpu.memory_space<vmem>>, vector<1x1x512xf32>
    %9 = vector.shape_cast %8 : vector<1x1x512xf32> to vector<1x512xf32>
    %10 = vector.broadcast %9 : vector<1x512xf32> to vector<8x512xf32>
    %11 = arith.mulf %7, %10 : vector<8x512xf32>
    %c15_i32 = arith.constant 15 : i32
    %12 = tpu.dynamic_rotate %1 by %c15_i32 dim 1 : vector<8x512xf32>, i32 -> vector<8x512xf32>
    %c2 = arith.constant 2 : index
    %c0_7 = arith.constant 0 : index
    %c0_8 = arith.constant 0 : index
    %13 = vector.load %arg10[%c2, %c0_7, %c0_8] : memref<9x1x512xf32, #tpu.memory_space<vmem>>, vector<1x1x512xf32>
    %14 = vector.shape_cast %13 : vector<1x1x512xf32> to vector<1x512xf32>
    %15 = vector.broadcast %14 : vector<1x512xf32> to vector<8x512xf32>
    %16 = arith.mulf %12, %15 : vector<8x512xf32>
    %c1_i32 = arith.constant 1 : i32
    %17 = tpu.dynamic_rotate %1 by %c1_i32 dim 1 : vector<8x512xf32>, i32 -> vector<8x512xf32>
    %c3 = arith.constant 3 : index
    %c0_9 = arith.constant 0 : index
    %c0_10 = arith.constant 0 : index
    %18 = vector.load %arg10[%c3, %c0_9, %c0_10] : memref<9x1x512xf32, #tpu.memory_space<vmem>>, vector<1x1x512xf32>
    %19 = vector.shape_cast %18 : vector<1x1x512xf32> to vector<1x512xf32>
    %20 = vector.broadcast %19 : vector<1x512xf32> to vector<8x512xf32>
    %21 = arith.mulf %17, %20 : vector<8x512xf32>
    %c4 = arith.constant 4 : index
    %c0_11 = arith.constant 0 : index
    %c0_12 = arith.constant 0 : index
    %22 = vector.load %arg10[%c4, %c0_11, %c0_12] : memref<9x1x512xf32, #tpu.memory_space<vmem>>, vector<1x1x512xf32>
    %23 = vector.shape_cast %22 : vector<1x1x512xf32> to vector<1x512xf32>
    %24 = vector.broadcast %23 : vector<1x512xf32> to vector<8x512xf32>
    %25 = arith.mulf %1, %24 : vector<8x512xf32>
    %c511_i32 = arith.constant 511 : i32
    %26 = tpu.dynamic_rotate %1 by %c511_i32 dim 1 : vector<8x512xf32>, i32 -> vector<8x512xf32>
    %c5 = arith.constant 5 : index
    %c0_13 = arith.constant 0 : index
    %c0_14 = arith.constant 0 : index
    %27 = vector.load %arg10[%c5, %c0_13, %c0_14] : memref<9x1x512xf32, #tpu.memory_space<vmem>>, vector<1x1x512xf32>
    %28 = vector.shape_cast %27 : vector<1x1x512xf32> to vector<1x512xf32>
    %29 = vector.broadcast %28 : vector<1x512xf32> to vector<8x512xf32>
    %30 = arith.mulf %26, %29 : vector<8x512xf32>
    %c497_i32 = arith.constant 497 : i32
    %31 = tpu.dynamic_rotate %1 by %c497_i32 dim 1 : vector<8x512xf32>, i32 -> vector<8x512xf32>
    %c6 = arith.constant 6 : index
    %c0_15 = arith.constant 0 : index
    %c0_16 = arith.constant 0 : index
    %32 = vector.load %arg10[%c6, %c0_15, %c0_16] : memref<9x1x512xf32, #tpu.memory_space<vmem>>, vector<1x1x512xf32>
    %33 = vector.shape_cast %32 : vector<1x1x512xf32> to vector<1x512xf32>
    %34 = vector.broadcast %33 : vector<1x512xf32> to vector<8x512xf32>
    %35 = arith.mulf %31, %34 : vector<8x512xf32>
    %c496_i32 = arith.constant 496 : i32
    %36 = tpu.dynamic_rotate %1 by %c496_i32 dim 1 : vector<8x512xf32>, i32 -> vector<8x512xf32>
    %c7 = arith.constant 7 : index
    %c0_17 = arith.constant 0 : index
    %c0_18 = arith.constant 0 : index
    %37 = vector.load %arg10[%c7, %c0_17, %c0_18] : memref<9x1x512xf32, #tpu.memory_space<vmem>>, vector<1x1x512xf32>
    %38 = vector.shape_cast %37 : vector<1x1x512xf32> to vector<1x512xf32>
    %39 = vector.broadcast %38 : vector<1x512xf32> to vector<8x512xf32>
    %40 = arith.mulf %36, %39 : vector<8x512xf32>
    %c495_i32 = arith.constant 495 : i32
    %41 = tpu.dynamic_rotate %1 by %c495_i32 dim 1 : vector<8x512xf32>, i32 -> vector<8x512xf32>
    %c8 = arith.constant 8 : index
    %c0_19 = arith.constant 0 : index
    %c0_20 = arith.constant 0 : index
    %42 = vector.load %arg10[%c8, %c0_19, %c0_20] : memref<9x1x512xf32, #tpu.memory_space<vmem>>, vector<1x1x512xf32>
    %43 = vector.shape_cast %42 : vector<1x1x512xf32> to vector<1x512xf32>
    %44 = vector.broadcast %43 : vector<1x512xf32> to vector<8x512xf32>
    %45 = arith.mulf %41, %44 : vector<8x512xf32>
    %c0_21 = arith.constant 0 : index
    %c0_22 = arith.constant 0 : index
    %46 = vector.load %arg2[%c0_21, %c0_22] : memref<16x72xf32, #tpu.memory_space<vmem>>, vector<16x72xf32>
    %47 = tpu.concatenate %6, %11, %16, %21, %25, %30, %35, %40, %45 in 0 : vector<8x512xf32>, vector<8x512xf32>, vector<8x512xf32>, vector<8x512xf32>, vector<8x512xf32>, vector<8x512xf32>, vector<8x512xf32>, vector<8x512xf32>, vector<8x512xf32> -> vector<72x512xf32>
    %cst = arith.constant dense<0.000000e+00> : vector<16x512xf32>
    %48 = tpu.matmul %46, %47, %cst {dimension_numbers = #tpu.dot_dimension_numbers<[1], [0], [0], [1], [0, 0, 1, 1], [], []>} : vector<16x72xf32>, vector<72x512xf32>, vector<16x512xf32> -> vector<16x512xf32>
    %c0_23 = arith.constant 0 : index
    %c0_24 = arith.constant 0 : index
    %49 = vector.load %arg3[%c0_23, %c0_24] : memref<16x1xf32, #tpu.memory_space<vmem>>, vector<16x1xf32>
    %50 = vector.broadcast %49 : vector<16x1xf32> to vector<16x512xf32>
    %51 = arith.addf %48, %50 : vector<16x512xf32>
    %cst_25 = arith.constant 0.000000e+00 : f32
    %52 = vector.broadcast %cst_25 : f32 to vector<16x512xf32>
    %53 = arith.maximumf %51, %52 : vector<16x512xf32>
    %c17_i32_26 = arith.constant 17 : i32
    %54 = tpu.dynamic_rotate %53 by %c17_i32_26 dim 1 : vector<16x512xf32>, i32 -> vector<16x512xf32>
    %c0_27 = arith.constant 0 : index
    %c0_28 = arith.constant 0 : index
    %c0_29 = arith.constant 0 : index
    %55 = vector.load %arg10[%c0_27, %c0_28, %c0_29] : memref<9x1x512xf32, #tpu.memory_space<vmem>>, vector<1x1x512xf32>
    %56 = vector.shape_cast %55 : vector<1x1x512xf32> to vector<1x512xf32>
    %57 = vector.broadcast %56 : vector<1x512xf32> to vector<16x512xf32>
    %58 = arith.mulf %54, %57 : vector<16x512xf32>
    %c16_i32_30 = arith.constant 16 : i32
    %59 = tpu.dynamic_rotate %53 by %c16_i32_30 dim 1 : vector<16x512xf32>, i32 -> vector<16x512xf32>
    %c1_31 = arith.constant 1 : index
    %c0_32 = arith.constant 0 : index
    %c0_33 = arith.constant 0 : index
    %60 = vector.load %arg10[%c1_31, %c0_32, %c0_33] : memref<9x1x512xf32, #tpu.memory_space<vmem>>, vector<1x1x512xf32>
    %61 = vector.shape_cast %60 : vector<1x1x512xf32> to vector<1x512xf32>
    %62 = vector.broadcast %61 : vector<1x512xf32> to vector<16x512xf32>
    %63 = arith.mulf %59, %62 : vector<16x512xf32>
    %c15_i32_34 = arith.constant 15 : i32
    %64 = tpu.dynamic_rotate %53 by %c15_i32_34 dim 1 : vector<16x512xf32>, i32 -> vector<16x512xf32>
    %c2_35 = arith.constant 2 : index
    %c0_36 = arith.constant 0 : index
    %c0_37 = arith.constant 0 : index
    %65 = vector.load %arg10[%c2_35, %c0_36, %c0_37] : memref<9x1x512xf32, #tpu.memory_space<vmem>>, vector<1x1x512xf32>
    %66 = vector.shape_cast %65 : vector<1x1x512xf32> to vector<1x512xf32>
    %67 = vector.broadcast %66 : vector<1x512xf32> to vector<16x512xf32>
    %68 = arith.mulf %64, %67 : vector<16x512xf32>
    %c1_i32_38 = arith.constant 1 : i32
    %69 = tpu.dynamic_rotate %53 by %c1_i32_38 dim 1 : vector<16x512xf32>, i32 -> vector<16x512xf32>
    %c3_39 = arith.constant 3 : index
    %c0_40 = arith.constant 0 : index
    %c0_41 = arith.constant 0 : index
    %70 = vector.load %arg10[%c3_39, %c0_40, %c0_41] : memref<9x1x512xf32, #tpu.memory_space<vmem>>, vector<1x1x512xf32>
    %71 = vector.shape_cast %70 : vector<1x1x512xf32> to vector<1x512xf32>
    %72 = vector.broadcast %71 : vector<1x512xf32> to vector<16x512xf32>
    %73 = arith.mulf %69, %72 : vector<16x512xf32>
    %c4_42 = arith.constant 4 : index
    %c0_43 = arith.constant 0 : index
    %c0_44 = arith.constant 0 : index
    %74 = vector.load %arg10[%c4_42, %c0_43, %c0_44] : memref<9x1x512xf32, #tpu.memory_space<vmem>>, vector<1x1x512xf32>
    %75 = vector.shape_cast %74 : vector<1x1x512xf32> to vector<1x512xf32>
    %76 = vector.broadcast %75 : vector<1x512xf32> to vector<16x512xf32>
    %77 = arith.mulf %53, %76 : vector<16x512xf32>
    %c511_i32_45 = arith.constant 511 : i32
    %78 = tpu.dynamic_rotate %53 by %c511_i32_45 dim 1 : vector<16x512xf32>, i32 -> vector<16x512xf32>
    %c5_46 = arith.constant 5 : index
    %c0_47 = arith.constant 0 : index
    %c0_48 = arith.constant 0 : index
    %79 = vector.load %arg10[%c5_46, %c0_47, %c0_48] : memref<9x1x512xf32, #tpu.memory_space<vmem>>, vector<1x1x512xf32>
    %80 = vector.shape_cast %79 : vector<1x1x512xf32> to vector<1x512xf32>
    %81 = vector.broadcast %80 : vector<1x512xf32> to vector<16x512xf32>
    %82 = arith.mulf %78, %81 : vector<16x512xf32>
    %c497_i32_49 = arith.constant 497 : i32
    %83 = tpu.dynamic_rotate %53 by %c497_i32_49 dim 1 : vector<16x512xf32>, i32 -> vector<16x512xf32>
    %c6_50 = arith.constant 6 : index
    %c0_51 = arith.constant 0 : index
    %c0_52 = arith.constant 0 : index
    %84 = vector.load %arg10[%c6_50, %c0_51, %c0_52] : memref<9x1x512xf32, #tpu.memory_space<vmem>>, vector<1x1x512xf32>
    %85 = vector.shape_cast %84 : vector<1x1x512xf32> to vector<1x512xf32>
    %86 = vector.broadcast %85 : vector<1x512xf32> to vector<16x512xf32>
    %87 = arith.mulf %83, %86 : vector<16x512xf32>
    %c496_i32_53 = arith.constant 496 : i32
    %88 = tpu.dynamic_rotate %53 by %c496_i32_53 dim 1 : vector<16x512xf32>, i32 -> vector<16x512xf32>
    %c7_54 = arith.constant 7 : index
    %c0_55 = arith.constant 0 : index
    %c0_56 = arith.constant 0 : index
    %89 = vector.load %arg10[%c7_54, %c0_55, %c0_56] : memref<9x1x512xf32, #tpu.memory_space<vmem>>, vector<1x1x512xf32>
    %90 = vector.shape_cast %89 : vector<1x1x512xf32> to vector<1x512xf32>
    %91 = vector.broadcast %90 : vector<1x512xf32> to vector<16x512xf32>
    %92 = arith.mulf %88, %91 : vector<16x512xf32>
    %c495_i32_57 = arith.constant 495 : i32
    %93 = tpu.dynamic_rotate %53 by %c495_i32_57 dim 1 : vector<16x512xf32>, i32 -> vector<16x512xf32>
    %c8_58 = arith.constant 8 : index
    %c0_59 = arith.constant 0 : index
    %c0_60 = arith.constant 0 : index
    %94 = vector.load %arg10[%c8_58, %c0_59, %c0_60] : memref<9x1x512xf32, #tpu.memory_space<vmem>>, vector<1x1x512xf32>
    %95 = vector.shape_cast %94 : vector<1x1x512xf32> to vector<1x512xf32>
    %96 = vector.broadcast %95 : vector<1x512xf32> to vector<16x512xf32>
    %97 = arith.mulf %93, %96 : vector<16x512xf32>
    %c0_61 = arith.constant 0 : index
    %c0_62 = arith.constant 0 : index
    %98 = vector.load %arg4[%c0_61, %c0_62] : memref<32x144xf32, #tpu.memory_space<vmem>>, vector<32x144xf32>
    %99 = tpu.concatenate %58, %63, %68, %73, %77, %82, %87, %92, %97 in 0 : vector<16x512xf32>, vector<16x512xf32>, vector<16x512xf32>, vector<16x512xf32>, vector<16x512xf32>, vector<16x512xf32>, vector<16x512xf32>, vector<16x512xf32>, vector<16x512xf32> -> vector<144x512xf32>
    %cst_63 = arith.constant dense<0.000000e+00> : vector<32x512xf32>
    %100 = tpu.matmul %98, %99, %cst_63 {dimension_numbers = #tpu.dot_dimension_numbers<[1], [0], [0], [1], [0, 0, 1, 1], [], []>} : vector<32x144xf32>, vector<144x512xf32>, vector<32x512xf32> -> vector<32x512xf32>
    %c0_64 = arith.constant 0 : index
    %c0_65 = arith.constant 0 : index
    %101 = vector.load %arg5[%c0_64, %c0_65] : memref<32x1xf32, #tpu.memory_space<vmem>>, vector<32x1xf32>
    %102 = vector.broadcast %101 : vector<32x1xf32> to vector<32x512xf32>
    %103 = arith.addf %100, %102 : vector<32x512xf32>
    %cst_66 = arith.constant 0.000000e+00 : f32
    %104 = vector.broadcast %cst_66 : f32 to vector<32x512xf32>
    %105 = arith.maximumf %103, %104 : vector<32x512xf32>
    %c511_i32_67 = arith.constant 511 : i32
    %106 = tpu.dynamic_rotate %105 by %c511_i32_67 dim 1 : vector<32x512xf32>, i32 -> vector<32x512xf32>
    %107 = arith.maximumf %105, %106 : vector<32x512xf32>
    %c496_i32_68 = arith.constant 496 : i32
    %108 = tpu.dynamic_rotate %105 by %c496_i32_68 dim 1 : vector<32x512xf32>, i32 -> vector<32x512xf32>
    %109 = arith.maximumf %107, %108 : vector<32x512xf32>
    %c495_i32_69 = arith.constant 495 : i32
    %110 = tpu.dynamic_rotate %105 by %c495_i32_69 dim 1 : vector<32x512xf32>, i32 -> vector<32x512xf32>
    %111 = arith.maximumf %109, %110 : vector<32x512xf32>
    %c34_i32 = arith.constant 34 : i32
    %112 = tpu.dynamic_rotate %111 by %c34_i32 dim 1 : vector<32x512xf32>, i32 -> vector<32x512xf32>
    %c0_70 = arith.constant 0 : index
    %c0_71 = arith.constant 0 : index
    %c0_72 = arith.constant 0 : index
    %113 = vector.load %arg11[%c0_70, %c0_71, %c0_72] : memref<9x1x512xf32, #tpu.memory_space<vmem>>, vector<1x1x512xf32>
    %114 = vector.shape_cast %113 : vector<1x1x512xf32> to vector<1x512xf32>
    %115 = vector.broadcast %114 : vector<1x512xf32> to vector<32x512xf32>
    %116 = arith.mulf %112, %115 : vector<32x512xf32>
    %c32_i32 = arith.constant 32 : i32
    %117 = tpu.dynamic_rotate %111 by %c32_i32 dim 1 : vector<32x512xf32>, i32 -> vector<32x512xf32>
    %c1_73 = arith.constant 1 : index
    %c0_74 = arith.constant 0 : index
    %c0_75 = arith.constant 0 : index
    %118 = vector.load %arg11[%c1_73, %c0_74, %c0_75] : memref<9x1x512xf32, #tpu.memory_space<vmem>>, vector<1x1x512xf32>
    %119 = vector.shape_cast %118 : vector<1x1x512xf32> to vector<1x512xf32>
    %120 = vector.broadcast %119 : vector<1x512xf32> to vector<32x512xf32>
    %121 = arith.mulf %117, %120 : vector<32x512xf32>
    %c30_i32 = arith.constant 30 : i32
    %122 = tpu.dynamic_rotate %111 by %c30_i32 dim 1 : vector<32x512xf32>, i32 -> vector<32x512xf32>
    %c2_76 = arith.constant 2 : index
    %c0_77 = arith.constant 0 : index
    %c0_78 = arith.constant 0 : index
    %123 = vector.load %arg11[%c2_76, %c0_77, %c0_78] : memref<9x1x512xf32, #tpu.memory_space<vmem>>, vector<1x1x512xf32>
    %124 = vector.shape_cast %123 : vector<1x1x512xf32> to vector<1x512xf32>
    %125 = vector.broadcast %124 : vector<1x512xf32> to vector<32x512xf32>
    %126 = arith.mulf %122, %125 : vector<32x512xf32>
    %c2_i32 = arith.constant 2 : i32
    %127 = tpu.dynamic_rotate %111 by %c2_i32 dim 1 : vector<32x512xf32>, i32 -> vector<32x512xf32>
    %c3_79 = arith.constant 3 : index
    %c0_80 = arith.constant 0 : index
    %c0_81 = arith.constant 0 : index
    %128 = vector.load %arg11[%c3_79, %c0_80, %c0_81] : memref<9x1x512xf32, #tpu.memory_space<vmem>>, vector<1x1x512xf32>
    %129 = vector.shape_cast %128 : vector<1x1x512xf32> to vector<1x512xf32>
    %130 = vector.broadcast %129 : vector<1x512xf32> to vector<32x512xf32>
    %131 = arith.mulf %127, %130 : vector<32x512xf32>
    %c4_82 = arith.constant 4 : index
    %c0_83 = arith.constant 0 : index
    %c0_84 = arith.constant 0 : index
    %132 = vector.load %arg11[%c4_82, %c0_83, %c0_84] : memref<9x1x512xf32, #tpu.memory_space<vmem>>, vector<1x1x512xf32>
    %133 = vector.shape_cast %132 : vector<1x1x512xf32> to vector<1x512xf32>
    %134 = vector.broadcast %133 : vector<1x512xf32> to vector<32x512xf32>
    %135 = arith.mulf %111, %134 : vector<32x512xf32>
    %c510_i32 = arith.constant 510 : i32
    %136 = tpu.dynamic_rotate %111 by %c510_i32 dim 1 : vector<32x512xf32>, i32 -> vector<32x512xf32>
    %c5_85 = arith.constant 5 : index
    %c0_86 = arith.constant 0 : index
    %c0_87 = arith.constant 0 : index
    %137 = vector.load %arg11[%c5_85, %c0_86, %c0_87] : memref<9x1x512xf32, #tpu.memory_space<vmem>>, vector<1x1x512xf32>
    %138 = vector.shape_cast %137 : vector<1x1x512xf32> to vector<1x512xf32>
    %139 = vector.broadcast %138 : vector<1x512xf32> to vector<32x512xf32>
    %140 = arith.mulf %136, %139 : vector<32x512xf32>
    %c482_i32 = arith.constant 482 : i32
    %141 = tpu.dynamic_rotate %111 by %c482_i32 dim 1 : vector<32x512xf32>, i32 -> vector<32x512xf32>
    %c6_88 = arith.constant 6 : index
    %c0_89 = arith.constant 0 : index
    %c0_90 = arith.constant 0 : index
    %142 = vector.load %arg11[%c6_88, %c0_89, %c0_90] : memref<9x1x512xf32, #tpu.memory_space<vmem>>, vector<1x1x512xf32>
    %143 = vector.shape_cast %142 : vector<1x1x512xf32> to vector<1x512xf32>
    %144 = vector.broadcast %143 : vector<1x512xf32> to vector<32x512xf32>
    %145 = arith.mulf %141, %144 : vector<32x512xf32>
    %c480_i32 = arith.constant 480 : i32
    %146 = tpu.dynamic_rotate %111 by %c480_i32 dim 1 : vector<32x512xf32>, i32 -> vector<32x512xf32>
    %c7_91 = arith.constant 7 : index
    %c0_92 = arith.constant 0 : index
    %c0_93 = arith.constant 0 : index
    %147 = vector.load %arg11[%c7_91, %c0_92, %c0_93] : memref<9x1x512xf32, #tpu.memory_space<vmem>>, vector<1x1x512xf32>
    %148 = vector.shape_cast %147 : vector<1x1x512xf32> to vector<1x512xf32>
    %149 = vector.broadcast %148 : vector<1x512xf32> to vector<32x512xf32>
    %150 = arith.mulf %146, %149 : vector<32x512xf32>
    %c478_i32 = arith.constant 478 : i32
    %151 = tpu.dynamic_rotate %111 by %c478_i32 dim 1 : vector<32x512xf32>, i32 -> vector<32x512xf32>
    %c8_94 = arith.constant 8 : index
    %c0_95 = arith.constant 0 : index
    %c0_96 = arith.constant 0 : index
    %152 = vector.load %arg11[%c8_94, %c0_95, %c0_96] : memref<9x1x512xf32, #tpu.memory_space<vmem>>, vector<1x1x512xf32>
    %153 = vector.shape_cast %152 : vector<1x1x512xf32> to vector<1x512xf32>
    %154 = vector.broadcast %153 : vector<1x512xf32> to vector<32x512xf32>
    %155 = arith.mulf %151, %154 : vector<32x512xf32>
    %c0_97 = arith.constant 0 : index
    %c0_98 = arith.constant 0 : index
    %156 = vector.load %arg6[%c0_97, %c0_98] : memref<16x288xf32, #tpu.memory_space<vmem>>, vector<16x288xf32>
    %157 = tpu.concatenate %116, %121, %126, %131, %135, %140, %145, %150, %155 in 0 : vector<32x512xf32>, vector<32x512xf32>, vector<32x512xf32>, vector<32x512xf32>, vector<32x512xf32>, vector<32x512xf32>, vector<32x512xf32>, vector<32x512xf32>, vector<32x512xf32> -> vector<288x512xf32>
    %cst_99 = arith.constant dense<0.000000e+00> : vector<16x512xf32>
    %158 = tpu.matmul %156, %157, %cst_99 {dimension_numbers = #tpu.dot_dimension_numbers<[1], [0], [0], [1], [0, 0, 1, 1], [], []>} : vector<16x288xf32>, vector<288x512xf32>, vector<16x512xf32> -> vector<16x512xf32>
    %c0_100 = arith.constant 0 : index
    %c0_101 = arith.constant 0 : index
    %159 = vector.load %arg7[%c0_100, %c0_101] : memref<16x1xf32, #tpu.memory_space<vmem>>, vector<16x1xf32>
    %160 = vector.broadcast %159 : vector<16x1xf32> to vector<16x512xf32>
    %161 = arith.addf %158, %160 : vector<16x512xf32>
    %cst_102 = arith.constant 0.000000e+00 : f32
    %162 = vector.broadcast %cst_102 : f32 to vector<16x512xf32>
    %163 = arith.maximumf %161, %162 : vector<16x512xf32>
    %cst_103 = arith.constant 0.000000e+00 : f32
    %164 = vector.broadcast %cst_103 : f32 to vector<16x512xf32>
    %c34_i32_104 = arith.constant 34 : i32
    %165 = tpu.dynamic_rotate %163 by %c34_i32_104 dim 1 : vector<16x512xf32>, i32 -> vector<16x512xf32>
    %c0_105 = arith.constant 0 : index
    %c0_106 = arith.constant 0 : index
    %c0_107 = arith.constant 0 : index
    %166 = vector.load %arg13[%c0_105, %c0_106, %c0_107] : memref<16x1x512xf32, #tpu.memory_space<vmem>>, vector<1x1x512xf32>
    %167 = vector.shape_cast %166 : vector<1x1x512xf32> to vector<1x512xf32>
    %168 = vector.broadcast %167 : vector<1x512xf32> to vector<16x512xf32>
    %169 = arith.mulf %165, %168 : vector<16x512xf32>
    %170 = arith.addf %164, %169 : vector<16x512xf32>
    %c33_i32 = arith.constant 33 : i32
    %171 = tpu.dynamic_rotate %163 by %c33_i32 dim 1 : vector<16x512xf32>, i32 -> vector<16x512xf32>
    %c1_108 = arith.constant 1 : index
    %c0_109 = arith.constant 0 : index
    %c0_110 = arith.constant 0 : index
    %172 = vector.load %arg13[%c1_108, %c0_109, %c0_110] : memref<16x1x512xf32, #tpu.memory_space<vmem>>, vector<1x1x512xf32>
    %173 = vector.shape_cast %172 : vector<1x1x512xf32> to vector<1x512xf32>
    %174 = vector.broadcast %173 : vector<1x512xf32> to vector<16x512xf32>
    %175 = arith.mulf %171, %174 : vector<16x512xf32>
    %176 = arith.addf %170, %175 : vector<16x512xf32>
    %c32_i32_111 = arith.constant 32 : i32
    %177 = tpu.dynamic_rotate %163 by %c32_i32_111 dim 1 : vector<16x512xf32>, i32 -> vector<16x512xf32>
    %c2_112 = arith.constant 2 : index
    %c0_113 = arith.constant 0 : index
    %c0_114 = arith.constant 0 : index
    %178 = vector.load %arg13[%c2_112, %c0_113, %c0_114] : memref<16x1x512xf32, #tpu.memory_space<vmem>>, vector<1x1x512xf32>
    %179 = vector.shape_cast %178 : vector<1x1x512xf32> to vector<1x512xf32>
    %180 = vector.broadcast %179 : vector<1x512xf32> to vector<16x512xf32>
    %181 = arith.mulf %177, %180 : vector<16x512xf32>
    %182 = arith.addf %176, %181 : vector<16x512xf32>
    %c31_i32 = arith.constant 31 : i32
    %183 = tpu.dynamic_rotate %163 by %c31_i32 dim 1 : vector<16x512xf32>, i32 -> vector<16x512xf32>
    %c3_115 = arith.constant 3 : index
    %c0_116 = arith.constant 0 : index
    %c0_117 = arith.constant 0 : index
    %184 = vector.load %arg13[%c3_115, %c0_116, %c0_117] : memref<16x1x512xf32, #tpu.memory_space<vmem>>, vector<1x1x512xf32>
    %185 = vector.shape_cast %184 : vector<1x1x512xf32> to vector<1x512xf32>
    %186 = vector.broadcast %185 : vector<1x512xf32> to vector<16x512xf32>
    %187 = arith.mulf %183, %186 : vector<16x512xf32>
    %188 = arith.addf %182, %187 : vector<16x512xf32>
    %c18_i32 = arith.constant 18 : i32
    %189 = tpu.dynamic_rotate %163 by %c18_i32 dim 1 : vector<16x512xf32>, i32 -> vector<16x512xf32>
    %c4_118 = arith.constant 4 : index
    %c0_119 = arith.constant 0 : index
    %c0_120 = arith.constant 0 : index
    %190 = vector.load %arg13[%c4_118, %c0_119, %c0_120] : memref<16x1x512xf32, #tpu.memory_space<vmem>>, vector<1x1x512xf32>
    %191 = vector.shape_cast %190 : vector<1x1x512xf32> to vector<1x512xf32>
    %192 = vector.broadcast %191 : vector<1x512xf32> to vector<16x512xf32>
    %193 = arith.mulf %189, %192 : vector<16x512xf32>
    %194 = arith.addf %188, %193 : vector<16x512xf32>
    %c17_i32_121 = arith.constant 17 : i32
    %195 = tpu.dynamic_rotate %163 by %c17_i32_121 dim 1 : vector<16x512xf32>, i32 -> vector<16x512xf32>
    %c5_122 = arith.constant 5 : index
    %c0_123 = arith.constant 0 : index
    %c0_124 = arith.constant 0 : index
    %196 = vector.load %arg13[%c5_122, %c0_123, %c0_124] : memref<16x1x512xf32, #tpu.memory_space<vmem>>, vector<1x1x512xf32>
    %197 = vector.shape_cast %196 : vector<1x1x512xf32> to vector<1x512xf32>
    %198 = vector.broadcast %197 : vector<1x512xf32> to vector<16x512xf32>
    %199 = arith.mulf %195, %198 : vector<16x512xf32>
    %200 = arith.addf %194, %199 : vector<16x512xf32>
    %c16_i32_125 = arith.constant 16 : i32
    %201 = tpu.dynamic_rotate %163 by %c16_i32_125 dim 1 : vector<16x512xf32>, i32 -> vector<16x512xf32>
    %c6_126 = arith.constant 6 : index
    %c0_127 = arith.constant 0 : index
    %c0_128 = arith.constant 0 : index
    %202 = vector.load %arg13[%c6_126, %c0_127, %c0_128] : memref<16x1x512xf32, #tpu.memory_space<vmem>>, vector<1x1x512xf32>
    %203 = vector.shape_cast %202 : vector<1x1x512xf32> to vector<1x512xf32>
    %204 = vector.broadcast %203 : vector<1x512xf32> to vector<16x512xf32>
    %205 = arith.mulf %201, %204 : vector<16x512xf32>
    %206 = arith.addf %200, %205 : vector<16x512xf32>
    %c15_i32_129 = arith.constant 15 : i32
    %207 = tpu.dynamic_rotate %163 by %c15_i32_129 dim 1 : vector<16x512xf32>, i32 -> vector<16x512xf32>
    %c7_130 = arith.constant 7 : index
    %c0_131 = arith.constant 0 : index
    %c0_132 = arith.constant 0 : index
    %208 = vector.load %arg13[%c7_130, %c0_131, %c0_132] : memref<16x1x512xf32, #tpu.memory_space<vmem>>, vector<1x1x512xf32>
    %209 = vector.shape_cast %208 : vector<1x1x512xf32> to vector<1x512xf32>
    %210 = vector.broadcast %209 : vector<1x512xf32> to vector<16x512xf32>
    %211 = arith.mulf %207, %210 : vector<16x512xf32>
    %212 = arith.addf %206, %211 : vector<16x512xf32>
    %c2_i32_133 = arith.constant 2 : i32
    %213 = tpu.dynamic_rotate %163 by %c2_i32_133 dim 1 : vector<16x512xf32>, i32 -> vector<16x512xf32>
    %c8_134 = arith.constant 8 : index
    %c0_135 = arith.constant 0 : index
    %c0_136 = arith.constant 0 : index
    %214 = vector.load %arg13[%c8_134, %c0_135, %c0_136] : memref<16x1x512xf32, #tpu.memory_space<vmem>>, vector<1x1x512xf32>
    %215 = vector.shape_cast %214 : vector<1x1x512xf32> to vector<1x512xf32>
    %216 = vector.broadcast %215 : vector<1x512xf32> to vector<16x512xf32>
    %217 = arith.mulf %213, %216 : vector<16x512xf32>
    %218 = arith.addf %212, %217 : vector<16x512xf32>
    %c1_i32_137 = arith.constant 1 : i32
    %219 = tpu.dynamic_rotate %163 by %c1_i32_137 dim 1 : vector<16x512xf32>, i32 -> vector<16x512xf32>
    %c9 = arith.constant 9 : index
    %c0_138 = arith.constant 0 : index
    %c0_139 = arith.constant 0 : index
    %220 = vector.load %arg13[%c9, %c0_138, %c0_139] : memref<16x1x512xf32, #tpu.memory_space<vmem>>, vector<1x1x512xf32>
    %221 = vector.shape_cast %220 : vector<1x1x512xf32> to vector<1x512xf32>
    %222 = vector.broadcast %221 : vector<1x512xf32> to vector<16x512xf32>
    %223 = arith.mulf %219, %222 : vector<16x512xf32>
    %224 = arith.addf %218, %223 : vector<16x512xf32>
    %c10 = arith.constant 10 : index
    %c0_140 = arith.constant 0 : index
    %c0_141 = arith.constant 0 : index
    %225 = vector.load %arg13[%c10, %c0_140, %c0_141] : memref<16x1x512xf32, #tpu.memory_space<vmem>>, vector<1x1x512xf32>
    %226 = vector.shape_cast %225 : vector<1x1x512xf32> to vector<1x512xf32>
    %227 = vector.broadcast %226 : vector<1x512xf32> to vector<16x512xf32>
    %228 = arith.mulf %163, %227 : vector<16x512xf32>
    %229 = arith.addf %224, %228 : vector<16x512xf32>
    %c511_i32_142 = arith.constant 511 : i32
    %230 = tpu.dynamic_rotate %163 by %c511_i32_142 dim 1 : vector<16x512xf32>, i32 -> vector<16x512xf32>
    %c11 = arith.constant 11 : index
    %c0_143 = arith.constant 0 : index
    %c0_144 = arith.constant 0 : index
    %231 = vector.load %arg13[%c11, %c0_143, %c0_144] : memref<16x1x512xf32, #tpu.memory_space<vmem>>, vector<1x1x512xf32>
    %232 = vector.shape_cast %231 : vector<1x1x512xf32> to vector<1x512xf32>
    %233 = vector.broadcast %232 : vector<1x512xf32> to vector<16x512xf32>
    %234 = arith.mulf %230, %233 : vector<16x512xf32>
    %235 = arith.addf %229, %234 : vector<16x512xf32>
    %c498_i32 = arith.constant 498 : i32
    %236 = tpu.dynamic_rotate %163 by %c498_i32 dim 1 : vector<16x512xf32>, i32 -> vector<16x512xf32>
    %c12 = arith.constant 12 : index
    %c0_145 = arith.constant 0 : index
    %c0_146 = arith.constant 0 : index
    %237 = vector.load %arg13[%c12, %c0_145, %c0_146] : memref<16x1x512xf32, #tpu.memory_space<vmem>>, vector<1x1x512xf32>
    %238 = vector.shape_cast %237 : vector<1x1x512xf32> to vector<1x512xf32>
    %239 = vector.broadcast %238 : vector<1x512xf32> to vector<16x512xf32>
    %240 = arith.mulf %236, %239 : vector<16x512xf32>
    %241 = arith.addf %235, %240 : vector<16x512xf32>
    %c497_i32_147 = arith.constant 497 : i32
    %242 = tpu.dynamic_rotate %163 by %c497_i32_147 dim 1 : vector<16x512xf32>, i32 -> vector<16x512xf32>
    %c13 = arith.constant 13 : index
    %c0_148 = arith.constant 0 : index
    %c0_149 = arith.constant 0 : index
    %243 = vector.load %arg13[%c13, %c0_148, %c0_149] : memref<16x1x512xf32, #tpu.memory_space<vmem>>, vector<1x1x512xf32>
    %244 = vector.shape_cast %243 : vector<1x1x512xf32> to vector<1x512xf32>
    %245 = vector.broadcast %244 : vector<1x512xf32> to vector<16x512xf32>
    %246 = arith.mulf %242, %245 : vector<16x512xf32>
    %247 = arith.addf %241, %246 : vector<16x512xf32>
    %c496_i32_150 = arith.constant 496 : i32
    %248 = tpu.dynamic_rotate %163 by %c496_i32_150 dim 1 : vector<16x512xf32>, i32 -> vector<16x512xf32>
    %c14 = arith.constant 14 : index
    %c0_151 = arith.constant 0 : index
    %c0_152 = arith.constant 0 : index
    %249 = vector.load %arg13[%c14, %c0_151, %c0_152] : memref<16x1x512xf32, #tpu.memory_space<vmem>>, vector<1x1x512xf32>
    %250 = vector.shape_cast %249 : vector<1x1x512xf32> to vector<1x512xf32>
    %251 = vector.broadcast %250 : vector<1x512xf32> to vector<16x512xf32>
    %252 = arith.mulf %248, %251 : vector<16x512xf32>
    %253 = arith.addf %247, %252 : vector<16x512xf32>
    %c495_i32_153 = arith.constant 495 : i32
    %254 = tpu.dynamic_rotate %163 by %c495_i32_153 dim 1 : vector<16x512xf32>, i32 -> vector<16x512xf32>
    %c15 = arith.constant 15 : index
    %c0_154 = arith.constant 0 : index
    %c0_155 = arith.constant 0 : index
    %255 = vector.load %arg13[%c15, %c0_154, %c0_155] : memref<16x1x512xf32, #tpu.memory_space<vmem>>, vector<1x1x512xf32>
    %256 = vector.shape_cast %255 : vector<1x1x512xf32> to vector<1x512xf32>
    %257 = vector.broadcast %256 : vector<1x512xf32> to vector<16x512xf32>
    %258 = arith.mulf %254, %257 : vector<16x512xf32>
    %259 = arith.addf %253, %258 : vector<16x512xf32>
    %c34_i32_156 = arith.constant 34 : i32
    %260 = tpu.dynamic_rotate %259 by %c34_i32_156 dim 1 : vector<16x512xf32>, i32 -> vector<16x512xf32>
    %c0_157 = arith.constant 0 : index
    %c0_158 = arith.constant 0 : index
    %c0_159 = arith.constant 0 : index
    %261 = vector.load %arg12[%c0_157, %c0_158, %c0_159] : memref<25x1x512xf32, #tpu.memory_space<vmem>>, vector<1x1x512xf32>
    %262 = vector.shape_cast %261 : vector<1x1x512xf32> to vector<1x512xf32>
    %263 = vector.broadcast %262 : vector<1x512xf32> to vector<16x512xf32>
    %264 = arith.mulf %260, %263 : vector<16x512xf32>
    %c33_i32_160 = arith.constant 33 : i32
    %265 = tpu.dynamic_rotate %259 by %c33_i32_160 dim 1 : vector<16x512xf32>, i32 -> vector<16x512xf32>
    %c1_161 = arith.constant 1 : index
    %c0_162 = arith.constant 0 : index
    %c0_163 = arith.constant 0 : index
    %266 = vector.load %arg12[%c1_161, %c0_162, %c0_163] : memref<25x1x512xf32, #tpu.memory_space<vmem>>, vector<1x1x512xf32>
    %267 = vector.shape_cast %266 : vector<1x1x512xf32> to vector<1x512xf32>
    %268 = vector.broadcast %267 : vector<1x512xf32> to vector<16x512xf32>
    %269 = arith.mulf %265, %268 : vector<16x512xf32>
    %c32_i32_164 = arith.constant 32 : i32
    %270 = tpu.dynamic_rotate %259 by %c32_i32_164 dim 1 : vector<16x512xf32>, i32 -> vector<16x512xf32>
    %c2_165 = arith.constant 2 : index
    %c0_166 = arith.constant 0 : index
    %c0_167 = arith.constant 0 : index
    %271 = vector.load %arg12[%c2_165, %c0_166, %c0_167] : memref<25x1x512xf32, #tpu.memory_space<vmem>>, vector<1x1x512xf32>
    %272 = vector.shape_cast %271 : vector<1x1x512xf32> to vector<1x512xf32>
    %273 = vector.broadcast %272 : vector<1x512xf32> to vector<16x512xf32>
    %274 = arith.mulf %270, %273 : vector<16x512xf32>
    %c31_i32_168 = arith.constant 31 : i32
    %275 = tpu.dynamic_rotate %259 by %c31_i32_168 dim 1 : vector<16x512xf32>, i32 -> vector<16x512xf32>
    %c3_169 = arith.constant 3 : index
    %c0_170 = arith.constant 0 : index
    %c0_171 = arith.constant 0 : index
    %276 = vector.load %arg12[%c3_169, %c0_170, %c0_171] : memref<25x1x512xf32, #tpu.memory_space<vmem>>, vector<1x1x512xf32>
    %277 = vector.shape_cast %276 : vector<1x1x512xf32> to vector<1x512xf32>
    %278 = vector.broadcast %277 : vector<1x512xf32> to vector<16x512xf32>
    %279 = arith.mulf %275, %278 : vector<16x512xf32>
    %c30_i32_172 = arith.constant 30 : i32
    %280 = tpu.dynamic_rotate %259 by %c30_i32_172 dim 1 : vector<16x512xf32>, i32 -> vector<16x512xf32>
    %c4_173 = arith.constant 4 : index
    %c0_174 = arith.constant 0 : index
    %c0_175 = arith.constant 0 : index
    %281 = vector.load %arg12[%c4_173, %c0_174, %c0_175] : memref<25x1x512xf32, #tpu.memory_space<vmem>>, vector<1x1x512xf32>
    %282 = vector.shape_cast %281 : vector<1x1x512xf32> to vector<1x512xf32>
    %283 = vector.broadcast %282 : vector<1x512xf32> to vector<16x512xf32>
    %284 = arith.mulf %280, %283 : vector<16x512xf32>
    %c18_i32_176 = arith.constant 18 : i32
    %285 = tpu.dynamic_rotate %259 by %c18_i32_176 dim 1 : vector<16x512xf32>, i32 -> vector<16x512xf32>
    %c5_177 = arith.constant 5 : index
    %c0_178 = arith.constant 0 : index
    %c0_179 = arith.constant 0 : index
    %286 = vector.load %arg12[%c5_177, %c0_178, %c0_179] : memref<25x1x512xf32, #tpu.memory_space<vmem>>, vector<1x1x512xf32>
    %287 = vector.shape_cast %286 : vector<1x1x512xf32> to vector<1x512xf32>
    %288 = vector.broadcast %287 : vector<1x512xf32> to vector<16x512xf32>
    %289 = arith.mulf %285, %288 : vector<16x512xf32>
    %c17_i32_180 = arith.constant 17 : i32
    %290 = tpu.dynamic_rotate %259 by %c17_i32_180 dim 1 : vector<16x512xf32>, i32 -> vector<16x512xf32>
    %c6_181 = arith.constant 6 : index
    %c0_182 = arith.constant 0 : index
    %c0_183 = arith.constant 0 : index
    %291 = vector.load %arg12[%c6_181, %c0_182, %c0_183] : memref<25x1x512xf32, #tpu.memory_space<vmem>>, vector<1x1x512xf32>
    %292 = vector.shape_cast %291 : vector<1x1x512xf32> to vector<1x512xf32>
    %293 = vector.broadcast %292 : vector<1x512xf32> to vector<16x512xf32>
    %294 = arith.mulf %290, %293 : vector<16x512xf32>
    %c16_i32_184 = arith.constant 16 : i32
    %295 = tpu.dynamic_rotate %259 by %c16_i32_184 dim 1 : vector<16x512xf32>, i32 -> vector<16x512xf32>
    %c7_185 = arith.constant 7 : index
    %c0_186 = arith.constant 0 : index
    %c0_187 = arith.constant 0 : index
    %296 = vector.load %arg12[%c7_185, %c0_186, %c0_187] : memref<25x1x512xf32, #tpu.memory_space<vmem>>, vector<1x1x512xf32>
    %297 = vector.shape_cast %296 : vector<1x1x512xf32> to vector<1x512xf32>
    %298 = vector.broadcast %297 : vector<1x512xf32> to vector<16x512xf32>
    %299 = arith.mulf %295, %298 : vector<16x512xf32>
    %c15_i32_188 = arith.constant 15 : i32
    %300 = tpu.dynamic_rotate %259 by %c15_i32_188 dim 1 : vector<16x512xf32>, i32 -> vector<16x512xf32>
    %c8_189 = arith.constant 8 : index
    %c0_190 = arith.constant 0 : index
    %c0_191 = arith.constant 0 : index
    %301 = vector.load %arg12[%c8_189, %c0_190, %c0_191] : memref<25x1x512xf32, #tpu.memory_space<vmem>>, vector<1x1x512xf32>
    %302 = vector.shape_cast %301 : vector<1x1x512xf32> to vector<1x512xf32>
    %303 = vector.broadcast %302 : vector<1x512xf32> to vector<16x512xf32>
    %304 = arith.mulf %300, %303 : vector<16x512xf32>
    %c14_i32 = arith.constant 14 : i32
    %305 = tpu.dynamic_rotate %259 by %c14_i32 dim 1 : vector<16x512xf32>, i32 -> vector<16x512xf32>
    %c9_192 = arith.constant 9 : index
    %c0_193 = arith.constant 0 : index
    %c0_194 = arith.constant 0 : index
    %306 = vector.load %arg12[%c9_192, %c0_193, %c0_194] : memref<25x1x512xf32, #tpu.memory_space<vmem>>, vector<1x1x512xf32>
    %307 = vector.shape_cast %306 : vector<1x1x512xf32> to vector<1x512xf32>
    %308 = vector.broadcast %307 : vector<1x512xf32> to vector<16x512xf32>
    %309 = arith.mulf %305, %308 : vector<16x512xf32>
    %c2_i32_195 = arith.constant 2 : i32
    %310 = tpu.dynamic_rotate %259 by %c2_i32_195 dim 1 : vector<16x512xf32>, i32 -> vector<16x512xf32>
    %c10_196 = arith.constant 10 : index
    %c0_197 = arith.constant 0 : index
    %c0_198 = arith.constant 0 : index
    %311 = vector.load %arg12[%c10_196, %c0_197, %c0_198] : memref<25x1x512xf32, #tpu.memory_space<vmem>>, vector<1x1x512xf32>
    %312 = vector.shape_cast %311 : vector<1x1x512xf32> to vector<1x512xf32>
    %313 = vector.broadcast %312 : vector<1x512xf32> to vector<16x512xf32>
    %314 = arith.mulf %310, %313 : vector<16x512xf32>
    %c1_i32_199 = arith.constant 1 : i32
    %315 = tpu.dynamic_rotate %259 by %c1_i32_199 dim 1 : vector<16x512xf32>, i32 -> vector<16x512xf32>
    %c11_200 = arith.constant 11 : index
    %c0_201 = arith.constant 0 : index
    %c0_202 = arith.constant 0 : index
    %316 = vector.load %arg12[%c11_200, %c0_201, %c0_202] : memref<25x1x512xf32, #tpu.memory_space<vmem>>, vector<1x1x512xf32>
    %317 = vector.shape_cast %316 : vector<1x1x512xf32> to vector<1x512xf32>
    %318 = vector.broadcast %317 : vector<1x512xf32> to vector<16x512xf32>
    %319 = arith.mulf %315, %318 : vector<16x512xf32>
    %c12_203 = arith.constant 12 : index
    %c0_204 = arith.constant 0 : index
    %c0_205 = arith.constant 0 : index
    %320 = vector.load %arg12[%c12_203, %c0_204, %c0_205] : memref<25x1x512xf32, #tpu.memory_space<vmem>>, vector<1x1x512xf32>
    %321 = vector.shape_cast %320 : vector<1x1x512xf32> to vector<1x512xf32>
    %322 = vector.broadcast %321 : vector<1x512xf32> to vector<16x512xf32>
    %323 = arith.mulf %259, %322 : vector<16x512xf32>
    %c511_i32_206 = arith.constant 511 : i32
    %324 = tpu.dynamic_rotate %259 by %c511_i32_206 dim 1 : vector<16x512xf32>, i32 -> vector<16x512xf32>
    %c13_207 = arith.constant 13 : index
    %c0_208 = arith.constant 0 : index
    %c0_209 = arith.constant 0 : index
    %325 = vector.load %arg12[%c13_207, %c0_208, %c0_209] : memref<25x1x512xf32, #tpu.memory_space<vmem>>, vector<1x1x512xf32>
    %326 = vector.shape_cast %325 : vector<1x1x512xf32> to vector<1x512xf32>
    %327 = vector.broadcast %326 : vector<1x512xf32> to vector<16x512xf32>
    %328 = arith.mulf %324, %327 : vector<16x512xf32>
    %c510_i32_210 = arith.constant 510 : i32
    %329 = tpu.dynamic_rotate %259 by %c510_i32_210 dim 1 : vector<16x512xf32>, i32 -> vector<16x512xf32>
    %c14_211 = arith.constant 14 : index
    %c0_212 = arith.constant 0 : index
    %c0_213 = arith.constant 0 : index
    %330 = vector.load %arg12[%c14_211, %c0_212, %c0_213] : memref<25x1x512xf32, #tpu.memory_space<vmem>>, vector<1x1x512xf32>
    %331 = vector.shape_cast %330 : vector<1x1x512xf32> to vector<1x512xf32>
    %332 = vector.broadcast %331 : vector<1x512xf32> to vector<16x512xf32>
    %333 = arith.mulf %329, %332 : vector<16x512xf32>
    %c498_i32_214 = arith.constant 498 : i32
    %334 = tpu.dynamic_rotate %259 by %c498_i32_214 dim 1 : vector<16x512xf32>, i32 -> vector<16x512xf32>
    %c15_215 = arith.constant 15 : index
    %c0_216 = arith.constant 0 : index
    %c0_217 = arith.constant 0 : index
    %335 = vector.load %arg12[%c15_215, %c0_216, %c0_217] : memref<25x1x512xf32, #tpu.memory_space<vmem>>, vector<1x1x512xf32>
    %336 = vector.shape_cast %335 : vector<1x1x512xf32> to vector<1x512xf32>
    %337 = vector.broadcast %336 : vector<1x512xf32> to vector<16x512xf32>
    %338 = arith.mulf %334, %337 : vector<16x512xf32>
    %c497_i32_218 = arith.constant 497 : i32
    %339 = tpu.dynamic_rotate %259 by %c497_i32_218 dim 1 : vector<16x512xf32>, i32 -> vector<16x512xf32>
    %c16 = arith.constant 16 : index
    %c0_219 = arith.constant 0 : index
    %c0_220 = arith.constant 0 : index
    %340 = vector.load %arg12[%c16, %c0_219, %c0_220] : memref<25x1x512xf32, #tpu.memory_space<vmem>>, vector<1x1x512xf32>
    %341 = vector.shape_cast %340 : vector<1x1x512xf32> to vector<1x512xf32>
    %342 = vector.broadcast %341 : vector<1x512xf32> to vector<16x512xf32>
    %343 = arith.mulf %339, %342 : vector<16x512xf32>
    %c496_i32_221 = arith.constant 496 : i32
    %344 = tpu.dynamic_rotate %259 by %c496_i32_221 dim 1 : vector<16x512xf32>, i32 -> vector<16x512xf32>
    %c17 = arith.constant 17 : index
    %c0_222 = arith.constant 0 : index
    %c0_223 = arith.constant 0 : index
    %345 = vector.load %arg12[%c17, %c0_222, %c0_223] : memref<25x1x512xf32, #tpu.memory_space<vmem>>, vector<1x1x512xf32>
    %346 = vector.shape_cast %345 : vector<1x1x512xf32> to vector<1x512xf32>
    %347 = vector.broadcast %346 : vector<1x512xf32> to vector<16x512xf32>
    %348 = arith.mulf %344, %347 : vector<16x512xf32>
    %c495_i32_224 = arith.constant 495 : i32
    %349 = tpu.dynamic_rotate %259 by %c495_i32_224 dim 1 : vector<16x512xf32>, i32 -> vector<16x512xf32>
    %c18 = arith.constant 18 : index
    %c0_225 = arith.constant 0 : index
    %c0_226 = arith.constant 0 : index
    %350 = vector.load %arg12[%c18, %c0_225, %c0_226] : memref<25x1x512xf32, #tpu.memory_space<vmem>>, vector<1x1x512xf32>
    %351 = vector.shape_cast %350 : vector<1x1x512xf32> to vector<1x512xf32>
    %352 = vector.broadcast %351 : vector<1x512xf32> to vector<16x512xf32>
    %353 = arith.mulf %349, %352 : vector<16x512xf32>
    %c494_i32 = arith.constant 494 : i32
    %354 = tpu.dynamic_rotate %259 by %c494_i32 dim 1 : vector<16x512xf32>, i32 -> vector<16x512xf32>
    %c19 = arith.constant 19 : index
    %c0_227 = arith.constant 0 : index
    %c0_228 = arith.constant 0 : index
    %355 = vector.load %arg12[%c19, %c0_227, %c0_228] : memref<25x1x512xf32, #tpu.memory_space<vmem>>, vector<1x1x512xf32>
    %356 = vector.shape_cast %355 : vector<1x1x512xf32> to vector<1x512xf32>
    %357 = vector.broadcast %356 : vector<1x512xf32> to vector<16x512xf32>
    %358 = arith.mulf %354, %357 : vector<16x512xf32>
    %c482_i32_229 = arith.constant 482 : i32
    %359 = tpu.dynamic_rotate %259 by %c482_i32_229 dim 1 : vector<16x512xf32>, i32 -> vector<16x512xf32>
    %c20 = arith.constant 20 : index
    %c0_230 = arith.constant 0 : index
    %c0_231 = arith.constant 0 : index
    %360 = vector.load %arg12[%c20, %c0_230, %c0_231] : memref<25x1x512xf32, #tpu.memory_space<vmem>>, vector<1x1x512xf32>
    %361 = vector.shape_cast %360 : vector<1x1x512xf32> to vector<1x512xf32>
    %362 = vector.broadcast %361 : vector<1x512xf32> to vector<16x512xf32>
    %363 = arith.mulf %359, %362 : vector<16x512xf32>
    %c481_i32 = arith.constant 481 : i32
    %364 = tpu.dynamic_rotate %259 by %c481_i32 dim 1 : vector<16x512xf32>, i32 -> vector<16x512xf32>
    %c21 = arith.constant 21 : index
    %c0_232 = arith.constant 0 : index
    %c0_233 = arith.constant 0 : index
    %365 = vector.load %arg12[%c21, %c0_232, %c0_233] : memref<25x1x512xf32, #tpu.memory_space<vmem>>, vector<1x1x512xf32>
    %366 = vector.shape_cast %365 : vector<1x1x512xf32> to vector<1x512xf32>
    %367 = vector.broadcast %366 : vector<1x512xf32> to vector<16x512xf32>
    %368 = arith.mulf %364, %367 : vector<16x512xf32>
    %c480_i32_234 = arith.constant 480 : i32
    %369 = tpu.dynamic_rotate %259 by %c480_i32_234 dim 1 : vector<16x512xf32>, i32 -> vector<16x512xf32>
    %c22 = arith.constant 22 : index
    %c0_235 = arith.constant 0 : index
    %c0_236 = arith.constant 0 : index
    %370 = vector.load %arg12[%c22, %c0_235, %c0_236] : memref<25x1x512xf32, #tpu.memory_space<vmem>>, vector<1x1x512xf32>
    %371 = vector.shape_cast %370 : vector<1x1x512xf32> to vector<1x512xf32>
    %372 = vector.broadcast %371 : vector<1x512xf32> to vector<16x512xf32>
    %373 = arith.mulf %369, %372 : vector<16x512xf32>
    %c479_i32 = arith.constant 479 : i32
    %374 = tpu.dynamic_rotate %259 by %c479_i32 dim 1 : vector<16x512xf32>, i32 -> vector<16x512xf32>
    %c23 = arith.constant 23 : index
    %c0_237 = arith.constant 0 : index
    %c0_238 = arith.constant 0 : index
    %375 = vector.load %arg12[%c23, %c0_237, %c0_238] : memref<25x1x512xf32, #tpu.memory_space<vmem>>, vector<1x1x512xf32>
    %376 = vector.shape_cast %375 : vector<1x1x512xf32> to vector<1x512xf32>
    %377 = vector.broadcast %376 : vector<1x512xf32> to vector<16x512xf32>
    %378 = arith.mulf %374, %377 : vector<16x512xf32>
    %c478_i32_239 = arith.constant 478 : i32
    %379 = tpu.dynamic_rotate %259 by %c478_i32_239 dim 1 : vector<16x512xf32>, i32 -> vector<16x512xf32>
    %c24 = arith.constant 24 : index
    %c0_240 = arith.constant 0 : index
    %c0_241 = arith.constant 0 : index
    %380 = vector.load %arg12[%c24, %c0_240, %c0_241] : memref<25x1x512xf32, #tpu.memory_space<vmem>>, vector<1x1x512xf32>
    %381 = vector.shape_cast %380 : vector<1x1x512xf32> to vector<1x512xf32>
    %382 = vector.broadcast %381 : vector<1x512xf32> to vector<16x512xf32>
    %383 = arith.mulf %379, %382 : vector<16x512xf32>
    %c0_242 = arith.constant 0 : index
    %c0_243 = arith.constant 0 : index
    %384 = vector.load %arg8[%c0_242, %c0_243] : memref<2x400xf32, #tpu.memory_space<vmem>>, vector<2x400xf32>
    %385 = tpu.concatenate %264, %269, %274, %279, %284, %289, %294, %299, %304, %309, %314, %319, %323, %328, %333, %338 in 0 : vector<16x512xf32>, vector<16x512xf32>, vector<16x512xf32>, vector<16x512xf32>, vector<16x512xf32>, vector<16x512xf32>, vector<16x512xf32>, vector<16x512xf32>, vector<16x512xf32>, vector<16x512xf32>, vector<16x512xf32>, vector<16x512xf32>, vector<16x512xf32>, vector<16x512xf32>, vector<16x512xf32>, vector<16x512xf32> -> vector<256x512xf32>
    %386 = tpu.concatenate %343, %348, %353, %358, %363, %368, %373, %378, %383 in 0 : vector<16x512xf32>, vector<16x512xf32>, vector<16x512xf32>, vector<16x512xf32>, vector<16x512xf32>, vector<16x512xf32>, vector<16x512xf32>, vector<16x512xf32>, vector<16x512xf32> -> vector<144x512xf32>
    %387 = tpu.concatenate %385, %386 in 0 : vector<256x512xf32>, vector<144x512xf32> -> vector<400x512xf32>
    %cst_244 = arith.constant dense<0.000000e+00> : vector<2x512xf32>
    %388 = tpu.matmul %384, %387, %cst_244 {dimension_numbers = #tpu.dot_dimension_numbers<[1], [0], [0], [1], [0, 0, 1, 1], [], []>} : vector<2x400xf32>, vector<400x512xf32>, vector<2x512xf32> -> vector<2x512xf32>
    %c0_245 = arith.constant 0 : index
    %c0_246 = arith.constant 0 : index
    %389 = vector.load %arg9[%c0_245, %c0_246] : memref<2x1xf32, #tpu.memory_space<vmem>>, vector<2x1xf32>
    %390 = vector.broadcast %389 : vector<2x1xf32> to vector<2x512xf32>
    %391 = arith.addf %388, %390 : vector<2x512xf32>
    %392 = vector.extract_strided_slice %391 {offsets = [0, 0], sizes = [1, 512], strides = [1, 1]} : vector<2x512xf32> to vector<1x512xf32>
    %393 = vector.extract_strided_slice %391 {offsets = [1, 0], sizes = [1, 512], strides = [1, 1]} : vector<2x512xf32> to vector<1x512xf32>
    %394 = arith.maximumf %392, %393 : vector<1x512xf32>
    %395 = arith.subf %392, %394 : vector<1x512xf32>
    %396 = math.exp %395 : vector<1x512xf32>
    %397 = arith.subf %393, %394 : vector<1x512xf32>
    %398 = math.exp %397 : vector<1x512xf32>
    %399 = arith.addf %396, %398 : vector<1x512xf32>
    %400 = tpu.reciprocal %399 {approx = true} : vector<1x512xf32> -> vector<1x512xf32>
    %401 = arith.mulf %396, %400 : vector<1x512xf32>
    %cst_247 = arith.constant 1.000000e+00 : f32
    %402 = vector.broadcast %cst_247 : f32 to vector<1x512xf32>
    %403 = arith.subf %402, %401 : vector<1x512xf32>
    %404 = tpu.concatenate %401, %403 in 0 : vector<1x512xf32>, vector<1x512xf32> -> vector<2x512xf32>
    %c0_248 = arith.constant 0 : index
    %c0_249 = arith.constant 0 : index
    %c0_250 = arith.constant 0 : index
    %405 = vector.load %arg14[%c0_248, %c0_249, %c0_250] : memref<1x2x512xf32, #tpu.memory_space<vmem>>, vector<1x2x512xf32>
    %406 = vector.shape_cast %405 : vector<1x2x512xf32> to vector<2x512xf32>
    %407 = vector.shape_cast %404 : vector<2x512xf32> to vector<1x2x512xf32>
    tpu.vector_store %arg14[%c0_248, %c0_249, %c0_250], %407 {strides = array<i32>} : memref<1x2x512xf32, #tpu.memory_space<vmem>>, vector<1x2x512xf32>,
    return
  }
  func.func @transform_0(%arg0: i32) -> (i32, i32, i32) {
    %c0_i32 = arith.constant 0 : i32
    %c0_i32_0 = arith.constant 0 : i32
    %c0_i32_1 = arith.constant 0 : i32
    return %arg0, %c0_i32, %c0_i32_0 : i32, i32, i32
  }
  func.func @transform_1(%arg0: i32) -> (i32, i32) {
    %c0_i32 = arith.constant 0 : i32
    %c0_i32_0 = arith.constant 0 : i32
    %c0_i32_1 = arith.constant 0 : i32
    return %c0_i32, %c0_i32_0 : i32, i32
  }
  func.func @transform_2(%arg0: i32) -> (i32, i32) {
    %c0_i32 = arith.constant 0 : i32
    %c0_i32_0 = arith.constant 0 : i32
    %c0_i32_1 = arith.constant 0 : i32
    return %c0_i32, %c0_i32_0 : i32, i32
  }
  func.func @transform_3(%arg0: i32) -> (i32, i32) {
    %c0_i32 = arith.constant 0 : i32
    %c0_i32_0 = arith.constant 0 : i32
    %c0_i32_1 = arith.constant 0 : i32
    return %c0_i32, %c0_i32_0 : i32, i32
  }
  func.func @transform_4(%arg0: i32) -> (i32, i32) {
    %c0_i32 = arith.constant 0 : i32
    %c0_i32_0 = arith.constant 0 : i32
    %c0_i32_1 = arith.constant 0 : i32
    return %c0_i32, %c0_i32_0 : i32, i32
  }
  func.func @transform_5(%arg0: i32) -> (i32, i32) {
    %c0_i32 = arith.constant 0 : i32
    %c0_i32_0 = arith.constant 0 : i32
    %c0_i32_1 = arith.constant 0 : i32
    return %c0_i32, %c0_i32_0 : i32, i32
  }
  func.func @transform_6(%arg0: i32) -> (i32, i32) {
    %c0_i32 = arith.constant 0 : i32
    %c0_i32_0 = arith.constant 0 : i32
    %c0_i32_1 = arith.constant 0 : i32
    return %c0_i32, %c0_i32_0 : i32, i32
  }
  func.func @transform_7(%arg0: i32) -> (i32, i32) {
    %c0_i32 = arith.constant 0 : i32
    %c0_i32_0 = arith.constant 0 : i32
    %c0_i32_1 = arith.constant 0 : i32
    return %c0_i32, %c0_i32_0 : i32, i32
  }
  func.func @transform_8(%arg0: i32) -> (i32, i32) {
    %c0_i32 = arith.constant 0 : i32
    %c0_i32_0 = arith.constant 0 : i32
    %c0_i32_1 = arith.constant 0 : i32
    return %c0_i32, %c0_i32_0 : i32, i32
  }
  func.func @transform_9(%arg0: i32) -> (i32, i32, i32) {
    %c0_i32 = arith.constant 0 : i32
    %c0_i32_0 = arith.constant 0 : i32
    %c0_i32_1 = arith.constant 0 : i32
    %c0_i32_2 = arith.constant 0 : i32
    return %c0_i32, %c0_i32_0, %c0_i32_1 : i32, i32, i32
  }
  func.func @transform_10(%arg0: i32) -> (i32, i32, i32) {
    %c0_i32 = arith.constant 0 : i32
    %c0_i32_0 = arith.constant 0 : i32
    %c0_i32_1 = arith.constant 0 : i32
    %c0_i32_2 = arith.constant 0 : i32
    return %c0_i32, %c0_i32_0, %c0_i32_1 : i32, i32, i32
  }
  func.func @transform_11(%arg0: i32) -> (i32, i32, i32) {
    %c0_i32 = arith.constant 0 : i32
    %c0_i32_0 = arith.constant 0 : i32
    %c0_i32_1 = arith.constant 0 : i32
    %c0_i32_2 = arith.constant 0 : i32
    return %c0_i32, %c0_i32_0, %c0_i32_1 : i32, i32, i32
  }
  func.func @transform_12(%arg0: i32) -> (i32, i32, i32) {
    %c0_i32 = arith.constant 0 : i32
    %c0_i32_0 = arith.constant 0 : i32
    %c0_i32_1 = arith.constant 0 : i32
    %c0_i32_2 = arith.constant 0 : i32
    return %c0_i32, %c0_i32_0, %c0_i32_1 : i32, i32, i32
  }
  func.func @transform_13(%arg0: i32) -> (i32, i32, i32) {
    %c0_i32 = arith.constant 0 : i32
    %c0_i32_0 = arith.constant 0 : i32
    %c0_i32_1 = arith.constant 0 : i32
    return %arg0, %c0_i32, %c0_i32_0 : i32, i32, i32
  }
}

</mosaic_0001>

<llo_original>
// kernel: net_forward.1
$region0: #{net_forward.1}
  #allocation0 [shape = 'u32[]', space=smem, size = 0x4, offset = 0x4, fixed_abs, tag = 'smem constant byte address 0x4 - core index']
  #allocation1 [shape = 'u32[144,128]{1,0:T(1,128)}', space=vmem, size = 0x12000, scoped, tag = 'internal scratch']
  %s0 = inlined_call_operand.vmem [shape: f32[2,8,512], index: 0, kind: input, shape index: {}]
  %s1 = inlined_call_operand.vmem [shape: f32[16,72], index: 1, kind: input, shape index: {}]
  %s2 = inlined_call_operand.vmem [shape: f32[16,1], index: 2, kind: input, shape index: {}]
  %s3 = inlined_call_operand.vmem [shape: f32[32,144], index: 3, kind: input, shape index: {}]
  %s4 = inlined_call_operand.vmem [shape: f32[32,1], index: 4, kind: input, shape index: {}]
  %s5 = inlined_call_operand.vmem [shape: f32[16,288], index: 5, kind: input, shape index: {}]
  %s6 = inlined_call_operand.vmem [shape: f32[16,1], index: 6, kind: input, shape index: {}]
  %s7 = inlined_call_operand.vmem [shape: f32[2,400], index: 7, kind: input, shape index: {}]
  %s8 = inlined_call_operand.vmem [shape: f32[2,1], index: 8, kind: input, shape index: {}]
  %s9 = inlined_call_operand.vmem [shape: f32[9,1,512], index: 9, kind: input, shape index: {}]
  %s10 = inlined_call_operand.vmem [shape: f32[9,1,512], index: 10, kind: input, shape index: {}]
  %s11 = inlined_call_operand.vmem [shape: f32[25,1,512], index: 11, kind: input, shape index: {}]
  %s12 = inlined_call_operand.vmem [shape: f32[16,1,512], index: 12, kind: input, shape index: {}]
  %s13 = inlined_call_operand.vmem [shape: f32[2,2,512], index: 13, kind: output, shape index: {}]
  %s14 = sld [smem:[#allocation0]]
  $region85: #{net_forward.1} parent=0
    _
  %s16 = ssub.s32 1, %s14
  %s17 = scalar_select 0, %s16, %s14
  loop: start=0, step=1, limit=4
  $region2: #{net_forward.1} parent=0 // loop_pre_header
    _
  $region3: #{net_forward.1} parent=0 // loop_header
    %s19 = sphi 0, %s23
    %p20 = scmp.ge.s32.totalorder %s19, 4
    %s29 = sphi 0, %s31
    %s32 = sphi 0, %s29
    %s33 = sphi 0, %s32
    %s49 = sphi 0, %s33
    %s53 = sphi 0, %s53
    %s55 = sphi 0, %s53
    %s56 = sphi 0, %s55
    %s70 = sphi 0, %s56
    %s74 = sphi 0, %s74
    %s76 = sphi 0, %s74
    %s77 = sphi 0, %s76
    %s91 = sphi 0, %s77
    %s95 = sphi 0, %s95
    %s97 = sphi 0, %s95
    %s98 = sphi 0, %s97
    %s112 = sphi 0, %s98
    %s116 = sphi 0, %s116
    %s118 = sphi 0, %s116
    %s119 = sphi 0, %s118
    %s133 = sphi 0, %s119
    %s137 = sphi 0, %s137
    %s139 = sphi 0, %s137
    %s140 = sphi 0, %s139
    %s154 = sphi 0, %s140
    %s158 = sphi 0, %s158
    %s160 = sphi 0, %s158
    %s161 = sphi 0, %s160
    %s175 = sphi 0, %s161
    %s179 = sphi 0, %s179
    %s181 = sphi 0, %s179
    %s182 = sphi 0, %s181
    %s196 = sphi 0, %s182
    %s200 = sphi 0, %s200
    %s202 = sphi 0, %s200
    %s203 = sphi 0, %s202
    %s217 = sphi 0, %s203
    %s221 = sphi 0, %s221
    %s223 = sphi 0, %s221
    %s224 = sphi 0, %s223
    %s238 = sphi 0, %s224
    %s242 = sphi 0, %s242
    %s244 = sphi 0, %s242
    %s245 = sphi 0, %s244
    %s259 = sphi 0, %s245
    %s263 = sphi 0, %s263
    %s265 = sphi 0, %s263
    %s266 = sphi 0, %s265
    %s280 = sphi 0, %s266
    %s284 = sphi 0, %s284
    %s286 = sphi 0, %s284
    %s287 = sphi 0, %s286
    %s301 = sphi 0, %s287
    %s307 = sphi 0, %s309
    %s310 = sphi 0, %s307
    %s311 = sphi 0, %s310
    %s327 = sphi 0, %s311
  $region4: #{net_forward.1} parent=0 // loop_header_branch
    %22 = sbr.rel (%p20) target = $region8
  $region5: #{net_forward.1} parent=0 // loop_body
    %s24 = ssub.s32 %s19, 1
    %s25 = ssub.s32 %s19, 2
    %s26 = sadd.s32 %s19, 1
    %s27 = ssub.s32 %s19, %s26
    %p28 = scmp.eq.s32.totalorder %s27, 0
    %s30 = sadd.s32 %s29, 1
    %s31 = scalar_select %p28, %s29, %s30
    %p34 = pneg %p28
    %p35 = scmp.eq.s32.totalorder %s19, 1
    %p36 = por %p34, %p35
    %p37 = scmp.ne.s32.totalorder %s29, %s32
    %p38 = scmp.eq.s32.totalorder %s19, 0
    %p39 = por %p37, %p38
    %p40 = scmp.ne.s32.totalorder %s29, %s32
    %p41 = scmp.eq.s32.totalorder %s24, 1
    %p42 = por %p40, %p41
    %p43 = scmp.ne.s32.totalorder %s32, %s33
    %p44 = scmp.eq.s32.totalorder %s24, 0
    %p45 = por %p43, %p44
    %p46 = scmp.ne.s32.totalorder %s32, %s33
    %p47 = scmp.eq.s32.totalorder %s25, 1
    %p48 = por %p46, %p47
    %p50 = scmp.ne.s32.totalorder %s33, %s49
    %p51 = scmp.eq.s32.totalorder %s25, 0
    %p52 = por %p50, %p51
    %s54 = sadd.s32 %s53, 1
    %p57 = scmp.eq.s32.totalorder %s19, 1
    %p58 = scmp.ne.s32.totalorder %s53, %s55
    %p59 = scmp.eq.s32.totalorder %s19, 0
    %p60 = por %p58, %p59
    %p61 = scmp.ne.s32.totalorder %s53, %s55
    %p62 = scmp.eq.s32.totalorder %s24, 1
    %p63 = por %p61, %p62
    %p64 = scmp.ne.s32.totalorder %s55, %s56
    %p65 = scmp.eq.s32.totalorder %s24, 0
    %p66 = por %p64, %p65
    %p67 = scmp.ne.s32.totalorder %s55, %s56
    %p68 = scmp.eq.s32.totalorder %s25, 1
    %p69 = por %p67, %p68
    %p71 = scmp.ne.s32.totalorder %s56, %s70
    %p72 = scmp.eq.s32.totalorder %s25, 0
    %p73 = por %p71, %p72
    %s75 = sadd.s32 %s74, 1
    %p78 = scmp.eq.s32.totalorder %s19, 1
    %p79 = scmp.ne.s32.totalorder %s74, %s76
    %p80 = scmp.eq.s32.totalorder %s19, 0
    %p81 = por %p79, %p80
    %p82 = scmp.ne.s32.totalorder %s74, %s76
    %p83 = scmp.eq.s32.totalorder %s24, 1
    %p84 = por %p82, %p83
    %p85 = scmp.ne.s32.totalorder %s76, %s77
    %p86 = scmp.eq.s32.totalorder %s24, 0
    %p87 = por %p85, %p86
    %p88 = scmp.ne.s32.totalorder %s76, %s77
    %p89 = scmp.eq.s32.totalorder %s25, 1
    %p90 = por %p88, %p89
    %p92 = scmp.ne.s32.totalorder %s77, %s91
    %p93 = scmp.eq.s32.totalorder %s25, 0
    %p94 = por %p92, %p93
    %s96 = sadd.s32 %s95, 1
    %p99 = scmp.eq.s32.totalorder %s19, 1
    %p100 = scmp.ne.s32.totalorder %s95, %s97
    %p101 = scmp.eq.s32.totalorder %s19, 0
    %p102 = por %p100, %p101
    %p103 = scmp.ne.s32.totalorder %s95, %s97
    %p104 = scmp.eq.s32.totalorder %s24, 1
    %p105 = por %p103, %p104
    %p106 = scmp.ne.s32.totalorder %s97, %s98
    %p107 = scmp.eq.s32.totalorder %s24, 0
    %p108 = por %p106, %p107
    %p109 = scmp.ne.s32.totalorder %s97, %s98
    %p110 = scmp.eq.s32.totalorder %s25, 1
    %p111 = por %p109, %p110
    %p113 = scmp.ne.s32.totalorder %s98, %s112
    %p114 = scmp.eq.s32.totalorder %s25, 0
    %p115 = por %p113, %p114
    %s117 = sadd.s32 %s116, 1
    %p120 = scmp.eq.s32.totalorder %s19, 1
    %p121 = scmp.ne.s32.totalorder %s116, %s118
    %p122 = scmp.eq.s32.totalorder %s19, 0
    %p123 = por %p121, %p122
    %p124 = scmp.ne.s32.totalorder %s116, %s118
    %p125 = scmp.eq.s32.totalorder %s24, 1
    %p126 = por %p124, %p125
    %p127 = scmp.ne.s32.totalorder %s118, %s119
    %p128 = scmp.eq.s32.totalorder %s24, 0
    %p129 = por %p127, %p128
    %p130 = scmp.ne.s32.totalorder %s118, %s119
    %p131 = scmp.eq.s32.totalorder %s25, 1
    %p132 = por %p130, %p131
    %p134 = scmp.ne.s32.totalorder %s119, %s133
    %p135 = scmp.eq.s32.totalorder %s25, 0
    %p136 = por %p134, %p135
    %s138 = sadd.s32 %s137, 1
    %p141 = scmp.eq.s32.totalorder %s19, 1
    %p142 = scmp.ne.s32.totalorder %s137, %s139
    %p143 = scmp.eq.s32.totalorder %s19, 0
    %p144 = por %p142, %p143
    %p145 = scmp.ne.s32.totalorder %s137, %s139
    %p146 = scmp.eq.s32.totalorder %s24, 1
    %p147 = por %p145, %p146
    %p148 = scmp.ne.s32.totalorder %s139, %s140
    %p149 = scmp.eq.s32.totalorder %s24, 0
    %p150 = por %p148, %p149
    %p151 = scmp.ne.s32.totalorder %s139, %s140
    %p152 = scmp.eq.s32.totalorder %s25, 1
    %p153 = por %p151, %p152
    %p155 = scmp.ne.s32.totalorder %s140, %s154
    %p156 = scmp.eq.s32.totalorder %s25, 0
    %p157 = por %p155, %p156
    %s159 = sadd.s32 %s158, 1
    %p162 = scmp.eq.s32.totalorder %s19, 1
    %p163 = scmp.ne.s32.totalorder %s158, %s160
    %p164 = scmp.eq.s32.totalorder %s19, 0
    %p165 = por %p163, %p164
    %p166 = scmp.ne.s32.totalorder %s158, %s160
    %p167 = scmp.eq.s32.totalorder %s24, 1
    %p168 = por %p166, %p167
    %p169 = scmp.ne.s32.totalorder %s160, %s161
    %p170 = scmp.eq.s32.totalorder %s24, 0
    %p171 = por %p169, %p170
    %p172 = scmp.ne.s32.totalorder %s160, %s161
    %p173 = scmp.eq.s32.totalorder %s25, 1
    %p174 = por %p172, %p173
    %p176 = scmp.ne.s32.totalorder %s161, %s175
    %p177 = scmp.eq.s32.totalorder %s25, 0
    %p178 = por %p176, %p177
    %s180 = sadd.s32 %s179, 1
    %p183 = scmp.eq.s32.totalorder %s19, 1
    %p184 = scmp.ne.s32.totalorder %s179, %s181
    %p185 = scmp.eq.s32.totalorder %s19, 0
    %p186 = por %p184, %p185
    %p187 = scmp.ne.s32.totalorder %s179, %s181
    %p188 = scmp.eq.s32.totalorder %s24, 1
    %p189 = por %p187, %p188
    %p190 = scmp.ne.s32.totalorder %s181, %s182
    %p191 = scmp.eq.s32.totalorder %s24, 0
    %p192 = por %p190, %p191
    %p193 = scmp.ne.s32.totalorder %s181, %s182
    %p194 = scmp.eq.s32.totalorder %s25, 1
    %p195 = por %p193, %p194
    %p197 = scmp.ne.s32.totalorder %s182, %s196
    %p198 = scmp.eq.s32.totalorder %s25, 0
    %p199 = por %p197, %p198
    %s201 = sadd.s32 %s200, 1
    %p204 = scmp.eq.s32.totalorder %s19, 1
    %p205 = scmp.ne.s32.totalorder %s200, %s202
    %p206 = scmp.eq.s32.totalorder %s19, 0
    %p207 = por %p205, %p206
    %p208 = scmp.ne.s32.totalorder %s200, %s202
    %p209 = scmp.eq.s32.totalorder %s24, 1
    %p210 = por %p208, %p209
    %p211 = scmp.ne.s32.totalorder %s202, %s203
    %p212 = scmp.eq.s32.totalorder %s24, 0
    %p213 = por %p211, %p212
    %p214 = scmp.ne.s32.totalorder %s202, %s203
    %p215 = scmp.eq.s32.totalorder %s25, 1
    %p216 = por %p214, %p215
    %p218 = scmp.ne.s32.totalorder %s203, %s217
    %p219 = scmp.eq.s32.totalorder %s25, 0
    %p220 = por %p218, %p219
    %s222 = sadd.s32 %s221, 1
    %p225 = scmp.eq.s32.totalorder %s19, 1
    %p226 = scmp.ne.s32.totalorder %s221, %s223
    %p227 = scmp.eq.s32.totalorder %s19, 0
    %p228 = por %p226, %p227
    %p229 = scmp.ne.s32.totalorder %s221, %s223
    %p230 = scmp.eq.s32.totalorder %s24, 1
    %p231 = por %p229, %p230
    %p232 = scmp.ne.s32.totalorder %s223, %s224
    %p233 = scmp.eq.s32.totalorder %s24, 0
    %p234 = por %p232, %p233
    %p235 = scmp.ne.s32.totalorder %s223, %s224
    %p236 = scmp.eq.s32.totalorder %s25, 1
    %p237 = por %p235, %p236
    %p239 = scmp.ne.s32.totalorder %s224, %s238
    %p240 = scmp.eq.s32.totalorder %s25, 0
    %p241 = por %p239, %p240
    %s243 = sadd.s32 %s242, 1
    %p246 = scmp.eq.s32.totalorder %s19, 1
    %p247 = scmp.ne.s32.totalorder %s242, %s244
    %p248 = scmp.eq.s32.totalorder %s19, 0
    %p249 = por %p247, %p248
    %p250 = scmp.ne.s32.totalorder %s242, %s244
    %p251 = scmp.eq.s32.totalorder %s24, 1
    %p252 = por %p250, %p251
    %p253 = scmp.ne.s32.totalorder %s244, %s245
    %p254 = scmp.eq.s32.totalorder %s24, 0
    %p255 = por %p253, %p254
    %p256 = scmp.ne.s32.totalorder %s244, %s245
    %p257 = scmp.eq.s32.totalorder %s25, 1
    %p258 = por %p256, %p257
    %p260 = scmp.ne.s32.totalorder %s245, %s259
    %p261 = scmp.eq.s32.totalorder %s25, 0
    %p262 = por %p260, %p261
    %s264 = sadd.s32 %s263, 1
    %p267 = scmp.eq.s32.totalorder %s19, 1
    %p268 = scmp.ne.s32.totalorder %s263, %s265
    %p269 = scmp.eq.s32.totalorder %s19, 0
    %p270 = por %p268, %p269
    %p271 = scmp.ne.s32.totalorder %s263, %s265
    %p272 = scmp.eq.s32.totalorder %s24, 1
    %p273 = por %p271, %p272
    %p274 = scmp.ne.s32.totalorder %s265, %s266
    %p275 = scmp.eq.s32.totalorder %s24, 0
    %p276 = por %p274, %p275
    %p277 = scmp.ne.s32.totalorder %s265, %s266
    %p278 = scmp.eq.s32.totalorder %s25, 1
    %p279 = por %p277, %p278
    %p281 = scmp.ne.s32.totalorder %s266, %s280
    %p282 = scmp.eq.s32.totalorder %s25, 0
    %p283 = por %p281, %p282
    %s285 = sadd.s32 %s284, 1
    %p288 = scmp.eq.s32.totalorder %s19, 1
    %p289 = scmp.ne.s32.totalorder %s284, %s286
    %p290 = scmp.eq.s32.totalorder %s19, 0
    %p291 = por %p289, %p290
    %p292 = scmp.ne.s32.totalorder %s284, %s286
    %p293 = scmp.eq.s32.totalorder %s24, 1
    %p294 = por %p292, %p293
    %p295 = scmp.ne.s32.totalorder %s286, %s287
    %p296 = scmp.eq.s32.totalorder %s24, 0
    %p297 = por %p295, %p296
    %p298 = scmp.ne.s32.totalorder %s286, %s287
    %p299 = scmp.eq.s32.totalorder %s25, 1
    %p300 = por %p298, %p299
    %p302 = scmp.ne.s32.totalorder %s287, %s301
    %p303 = scmp.eq.s32.totalorder %s25, 0
    %p304 = por %p302, %p303
    %s305 = ssub.s32 %s19, %s26
    %p306 = scmp.eq.s32.totalorder %s305, 0
    %s308 = sadd.s32 %s307, 1
    %s309 = scalar_select %p306, %s307, %s308
    %p312 = pneg %p306
    %p313 = scmp.eq.s32.totalorder %s19, 1
    %p314 = por %p312, %p313
    %p315 = scmp.ne.s32.totalorder %s307, %s310
    %p316 = scmp.eq.s32.totalorder %s19, 0
    %p317 = por %p315, %p316
    %p318 = scmp.ne.s32.totalorder %s307, %s310
    %p319 = scmp.eq.s32.totalorder %s24, 1
    %p320 = por %p318, %p319
    %p321 = scmp.ne.s32.totalorder %s310, %s311
    %p322 = scmp.eq.s32.totalorder %s24, 0
    %p323 = por %p321, %p322
    %p324 = scmp.ne.s32.totalorder %s310, %s311
    %p325 = scmp.eq.s32.totalorder %s25, 1
    %p326 = por %p324, %p325
    %p328 = scmp.ne.s32.totalorder %s311, %s327
    %p329 = scmp.eq.s32.totalorder %s25, 0
    %p330 = por %p328, %p329
    %p331 = scmp.le.s32.totalorder 1, %s19
    %p332 = scmp.lt.s32.totalorder %s19, 3
    %p333 = pnand %p331, %p332
    %p334 = pneg %p333
    // Predicated region
    $region9: #{net_forward.1} parent=5 // pred_check
      _
    $region10: #{net_forward.1} parent=5 // pred_check_branch
      %336 = sbr.rel (%p333) target = $region12
    $region11: #{net_forward.1} parent=5 // pred_region
      %s337 = ssub.s32 %s19, 1
      // Predicated region
      $region13: #{net_forward.1} parent=11 // pred_check
        %p338 = pneg %p66
      $region14: #{net_forward.1} parent=11 // pred_check_branch
        %340 = sbr.rel (%p338) target = $region16
      $region15: #{net_forward.1} parent=11 // pred_region
        _
      $region16: #{net_forward.1} parent=11 // pred_fallthru
        _
      // Predicated region
      $region17: #{net_forward.1} parent=11 // pred_check
        %p341 = pneg %p87
      $region18: #{net_forward.1} parent=11 // pred_check_branch
        %343 = sbr.rel (%p341) target = $region20
      $region19: #{net_forward.1} parent=11 // pred_region
        _
      $region20: #{net_forward.1} parent=11 // pred_fallthru
        _
      // Predicated region
      $region21: #{net_forward.1} parent=11 // pred_check
        %p344 = pneg %p108
      $region22: #{net_forward.1} parent=11 // pred_check_branch
        %346 = sbr.rel (%p344) target = $region24
      $region23: #{net_forward.1} parent=11 // pred_region
        _
      $region24: #{net_forward.1} parent=11 // pred_fallthru
        _
      // Predicated region
      $region25: #{net_forward.1} parent=11 // pred_check
        %p347 = pneg %p129
      $region26: #{net_forward.1} parent=11 // pred_check_branch
        %349 = sbr.rel (%p347) target = $region28
      $region27: #{net_forward.1} parent=11 // pred_region
        _
      $region28: #{net_forward.1} parent=11 // pred_fallthru
        _
      // Predicated region
      $region29: #{net_forward.1} parent=11 // pred_check
        %p350 = pneg %p150
      $region30: #{net_forward.1} parent=11 // pred_check_branch
        %352 = sbr.rel (%p350) target = $region32
      $region31: #{net_forward.1} parent=11 // pred_region
        _
      $region32: #{net_forward.1} parent=11 // pred_fallthru
        _
      // Predicated region
      $region33: #{net_forward.1} parent=11 // pred_check
        %p353 = pneg %p171
      $region34: #{net_forward.1} parent=11 // pred_check_branch
        %355 = sbr.rel (%p353) target = $region36
      $region35: #{net_forward.1} parent=11 // pred_region
        _
      $region36: #{net_forward.1} parent=11 // pred_fallthru
        _
      // Predicated region
      $region37: #{net_forward.1} parent=11 // pred_check
        %p356 = pneg %p192
      $region38: #{net_forward.1} parent=11 // pred_check_branch
        %358 = sbr.rel (%p356) target = $region40
      $region39: #{net_forward.1} parent=11 // pred_region
        _
      $region40: #{net_forward.1} parent=11 // pred_fallthru
        _
      // Predicated region
      $region41: #{net_forward.1} parent=11 // pred_check
        %p359 = pneg %p213
      $region42: #{net_forward.1} parent=11 // pred_check_branch
        %361 = sbr.rel (%p359) target = $region44
      $region43: #{net_forward.1} parent=11 // pred_region
        _
      $region44: #{net_forward.1} parent=11 // pred_fallthru
        _
      // Predicated region
      $region45: #{net_forward.1} parent=11 // pred_check
        %p362 = pneg %p234
      $region46: #{net_forward.1} parent=11 // pred_check_branch
        %364 = sbr.rel (%p362) target = $region48
      $region47: #{net_forward.1} parent=11 // pred_region
        _
      $region48: #{net_forward.1} parent=11 // pred_fallthru
        _
      // Predicated region
      $region49: #{net_forward.1} parent=11 // pred_check
        %p365 = pneg %p255
      $region50: #{net_forward.1} parent=11 // pred_check_branch
        %367 = sbr.rel (%p365) target = $region52
      $region51: #{net_forward.1} parent=11 // pred_region
        _
      $region52: #{net_forward.1} parent=11 // pred_fallthru
        _
      // Predicated region
      $region53: #{net_forward.1} parent=11 // pred_check
        %p368 = pneg %p276
      $region54: #{net_forward.1} parent=11 // pred_check_branch
        %370 = sbr.rel (%p368) target = $region56
      $region55: #{net_forward.1} parent=11 // pred_region
        _
      $region56: #{net_forward.1} parent=11 // pred_fallthru
        _
      // Predicated region
      $region57: #{net_forward.1} parent=11 // pred_check
        %p371 = pneg %p297
      $region58: #{net_forward.1} parent=11 // pred_check_branch
        %373 = sbr.rel (%p371) target = $region60
      $region59: #{net_forward.1} parent=11 // pred_region
        _
      $region60: #{net_forward.1} parent=11 // pred_fallthru
        _
    $region12: #{net_forward.1} parent=5 // pred_fallthru
      _
    %p374 = scmp.lt.s32.totalorder %s19, 2
    // Predicated region
    $region61: #{net_forward.1} parent=5 // pred_check
      %p375 = pneg %p374
    $region62: #{net_forward.1} parent=5 // pred_check_branch
      %377 = sbr.rel (%p375) target = $region64
    $region63: #{net_forward.1} parent=5 // pred_region
      // Predicated region
      $region65: #{net_forward.1} parent=63 // pred_check
        %p378 = pneg %p39
      $region66: #{net_forward.1} parent=63 // pred_check_branch
        %380 = sbr.rel (%p378) target = $region68
      $region67: #{net_forward.1} parent=63 // pred_region
        %p381 = scmp.lt.s32.totalorder %s19, 1
        %s382 = scalar_select %p381, %s19, 1
        %s383 = smul.addr %s382, 4
        %s384 = smul.addr %s383, 8
        %s385 = scalar_lea.vmem %s0, %s384
      $region68: #{net_forward.1} parent=63 // pred_fallthru
        _
    $region64: #{net_forward.1} parent=5 // pred_fallthru
      _
    %p386 = scmp.le.s32.totalorder 1, %s19
    %p387 = scmp.lt.s32.totalorder %s19, 3
    %p388 = pnand %p386, %p387
    %p389 = pneg %p388
    // Predicated region
    $region69: #{net_forward.1} parent=5 // pred_check
      _
    $region70: #{net_forward.1} parent=5 // pred_check_branch
      %391 = sbr.rel (%p388) target = $region72
    $region71: #{net_forward.1} parent=5 // pred_region
      %s392 = ssub.s32 %s19, 1
      %p393 = scmp.lt.s32.totalorder %s24, 1
      %s394 = scalar_select %p393, %s24, 1
      %s395 = smul.addr %s394, 4
      %s396 = smul.addr %s395, 8
      %s397 = scalar_lea.vmem %s0, %s396
      %p398 = pneg %p45
      %p399 = pneg %p42
      %p400 = pneg %p66
      %p401 = pneg %p63
      %p402 = pneg %p87
      %p403 = pneg %p84
      %p404 = pneg %p108
      %p405 = pneg %p105
      %p406 = pneg %p129
      %p407 = pneg %p126
      %p408 = pneg %p150
      %p409 = pneg %p147
      %p410 = pneg %p171
      %p411 = pneg %p168
      %p412 = pneg %p192
      %p413 = pneg %p189
      %p414 = pneg %p213
      %p415 = pneg %p210
      %p416 = pneg %p234
      %p417 = pneg %p231
      %p418 = pneg %p255
      %p419 = pneg %p252
      %p420 = pneg %p276
      %p421 = pneg %p273
      %p422 = pneg %p297
      %p423 = pneg %p294
      %p424 = pneg %p323
      %p425 = pneg %p320
      %p426 = scmp.lt.s32.totalorder %s24, 1
      %s427 = scalar_select %p426, %s24, 1
      %s428 = smul.addr %s427, 4
      %s429 = smul.addr %s428, 2
      %s430 = scalar_lea.vmem %s13, %s429
      %p431 = scmp.lt.s32.totalorder %s24, 1
      %s432 = scalar_select %p431, %s24, 1
      %s433 = smul.addr %s432, 4
      %s434 = smul.addr %s433, 8
      %s435 = scalar_lea.vmem %s0, %s434
      %p436 = scmp.lt.s32.totalorder %s24, 1
      %s437 = scalar_select %p436, %s24, 1
      %s438 = smul.addr %s437, 4
      %s439 = smul.addr %s438, 2
      %s440 = scalar_lea.vmem %s13, %s439
      %v441 = vld [vmem:[%s435] sm:$0xff]
      %v442 = vld [vmem:[%s435 + $0x8] sm:$0xff]
      %v443 = vld [vmem:[%s435 + $0x10] sm:$0xff]
      %v444 = vld [vmem:[%s435 + $0x18] sm:$0xff]
      %445 = vrot.lane.b32.xlu0 %v441, 17
      %v446 = vpop.permute.xlu0 %445
      %447 = vrot.lane.b32.xlu0 %v442, 17
      %v448 = vpop.permute.xlu0 %447
      %449 = vrot.lane.b32.xlu0 %v443, 17
      %v450 = vpop.permute.xlu0 %449
      %451 = vrot.lane.b32.xlu0 %v444, 17
      %v452 = vpop.permute.xlu0 %451
      %v453 = vlaneseq
      %v454 = vand.u32 %v453, 127
      %vm455 = vcmp.lt.s32.totalorder %v454, 17
      %v456 = vsel %vm455, %v450, %v452
      %v457 = vsel %vm455, %v448, %v450
      %v458 = vsel %vm455, %v446, %v448
      %v459 = vsel %vm455, %v452, %v446
      %v460 = vld [vmem:[%s9] sm:$0xf]
      %v462 = vlaneseq
      %v463 = vshrl.u32 %v462, 7
      %v464 = vsub.s32 0, %v463
      %v465 = vrot.slane %v460, %v464
      %v466 = vlaneseq
      %v467 = vshrl.u32 %v466, 7
      %v468 = vsub.s32 1, %v467
      %v469 = vrot.slane %v460, %v468
      %v470 = vlaneseq
      %v471 = vshrl.u32 %v470, 7
      %v472 = vsub.s32 2, %v471
      %v473 = vrot.slane %v460, %v472
      %v474 = vlaneseq
      %v475 = vshrl.u32 %v474, 7
      %v476 = vsub.s32 3, %v475
      %v477 = vrot.slane %v460, %v476
      %v482 = vmul.f32 %v459, %v465
      %v483 = vmul.f32 %v458, %v469
      %v484 = vmul.f32 %v457, %v473
      %v485 = vmul.f32 %v456, %v477
      %486 = vrot.lane.b32.xlu0 %v441, 16
      %v487 = vpop.permute.xlu0 %486
      %488 = vrot.lane.b32.xlu0 %v442, 16
      %v489 = vpop.permute.xlu0 %488
      %490 = vrot.lane.b32.xlu0 %v443, 16
      %v491 = vpop.permute.xlu0 %490
      %492 = vrot.lane.b32.xlu0 %v444, 16
      %v493 = vpop.permute.xlu0 %492
      %vm494 = vcmp.lt.s32.totalorder %v454, 16
      %v495 = vsel %vm494, %v491, %v493
      %v496 = vsel %vm494, %v489, %v491
      %v497 = vsel %vm494, %v487, %v489
      %v498 = vsel %vm494, %v493, %v487
      %s499 = scalar_lea.vmem %s9, 4
      %v500 = vld [vmem:[%s499] sm:$0xf]
      %v502 = vlaneseq
      %v503 = vshrl.u32 %v502, 7
      %v504 = vsub.s32 0, %v503
      %v505 = vrot.slane %v500, %v504
      %v506 = vlaneseq
      %v507 = vshrl.u32 %v506, 7
      %v508 = vsub.s32 1, %v507
      %v509 = vrot.slane %v500, %v508
      %v510 = vlaneseq
      %v511 = vshrl.u32 %v510, 7
      %v512 = vsub.s32 2, %v511
      %v513 = vrot.slane %v500, %v512
      %v514 = vlaneseq
      %v515 = vshrl.u32 %v514, 7
      %v516 = vsub.s32 3, %v515
      %v517 = vrot.slane %v500, %v516
      %v522 = vmul.f32 %v498, %v505
      %v523 = vmul.f32 %v497, %v509
      %v524 = vmul.f32 %v496, %v513
      %v525 = vmul.f32 %v495, %v517
      %526 = vrot.lane.b32.xlu0 %v441, 15
      %v527 = vpop.permute.xlu0 %526
      %528 = vrot.lane.b32.xlu0 %v442, 15
      %v529 = vpop.permute.xlu0 %528
      %530 = vrot.lane.b32.xlu0 %v443, 15
      %v531 = vpop.permute.xlu0 %530
      %532 = vrot.lane.b32.xlu0 %v444, 15
      %v533 = vpop.permute.xlu0 %532
      %vm534 = vcmp.lt.s32.totalorder %v454, 15
      %v535 = vsel %vm534, %v531, %v533
      %v536 = vsel %vm534, %v529, %v531
      %v537 = vsel %vm534, %v527, %v529
      %v538 = vsel %vm534, %v533, %v527
      %s539 = scalar_lea.vmem %s9, 8
      %v540 = vld [vmem:[%s539] sm:$0xf]
      %v542 = vlaneseq
      %v543 = vshrl.u32 %v542, 7
      %v544 = vsub.s32 0, %v543
      %v545 = vrot.slane %v540, %v544
      %v546 = vlaneseq
      %v547 = vshrl.u32 %v546, 7
      %v548 = vsub.s32 1, %v547
      %v549 = vrot.slane %v540, %v548
      %v550 = vlaneseq
      %v551 = vshrl.u32 %v550, 7
      %v552 = vsub.s32 2, %v551
      %v553 = vrot.slane %v540, %v552
      %v554 = vlaneseq
      %v555 = vshrl.u32 %v554, 7
      %v556 = vsub.s32 3, %v555
      %v557 = vrot.slane %v540, %v556
      %v562 = vmul.f32 %v538, %v545
      %v563 = vmul.f32 %v537, %v549
      %v564 = vmul.f32 %v536, %v553
      %v565 = vmul.f32 %v535, %v557
      %566 = vrot.lane.b32.xlu0 %v441, 1
      %v567 = vpop.permute.xlu0 %566
      %568 = vrot.lane.b32.xlu0 %v442, 1
      %v569 = vpop.permute.xlu0 %568
      %570 = vrot.lane.b32.xlu0 %v443, 1
      %v571 = vpop.permute.xlu0 %570
      %572 = vrot.lane.b32.xlu0 %v444, 1
      %v573 = vpop.permute.xlu0 %572
      %vm574 = vcmp.lt.s32.totalorder %v454, 1
      %v575 = vsel %vm574, %v571, %v573
      %v576 = vsel %vm574, %v569, %v571
      %v577 = vsel %vm574, %v567, %v569
      %v578 = vsel %vm574, %v573, %v567
      %s579 = scalar_lea.vmem %s9, 12
      %v580 = vld [vmem:[%s579] sm:$0xf]
      %v582 = vlaneseq
      %v583 = vshrl.u32 %v582, 7
      %v584 = vsub.s32 0, %v583
      %v585 = vrot.slane %v580, %v584
      %v586 = vlaneseq
      %v587 = vshrl.u32 %v586, 7
      %v588 = vsub.s32 1, %v587
      %v589 = vrot.slane %v580, %v588
      %v590 = vlaneseq
      %v591 = vshrl.u32 %v590, 7
      %v592 = vsub.s32 2, %v591
      %v593 = vrot.slane %v580, %v592
      %v594 = vlaneseq
      %v595 = vshrl.u32 %v594, 7
      %v596 = vsub.s32 3, %v595
      %v597 = vrot.slane %v580, %v596
      %v602 = vmul.f32 %v578, %v585
      %v603 = vmul.f32 %v577, %v589
      %v604 = vmul.f32 %v576, %v593
      %v605 = vmul.f32 %v575, %v597
      %s606 = scalar_lea.vmem %s9, 16
      %v607 = vld [vmem:[%s606] sm:$0xf]
      %v609 = vlaneseq
      %v610 = vshrl.u32 %v609, 7
      %v611 = vsub.s32 0, %v610
      %v612 = vrot.slane %v607, %v611
      %v613 = vlaneseq
      %v614 = vshrl.u32 %v613, 7
      %v615 = vsub.s32 1, %v614
      %v616 = vrot.slane %v607, %v615
      %v617 = vlaneseq
      %v618 = vshrl.u32 %v617, 7
      %v619 = vsub.s32 2, %v618
      %v620 = vrot.slane %v607, %v619
      %v621 = vlaneseq
      %v622 = vshrl.u32 %v621, 7
      %v623 = vsub.s32 3, %v622
      %v624 = vrot.slane %v607, %v623
      %v629 = vmul.f32 %v441, %v612
      %v630 = vmul.f32 %v442, %v616
      %v631 = vmul.f32 %v443, %v620
      %v632 = vmul.f32 %v444, %v624
      %633 = vrot.lane.b32.xlu0 %v441, 127
      %v634 = vpop.permute.xlu0 %633
      %635 = vrot.lane.b32.xlu0 %v442, 127
      %v636 = vpop.permute.xlu0 %635
      %637 = vrot.lane.b32.xlu0 %v443, 127
      %v638 = vpop.permute.xlu0 %637
      %639 = vrot.lane.b32.xlu0 %v444, 127
      %v640 = vpop.permute.xlu0 %639
      %vm641 = vcmp.lt.s32.totalorder %v454, 127
      %v642 = vsel %vm641, %v638, %v640
      %v643 = vsel %vm641, %v636, %v638
      %v644 = vsel %vm641, %v634, %v636
      %v645 = vsel %vm641, %v640, %v634
      %s646 = scalar_lea.vmem %s9, 20
      %v647 = vld [vmem:[%s646] sm:$0xf]
      %v649 = vlaneseq
      %v650 = vshrl.u32 %v649, 7
      %v651 = vsub.s32 0, %v650
      %v652 = vrot.slane %v647, %v651
      %v653 = vlaneseq
      %v654 = vshrl.u32 %v653, 7
      %v655 = vsub.s32 1, %v654
      %v656 = vrot.slane %v647, %v655
      %v657 = vlaneseq
      %v658 = vshrl.u32 %v657, 7
      %v659 = vsub.s32 2, %v658
      %v660 = vrot.slane %v647, %v659
      %v661 = vlaneseq
      %v662 = vshrl.u32 %v661, 7
      %v663 = vsub.s32 3, %v662
      %v664 = vrot.slane %v647, %v663
      %v669 = vmul.f32 %v644, %v652
      %v670 = vmul.f32 %v643, %v656
      %v671 = vmul.f32 %v642, %v660
      %v672 = vmul.f32 %v645, %v664
      %673 = vrot.lane.b32.xlu0 %v441, 113
      %v674 = vpop.permute.xlu0 %673
      %675 = vrot.lane.b32.xlu0 %v442, 113
      %v676 = vpop.permute.xlu0 %675
      %677 = vrot.lane.b32.xlu0 %v443, 113
      %v678 = vpop.permute.xlu0 %677
      %679 = vrot.lane.b32.xlu0 %v444, 113
      %v680 = vpop.permute.xlu0 %679
      %vm681 = vcmp.lt.s32.totalorder %v454, 113
      %v682 = vsel %vm681, %v678, %v680
      %v683 = vsel %vm681, %v676, %v678
      %v684 = vsel %vm681, %v674, %v676
      %v685 = vsel %vm681, %v680, %v674
      %s686 = scalar_lea.vmem %s9, 24
      %v687 = vld [vmem:[%s686] sm:$0xf]
      %v689 = vlaneseq
      %v690 = vshrl.u32 %v689, 7
      %v691 = vsub.s32 0, %v690
      %v692 = vrot.slane %v687, %v691
      %v693 = vlaneseq
      %v694 = vshrl.u32 %v693, 7
      %v695 = vsub.s32 1, %v694
      %v696 = vrot.slane %v687, %v695
      %v697 = vlaneseq
      %v698 = vshrl.u32 %v697, 7
      %v699 = vsub.s32 2, %v698
      %v700 = vrot.slane %v687, %v699
      %v701 = vlaneseq
      %v702 = vshrl.u32 %v701, 7
      %v703 = vsub.s32 3, %v702
      %v704 = vrot.slane %v687, %v703
      %v709 = vmul.f32 %v684, %v692
      %v710 = vmul.f32 %v683, %v696
      %v711 = vmul.f32 %v682, %v700
      %v712 = vmul.f32 %v685, %v704
      %713 = vrot.lane.b32.xlu0 %v441, 112
      %v714 = vpop.permute.xlu0 %713
      %715 = vrot.lane.b32.xlu0 %v442, 112
      %v716 = vpop.permute.xlu0 %715
      %717 = vrot.lane.b32.xlu0 %v443, 112
      %v718 = vpop.permute.xlu0 %717
      %719 = vrot.lane.b32.xlu0 %v444, 112
      %v720 = vpop.permute.xlu0 %719
      %vm721 = vcmp.lt.s32.totalorder %v454, 112
      %v722 = vsel %vm721, %v718, %v720
      %v723 = vsel %vm721, %v716, %v718
      %v724 = vsel %vm721, %v714, %v716
      %v725 = vsel %vm721, %v720, %v714
      %s726 = scalar_lea.vmem %s9, 28
      %v727 = vld [vmem:[%s726] sm:$0xf]
      %v729 = vlaneseq
      %v730 = vshrl.u32 %v729, 7
      %v731 = vsub.s32 0, %v730
      %v732 = vrot.slane %v727, %v731
      %v733 = vlaneseq
      %v734 = vshrl.u32 %v733, 7
      %v735 = vsub.s32 1, %v734
      %v736 = vrot.slane %v727, %v735
      %v737 = vlaneseq
      %v738 = vshrl.u32 %v737, 7
      %v739 = vsub.s32 2, %v738
      %v740 = vrot.slane %v727, %v739
      %v741 = vlaneseq
      %v742 = vshrl.u32 %v741, 7
      %v743 = vsub.s32 3, %v742
      %v744 = vrot.slane %v727, %v743
      %v749 = vmul.f32 %v724, %v732
      %v750 = vmul.f32 %v723, %v736
      %v751 = vmul.f32 %v722, %v740
      %v752 = vmul.f32 %v725, %v744
      %753 = vrot.lane.b32.xlu0 %v441, 111
      %v754 = vpop.permute.xlu0 %753
      %755 = vrot.lane.b32.xlu0 %v442, 111
      %v756 = vpop.permute.xlu0 %755
      %757 = vrot.lane.b32.xlu0 %v443, 111
      %v758 = vpop.permute.xlu0 %757
      %759 = vrot.lane.b32.xlu0 %v444, 111
      %v760 = vpop.permute.xlu0 %759
      %vm761 = vcmp.lt.s32.totalorder %v454, 111
      %v762 = vsel %vm761, %v758, %v760
      %v763 = vsel %vm761, %v756, %v758
      %v764 = vsel %vm761, %v754, %v756
      %v765 = vsel %vm761, %v760, %v754
      %s766 = scalar_lea.vmem %s9, 32
      %v767 = vld [vmem:[%s766] sm:$0xf]
      %v769 = vlaneseq
      %v770 = vshrl.u32 %v769, 7
      %v771 = vsub.s32 0, %v770
      %v772 = vrot.slane %v767, %v771
      %v773 = vlaneseq
      %v774 = vshrl.u32 %v773, 7
      %v775 = vsub.s32 1, %v774
      %v776 = vrot.slane %v767, %v775
      %v777 = vlaneseq
      %v778 = vshrl.u32 %v777, 7
      %v779 = vsub.s32 2, %v778
      %v780 = vrot.slane %v767, %v779
      %v781 = vlaneseq
      %v782 = vshrl.u32 %v781, 7
      %v783 = vsub.s32 3, %v782
      %v784 = vrot.slane %v767, %v783
      %v789 = vmul.f32 %v764, %v772
      %v790 = vmul.f32 %v763, %v776
      %v791 = vmul.f32 %v762, %v780
      %v792 = vmul.f32 %v765, %v784
      %v793 = vld [vmem:[%s1] sm:$0xff]
      %v794 = vld [vmem:[%s1 + $0x8] sm:$0xff]
      %v795 = vld [vmem:[%s2] sm:$0xff]
      %v796 = vld [vmem:[%s2 + $0x8] sm:$0xff]
      %798 = vset.pattern.permute.xlu0 0
      %799 = vperm.xlu0 %798, %v795
      %v800 = vpop.permute.xlu0 %799
      %803 = vset.pattern.permute.xlu0 0
      %804 = vperm.xlu0 %803, %v796
      %v805 = vpop.permute.xlu0 %804
      %vm807 = vcmask 588800
      %v809 = vsel %vm807, %v793, 0
      %v812 = vsel %vm807, %v794, 0
      %814 = vmatprep.subr.mxu0 %v483
      %815 = vmatpush1.msra.mxu0 %v482
      %816 = vmatprep.subr.mxu0 %v523
      %817 = vmatpush1.msra.mxu0 %v522
      %818 = vmatprep.subr.mxu0 %v563
      %819 = vmatpush1.msra.mxu0 %v562
      %820 = vmatprep.subr.mxu0 %v603
      %821 = vmatpush1.msra.mxu0 %v602
      %822 = vmatprep.subr.mxu0 %v630
      %823 = vmatpush1.msra.mxu0 %v629
      %824 = vmatprep.subr.mxu0 %v670
      %825 = vmatpush1.msra.mxu0 %v669
      %826 = vmatprep.subr.mxu0 %v710
      %827 = vmatpush1.msra.mxu0 %v709
      %828 = vmatprep.subr.mxu0 %v750
      %829 = vmatpush1.msra.mxu0 %v749
      %830 = vmatprep.subr.mxu0 %v790
      %831 = vmatpush1.msra.mxu0 %v789
      %832 = vmatprep.subr.mxu0 0.0
      %833 = vmatpush1.msra.mxu0 0.0
      %834 = vmatprep.subr.mxu0 0.0
      %835 = vmatpush1.msra.mxu0 0.0
      %836 = vmatprep.subr.mxu0 0.0
      %837 = vmatpush1.msra.mxu0 0.0
      %838 = vmatprep.subr.mxu0 0.0
      %839 = vmatpush1.msra.mxu0 0.0
      %840 = vmatprep.subr.mxu0 0.0
      %841 = vmatpush1.msra.mxu0 0.0
      %842 = vmatprep.subr.mxu0 0.0
      %843 = vmatpush1.msra.mxu0 0.0
      %844 = vmatprep.subr.mxu0 0.0
      %845 = vmatpush1.msra.mxu0 0.0
      %846 = vmatprep.subr.mxu0 0.0
      %847 = vmatpush1.msra.mxu0 0.0
      %848 = vmatprep.subr.mxu0 0.0
      %849 = vmatpush1.msra.mxu0 0.0
      %850 = vmatprep.subr.mxu0 0.0
      %851 = vmatpush1.msra.mxu0 0.0
      %852 = vmatprep.subr.mxu0 0.0
      %853 = vmatpush1.msra.mxu0 0.0
      %854 = vmatprep.subr.mxu0 0.0
      %855 = vmatpush1.msra.mxu0 0.0
      %856 = vmatprep.subr.mxu0 0.0
      %857 = vmatpush1.msra.mxu0 0.0
      %858 = vmatprep.subr.mxu0 0.0
      %859 = vmatpush1.msra.mxu0 0.0
      %860 = vmatprep.subr.mxu0 0.0
      %861 = vmatpush1.msra.mxu0 0.0
      %862 = vmatprep.subr.mxu0 0.0
      %863 = vmatpush1.msra.mxu0 0.0
      %864 = vmatprep.subr.mxu0 0.0
      %865 = vmatpush1.msra.mxu0 0.0
      %866 = vmatprep.subr.mxu0 0.0
      %867 = vmatpush1.msra.mxu0 0.0
      %868 = vmatprep.subr.mxu0 0.0
      %869 = vmatpush1.msra.mxu0 0.0
      %870 = vmatprep.subr.mxu0 0.0
      %871 = vmatpush1.msra.mxu0 0.0
      %872 = vmatprep.subr.mxu0 0.0
      %873 = vmatpush1.msra.mxu0 0.0
      %874 = vmatprep.subr.mxu0 0.0
      %875 = vmatpush1.msra.mxu0 0.0
      %876 = vmatprep.subr.mxu0 0.0
      %877 = vmatpush1.msra.mxu0 0.0
      %878 = vmatprep.mubr.f32.mxu0 0.0
      %879 = vmatmul.mubr.f32.gmra.mrb[0].mxu0 %v809
      %v880 = vpop.f32.mrb[0].mxu0
      %v881 = vadd.f32 %v800, %v880
      %v882 = vpop.f32.mrb[0].mxu0
      %v883 = vadd.f32 %v800, %v882
      %884 = vmatprep.mubr.f32.mxu0 0.0
      %885 = vmatmul.mubr.f32.gmra.mrb[0].mxu0 %v812
      %v886 = vpop.f32.mrb[0].mxu0
      %v887 = vadd.f32 %v805, %v886
      %v888 = vpop.f32.mrb[0].mxu0
      %v889 = vadd.f32 %v805, %v888
      %890 = vdwg.mxu0
      %891 = vmatprep.subr.mxu0 %v485
      %892 = vmatpush1.msra.mxu0 %v484
      %893 = vmatprep.subr.mxu0 %v525
      %894 = vmatpush1.msra.mxu0 %v524
      %895 = vmatprep.subr.mxu0 %v565
      %896 = vmatpush1.msra.mxu0 %v564
      %897 = vmatprep.subr.mxu0 %v605
      %898 = vmatpush1.msra.mxu0 %v604
      %899 = vmatprep.subr.mxu0 %v632
      %900 = vmatpush1.msra.mxu0 %v631
      %901 = vmatprep.subr.mxu0 %v672
      %902 = vmatpush1.msra.mxu0 %v671
      %903 = vmatprep.subr.mxu0 %v712
      %904 = vmatpush1.msra.mxu0 %v711
      %905 = vmatprep.subr.mxu0 %v752
      %906 = vmatpush1.msra.mxu0 %v751
      %907 = vmatprep.subr.mxu0 %v792
      %908 = vmatpush1.msra.mxu0 %v791
      %909 = vmatprep.subr.mxu0 0.0
      %910 = vmatpush1.msra.mxu0 0.0
      %911 = vmatprep.subr.mxu0 0.0
      %912 = vmatpush1.msra.mxu0 0.0
      %913 = vmatprep.subr.mxu0 0.0
      %914 = vmatpush1.msra.mxu0 0.0
      %915 = vmatprep.subr.mxu0 0.0
      %916 = vmatpush1.msra.mxu0 0.0
      %917 = vmatprep.subr.mxu0 0.0
      %918 = vmatpush1.msra.mxu0 0.0
      %919 = vmatprep.subr.mxu0 0.0
      %920 = vmatpush1.msra.mxu0 0.0
      %921 = vmatprep.subr.mxu0 0.0
      %922 = vmatpush1.msra.mxu0 0.0
      %923 = vmatprep.subr.mxu0 0.0
      %924 = vmatpush1.msra.mxu0 0.0
      %925 = vmatprep.subr.mxu0 0.0
      %926 = vmatpush1.msra.mxu0 0.0
      %927 = vmatprep.subr.mxu0 0.0
      %928 = vmatpush1.msra.mxu0 0.0
      %929 = vmatprep.subr.mxu0 0.0
      %930 = vmatpush1.msra.mxu0 0.0
      %931 = vmatprep.subr.mxu0 0.0
      %932 = vmatpush1.msra.mxu0 0.0
      %933 = vmatprep.subr.mxu0 0.0
      %934 = vmatpush1.msra.mxu0 0.0
      %935 = vmatprep.subr.mxu0 0.0
      %936 = vmatpush1.msra.mxu0 0.0
      %937 = vmatprep.subr.mxu0 0.0
      %938 = vmatpush1.msra.mxu0 0.0
      %939 = vmatprep.subr.mxu0 0.0
      %940 = vmatpush1.msra.mxu0 0.0
      %941 = vmatprep.subr.mxu0 0.0
      %942 = vmatpush1.msra.mxu0 0.0
      %943 = vmatprep.subr.mxu0 0.0
      %944 = vmatpush1.msra.mxu0 0.0
      %945 = vmatprep.subr.mxu0 0.0
      %946 = vmatpush1.msra.mxu0 0.0
      %947 = vmatprep.subr.mxu0 0.0
      %948 = vmatpush1.msra.mxu0 0.0
      %949 = vmatprep.subr.mxu0 0.0
      %950 = vmatpush1.msra.mxu0 0.0
      %951 = vmatprep.subr.mxu0 0.0
      %952 = vmatpush1.msra.mxu0 0.0
      %953 = vmatprep.subr.mxu0 0.0
      %954 = vmatpush1.msra.mxu0 0.0
      %955 = vmatprep.mubr.f32.mxu0 0.0
      %956 = vmatmul.mubr.f32.gmra.mrb[0].mxu0 %v809
      %v957 = vpop.f32.mrb[0].mxu0
      %v958 = vadd.f32 %v800, %v957
      %v959 = vpop.f32.mrb[0].mxu0
      %v960 = vadd.f32 %v800, %v959
      %961 = vmatprep.mubr.f32.mxu0 0.0
      %962 = vmatmul.mubr.f32.gmra.mrb[0].mxu0 %v812
      %v963 = vpop.f32.mrb[0].mxu0
      %v964 = vadd.f32 %v805, %v963
      %v965 = vpop.f32.mrb[0].mxu0
      %v966 = vadd.f32 %v805, %v965
      %967 = vdwg.mxu0
      %v968 = vmax.f32 %v881, 0.0
      %v969 = vmax.f32 %v883, 0.0
      %v970 = vmax.f32 %v958, 0.0
      %v971 = vmax.f32 %v960, 0.0
      %v972 = vmax.f32 %v887, 0.0
      %v973 = vmax.f32 %v889, 0.0
      %v974 = vmax.f32 %v964, 0.0
      %v975 = vmax.f32 %v966, 0.0
      %976 = vrot.lane.b32.xlu0 %v968, 17
      %v977 = vpop.permute.xlu0 %976
      %978 = vrot.lane.b32.xlu0 %v972, 17
      %v979 = vpop.permute.xlu0 %978
      %980 = vrot.lane.b32.xlu0 %v969, 17
      %v981 = vpop.permute.xlu0 %980
      %982 = vrot.lane.b32.xlu0 %v973, 17
      %v983 = vpop.permute.xlu0 %982
      %984 = vrot.lane.b32.xlu0 %v970, 17
      %v985 = vpop.permute.xlu0 %984
      %986 = vrot.lane.b32.xlu0 %v974, 17
      %v987 = vpop.permute.xlu0 %986
      %988 = vrot.lane.b32.xlu0 %v971, 17
      %v989 = vpop.permute.xlu0 %988
      %990 = vrot.lane.b32.xlu0 %v975, 17
      %v991 = vpop.permute.xlu0 %990
      %v992 = vsel %vm455, %v985, %v989
      %v993 = vsel %vm455, %v987, %v991
      %v994 = vsel %vm455, %v981, %v985
      %v995 = vsel %vm455, %v983, %v987
      %v996 = vsel %vm455, %v977, %v981
      %v997 = vsel %vm455, %v979, %v983
      %v998 = vsel %vm455, %v989, %v977
      %v999 = vsel %vm455, %v991, %v979
      %v1000 = vmul.f32 %v998, %v465
      %v1001 = vmul.f32 %v996, %v469
      %v1002 = vmul.f32 %v994, %v473
      %v1003 = vmul.f32 %v992, %v477
      %v1004 = vmul.f32 %v999, %v465
      %v1005 = vmul.f32 %v997, %v469
      %v1006 = vmul.f32 %v995, %v473
      %v1007 = vmul.f32 %v993, %v477
      %1008 = vrot.lane.b32.xlu0 %v968, 16
      %v1009 = vpop.permute.xlu0 %1008
      %1010 = vrot.lane.b32.xlu0 %v972, 16
      %v1011 = vpop.permute.xlu0 %1010
      %1012 = vrot.lane.b32.xlu0 %v969, 16
      %v1013 = vpop.permute.xlu0 %1012
      %1014 = vrot.lane.b32.xlu0 %v973, 16
      %v1015 = vpop.permute.xlu0 %1014
      %1016 = vrot.lane.b32.xlu0 %v970, 16
      %v1017 = vpop.permute.xlu0 %1016
      %1018 = vrot.lane.b32.xlu0 %v974, 16
      %v1019 = vpop.permute.xlu0 %1018
      %1020 = vrot.lane.b32.xlu0 %v971, 16
      %v1021 = vpop.permute.xlu0 %1020
      %1022 = vrot.lane.b32.xlu0 %v975, 16
      %v1023 = vpop.permute.xlu0 %1022
      %v1024 = vsel %vm494, %v1017, %v1021
      %v1025 = vsel %vm494, %v1019, %v1023
      %v1026 = vsel %vm494, %v1013, %v1017
      %v1027 = vsel %vm494, %v1015, %v1019
      %v1028 = vsel %vm494, %v1009, %v1013
      %v1029 = vsel %vm494, %v1011, %v1015
      %v1030 = vsel %vm494, %v1021, %v1009
      %v1031 = vsel %vm494, %v1023, %v1011
      %v1032 = vmul.f32 %v1030, %v505
      %v1033 = vmul.f32 %v1028, %v509
      %v1034 = vmul.f32 %v1026, %v513
      %v1035 = vmul.f32 %v1024, %v517
      %v1036 = vmul.f32 %v1031, %v505
      %v1037 = vmul.f32 %v1029, %v509
      %v1038 = vmul.f32 %v1027, %v513
      %v1039 = vmul.f32 %v1025, %v517
      %1040 = vrot.lane.b32.xlu0 %v968, 15
      %v1041 = vpop.permute.xlu0 %1040
      %1042 = vrot.lane.b32.xlu0 %v972, 15
      %v1043 = vpop.permute.xlu0 %1042
      %1044 = vrot.lane.b32.xlu0 %v969, 15
      %v1045 = vpop.permute.xlu0 %1044
      %1046 = vrot.lane.b32.xlu0 %v973, 15
      %v1047 = vpop.permute.xlu0 %1046
      %1048 = vrot.lane.b32.xlu0 %v970, 15
      %v1049 = vpop.permute.xlu0 %1048
      %1050 = vrot.lane.b32.xlu0 %v974, 15
      %v1051 = vpop.permute.xlu0 %1050
      %1052 = vrot.lane.b32.xlu0 %v971, 15
      %v1053 = vpop.permute.xlu0 %1052
      %1054 = vrot.lane.b32.xlu0 %v975, 15
      %v1055 = vpop.permute.xlu0 %1054
      %v1056 = vsel %vm534, %v1049, %v1053
      %v1057 = vsel %vm534, %v1051, %v1055
      %v1058 = vsel %vm534, %v1045, %v1049
      %v1059 = vsel %vm534, %v1047, %v1051
      %v1060 = vsel %vm534, %v1041, %v1045
      %v1061 = vsel %vm534, %v1043, %v1047
      %v1062 = vsel %vm534, %v1053, %v1041
      %v1063 = vsel %vm534, %v1055, %v1043
      %v1064 = vmul.f32 %v1062, %v545
      %v1065 = vmul.f32 %v1060, %v549
      %v1066 = vmul.f32 %v1058, %v553
      %v1067 = vmul.f32 %v1056, %v557
      %v1068 = vmul.f32 %v1063, %v545
      %v1069 = vmul.f32 %v1061, %v549
      %v1070 = vmul.f32 %v1059, %v553
      %v1071 = vmul.f32 %v1057, %v557
      %1072 = vrot.lane.b32.xlu0 %v968, 1
      %v1073 = vpop.permute.xlu0 %1072
      %1074 = vrot.lane.b32.xlu0 %v972, 1
      %v1075 = vpop.permute.xlu0 %1074
      %1076 = vrot.lane.b32.xlu0 %v969, 1
      %v1077 = vpop.permute.xlu0 %1076
      %1078 = vrot.lane.b32.xlu0 %v973, 1
      %v1079 = vpop.permute.xlu0 %1078
      %1080 = vrot.lane.b32.xlu0 %v970, 1
      %v1081 = vpop.permute.xlu0 %1080
      %1082 = vrot.lane.b32.xlu0 %v974, 1
      %v1083 = vpop.permute.xlu0 %1082
      %1084 = vrot.lane.b32.xlu0 %v971, 1
      %v1085 = vpop.permute.xlu0 %1084
      %1086 = vrot.lane.b32.xlu0 %v975, 1
      %v1087 = vpop.permute.xlu0 %1086
      %v1088 = vsel %vm574, %v1081, %v1085
      %v1089 = vsel %vm574, %v1083, %v1087
      %v1090 = vsel %vm574, %v1077, %v1081
      %v1091 = vsel %vm574, %v1079, %v1083
      %v1092 = vsel %vm574, %v1073, %v1077
      %v1093 = vsel %vm574, %v1075, %v1079
      %v1094 = vsel %vm574, %v1085, %v1073
      %v1095 = vsel %vm574, %v1087, %v1075
      %v1096 = vmul.f32 %v1094, %v585
      %v1097 = vmul.f32 %v1092, %v589
      %v1098 = vmul.f32 %v1090, %v593
      %v1099 = vmul.f32 %v1088, %v597
      %v1100 = vmul.f32 %v1095, %v585
      %v1101 = vmul.f32 %v1093, %v589
      %v1102 = vmul.f32 %v1091, %v593
      %v1103 = vmul.f32 %v1089, %v597
      %v1104 = vmul.f32 %v968, %v612
      %v1105 = vmul.f32 %v969, %v616
      %v1106 = vmul.f32 %v970, %v620
      %v1107 = vmul.f32 %v971, %v624
      %v1108 = vmul.f32 %v972, %v612
      %v1109 = vmul.f32 %v973, %v616
      %v1110 = vmul.f32 %v974, %v620
      %v1111 = vmul.f32 %v975, %v624
      %1112 = vrot.lane.b32.xlu0 %v968, 127
      %v1113 = vpop.permute.xlu0 %1112
      %1114 = vrot.lane.b32.xlu0 %v972, 127
      %v1115 = vpop.permute.xlu0 %1114
      %1116 = vrot.lane.b32.xlu0 %v969, 127
      %v1117 = vpop.permute.xlu0 %1116
      %1118 = vrot.lane.b32.xlu0 %v973, 127
      %v1119 = vpop.permute.xlu0 %1118
      %1120 = vrot.lane.b32.xlu0 %v970, 127
      %v1121 = vpop.permute.xlu0 %1120
      %1122 = vrot.lane.b32.xlu0 %v974, 127
      %v1123 = vpop.permute.xlu0 %1122
      %1124 = vrot.lane.b32.xlu0 %v971, 127
      %v1125 = vpop.permute.xlu0 %1124
      %1126 = vrot.lane.b32.xlu0 %v975, 127
      %v1127 = vpop.permute.xlu0 %1126
      %v1128 = vsel %vm641, %v1121, %v1125
      %v1129 = vsel %vm641, %v1123, %v1127
      %v1130 = vsel %vm641, %v1117, %v1121
      %v1131 = vsel %vm641, %v1119, %v1123
      %v1132 = vsel %vm641, %v1113, %v1117
      %v1133 = vsel %vm641, %v1115, %v1119
      %v1134 = vsel %vm641, %v1125, %v1113
      %v1135 = vsel %vm641, %v1127, %v1115
      %v1136 = vmul.f32 %v1132, %v652
      %v1137 = vmul.f32 %v1130, %v656
      %v1138 = vmul.f32 %v1128, %v660
      %v1139 = vmul.f32 %v1134, %v664
      %v1140 = vmul.f32 %v1133, %v652
      %v1141 = vmul.f32 %v1131, %v656
      %v1142 = vmul.f32 %v1129, %v660
      %v1143 = vmul.f32 %v1135, %v664
      %1144 = vrot.lane.b32.xlu0 %v968, 113
      %v1145 = vpop.permute.xlu0 %1144
      %1146 = vrot.lane.b32.xlu0 %v972, 113
      %v1147 = vpop.permute.xlu0 %1146
      %1148 = vrot.lane.b32.xlu0 %v969, 113
      %v1149 = vpop.permute.xlu0 %1148
      %1150 = vrot.lane.b32.xlu0 %v973, 113
      %v1151 = vpop.permute.xlu0 %1150
      %1152 = vrot.lane.b32.xlu0 %v970, 113
      %v1153 = vpop.permute.xlu0 %1152
      %1154 = vrot.lane.b32.xlu0 %v974, 113
      %v1155 = vpop.permute.xlu0 %1154
      %1156 = vrot.lane.b32.xlu0 %v971, 113
      %v1157 = vpop.permute.xlu0 %1156
      %1158 = vrot.lane.b32.xlu0 %v975, 113
      %v1159 = vpop.permute.xlu0 %1158
      %v1160 = vsel %vm681, %v1153, %v1157
      %v1161 = vsel %vm681, %v1155, %v1159
      %v1162 = vsel %vm681, %v1149, %v1153
      %v1163 = vsel %vm681, %v1151, %v1155
      %v1164 = vsel %vm681, %v1145, %v1149
      %v1165 = vsel %vm681, %v1147, %v1151
      %v1166 = vsel %vm681, %v1157, %v1145
      %v1167 = vsel %vm681, %v1159, %v1147
      %v1168 = vmul.f32 %v1164, %v692
      %v1169 = vmul.f32 %v1162, %v696
      %v1170 = vmul.f32 %v1160, %v700
      %v1171 = vmul.f32 %v1166, %v704
      %v1172 = vmul.f32 %v1165, %v692
      %v1173 = vmul.f32 %v1163, %v696
      %v1174 = vmul.f32 %v1161, %v700
      %v1175 = vmul.f32 %v1167, %v704
      %1176 = vrot.lane.b32.xlu0 %v968, 112
      %v1177 = vpop.permute.xlu0 %1176
      %1178 = vrot.lane.b32.xlu0 %v972, 112
      %v1179 = vpop.permute.xlu0 %1178
      %1180 = vrot.lane.b32.xlu0 %v969, 112
      %v1181 = vpop.permute.xlu0 %1180
      %1182 = vrot.lane.b32.xlu0 %v973, 112
      %v1183 = vpop.permute.xlu0 %1182
      %1184 = vrot.lane.b32.xlu0 %v970, 112
      %v1185 = vpop.permute.xlu0 %1184
      %1186 = vrot.lane.b32.xlu0 %v974, 112
      %v1187 = vpop.permute.xlu0 %1186
      %1188 = vrot.lane.b32.xlu0 %v971, 112
      %v1189 = vpop.permute.xlu0 %1188
      %1190 = vrot.lane.b32.xlu0 %v975, 112
      %v1191 = vpop.permute.xlu0 %1190
      %v1192 = vsel %vm721, %v1185, %v1189
      %v1193 = vsel %vm721, %v1187, %v1191
      %v1194 = vsel %vm721, %v1181, %v1185
      %v1195 = vsel %vm721, %v1183, %v1187
      %v1196 = vsel %vm721, %v1177, %v1181
      %v1197 = vsel %vm721, %v1179, %v1183
      %v1198 = vsel %vm721, %v1189, %v1177
      %v1199 = vsel %vm721, %v1191, %v1179
      %v1200 = vmul.f32 %v1196, %v732
      %v1201 = vmul.f32 %v1194, %v736
      %v1202 = vmul.f32 %v1192, %v740
      %v1203 = vmul.f32 %v1198, %v744
      %v1204 = vmul.f32 %v1197, %v732
      %v1205 = vmul.f32 %v1195, %v736
      %v1206 = vmul.f32 %v1193, %v740
      %v1207 = vmul.f32 %v1199, %v744
      %1208 = vrot.lane.b32.xlu0 %v968, 111
      %v1209 = vpop.permute.xlu0 %1208
      %1210 = vrot.lane.b32.xlu0 %v972, 111
      %v1211 = vpop.permute.xlu0 %1210
      %1212 = vrot.lane.b32.xlu0 %v969, 111
      %v1213 = vpop.permute.xlu0 %1212
      %1214 = vrot.lane.b32.xlu0 %v973, 111
      %v1215 = vpop.permute.xlu0 %1214
      %1216 = vrot.lane.b32.xlu0 %v970, 111
      %v1217 = vpop.permute.xlu0 %1216
      %1218 = vrot.lane.b32.xlu0 %v974, 111
      %v1219 = vpop.permute.xlu0 %1218
      %1220 = vrot.lane.b32.xlu0 %v971, 111
      %v1221 = vpop.permute.xlu0 %1220
      %1222 = vrot.lane.b32.xlu0 %v975, 111
      %v1223 = vpop.permute.xlu0 %1222
      %v1224 = vsel %vm761, %v1217, %v1221
      %v1225 = vsel %vm761, %v1219, %v1223
      %v1226 = vsel %vm761, %v1213, %v1217
      %v1227 = vsel %vm761, %v1215, %v1219
      %v1228 = vsel %vm761, %v1209, %v1213
      %v1229 = vsel %vm761, %v1211, %v1215
      %v1230 = vsel %vm761, %v1221, %v1209
      %v1231 = vsel %vm761, %v1223, %v1211
      %v1232 = vmul.f32 %v1228, %v772
      %v1233 = vmul.f32 %v1226, %v776
      %v1234 = vmul.f32 %v1224, %v780
      %v1235 = vmul.f32 %v1230, %v784
      %v1236 = vmul.f32 %v1229, %v772
      %v1237 = vmul.f32 %v1227, %v776
      %v1238 = vmul.f32 %v1225, %v780
      %v1239 = vmul.f32 %v1231, %v784
      %v1240 = vld [vmem:[%s3] sm:$0xff]
      %v1241 = vld [vmem:[%s3 + $0x8] sm:$0xff]
      %v1242 = vld [vmem:[%s3 + $0x10] sm:$0xff]
      %v1243 = vld [vmem:[%s3 + $0x18] sm:$0xff]
      %v1244 = vld [vmem:[%s3 + $0x20] sm:$0xff]
      %v1245 = vld [vmem:[%s3 + $0x28] sm:$0xff]
      %v1246 = vld [vmem:[%s3 + $0x30] sm:$0xff]
      %v1247 = vld [vmem:[%s3 + $0x38] sm:$0xff]
      %v1248 = vld [vmem:[%s4] sm:$0xff]
      %v1249 = vld [vmem:[%s4 + $0x8] sm:$0xff]
      %v1250 = vld [vmem:[%s4 + $0x10] sm:$0xff]
      %v1251 = vld [vmem:[%s4 + $0x18] sm:$0xff]
      %1253 = vset.pattern.permute.xlu0 0
      %1254 = vperm.xlu0 %1253, %v1248
      %v1255 = vpop.permute.xlu0 %1254
      %1258 = vset.pattern.permute.xlu0 0
      %1259 = vperm.xlu0 %1258, %v1249
      %v1260 = vpop.permute.xlu0 %1259
      %1263 = vset.pattern.permute.xlu0 0
      %1264 = vperm.xlu0 %1263, %v1250
      %v1265 = vpop.permute.xlu0 %1264
      %1268 = vset.pattern.permute.xlu0 0
      %1269 = vperm.xlu0 %1268, %v1251
      %v1270 = vpop.permute.xlu0 %1269
      %vm1272 = vcmask 130048
      %v1274 = vsel %vm1272, %v1241, 0
      %v1277 = vsel %vm1272, %v1243, 0
      %v1280 = vsel %vm1272, %v1245, 0
      %v1283 = vsel %vm1272, %v1247, 0
      %1285 = vmatprep.subr.mxu0 %v1001
      %1286 = vmatpush1.msra.mxu0 %v1000
      %1287 = vmatprep.subr.mxu0 %v1005
      %1288 = vmatpush1.msra.mxu0 %v1004
      %1289 = vmatprep.subr.mxu0 %v1033
      %1290 = vmatpush1.msra.mxu0 %v1032
      %1291 = vmatprep.subr.mxu0 %v1037
      %1292 = vmatpush1.msra.mxu0 %v1036
      %1293 = vmatprep.subr.mxu0 %v1065
      %1294 = vmatpush1.msra.mxu0 %v1064
      %1295 = vmatprep.subr.mxu0 %v1069
      %1296 = vmatpush1.msra.mxu0 %v1068
      %1297 = vmatprep.subr.mxu0 %v1097
      %1298 = vmatpush1.msra.mxu0 %v1096
      %1299 = vmatprep.subr.mxu0 %v1101
      %1300 = vmatpush1.msra.mxu0 %v1100
      %1301 = vmatprep.subr.mxu0 %v1105
      %1302 = vmatpush1.msra.mxu0 %v1104
      %1303 = vmatprep.subr.mxu0 %v1109
      %1304 = vmatpush1.msra.mxu0 %v1108
      %1305 = vmatprep.subr.mxu0 %v1137
      %1306 = vmatpush1.msra.mxu0 %v1136
      %1307 = vmatprep.subr.mxu0 %v1141
      %1308 = vmatpush1.msra.mxu0 %v1140
      %1309 = vmatprep.subr.mxu0 %v1169
      %1310 = vmatpush1.msra.mxu0 %v1168
      %1311 = vmatprep.subr.mxu0 %v1173
      %1312 = vmatpush1.msra.mxu0 %v1172
      %1313 = vmatprep.subr.mxu0 %v1201
      %1314 = vmatpush1.msra.mxu0 %v1200
      %1315 = vmatprep.subr.mxu0 %v1205
      %1316 = vmatpush1.msra.mxu0 %v1204
      %1317 = vmatprep.subr.mxu0 %v1233
      %1318 = vmatpush1.msra.mxu0 %v1232
      %1319 = vmatprep.subr.mxu0 %v1237
      %1320 = vmatpush1.msra.mxu0 %v1236
      %1321 = vmatprep.subr.mxu0 0.0
      %1322 = vmatpush1.msra.mxu0 0.0
      %1323 = vmatprep.subr.mxu0 0.0
      %1324 = vmatpush1.msra.mxu0 0.0
      %1325 = vmatprep.subr.mxu0 0.0
      %1326 = vmatpush1.msra.mxu0 0.0
      %1327 = vmatprep.subr.mxu0 0.0
      %1328 = vmatpush1.msra.mxu0 0.0
      %1329 = vmatprep.subr.mxu0 0.0
      %1330 = vmatpush1.msra.mxu0 0.0
      %1331 = vmatprep.subr.mxu0 0.0
      %1332 = vmatpush1.msra.mxu0 0.0
      %1333 = vmatprep.subr.mxu0 0.0
      %1334 = vmatpush1.msra.mxu0 0.0
      %1335 = vmatprep.subr.mxu0 0.0
      %1336 = vmatpush1.msra.mxu0 0.0
      %1337 = vmatprep.subr.mxu0 0.0
      %1338 = vmatpush1.msra.mxu0 0.0
      %1339 = vmatprep.subr.mxu0 0.0
      %1340 = vmatpush1.msra.mxu0 0.0
      %1341 = vmatprep.subr.mxu0 0.0
      %1342 = vmatpush1.msra.mxu0 0.0
      %1343 = vmatprep.subr.mxu0 0.0
      %1344 = vmatpush1.msra.mxu0 0.0
      %1345 = vmatprep.subr.mxu0 0.0
      %1346 = vmatpush1.msra.mxu0 0.0
      %1347 = vmatprep.subr.mxu0 0.0
      %1348 = vmatpush1.msra.mxu0 0.0
      %1349 = vmatprep.mubr.f32.mxu0 %v1274
      %1350 = vmatmul.mubr.f32.gmra.mrb[0].mxu0 %v1240
      %v1351 = vpop.f32.mrb[0].mxu0
      %v1352 = vadd.f32 %v1255, %v1351
      %v1353 = vpop.f32.mrb[0].mxu0
      %v1354 = vadd.f32 %v1255, %v1353
      %1355 = vmatprep.mubr.f32.mxu0 %v1277
      %1356 = vmatmul.mubr.f32.gmra.mrb[0].mxu0 %v1242
      %v1357 = vpop.f32.mrb[0].mxu0
      %v1358 = vadd.f32 %v1260, %v1357
      %v1359 = vpop.f32.mrb[0].mxu0
      %v1360 = vadd.f32 %v1260, %v1359
      %1361 = vmatprep.mubr.f32.mxu0 %v1280
      %1362 = vmatmul.mubr.f32.gmra.mrb[0].mxu0 %v1244
      %v1363 = vpop.f32.mrb[0].mxu0
      %v1364 = vadd.f32 %v1265, %v1363
      %v1365 = vpop.f32.mrb[0].mxu0
      %v1366 = vadd.f32 %v1265, %v1365
      %1367 = vmatprep.mubr.f32.mxu0 %v1283
      %1368 = vmatmul.mubr.f32.gmra.mrb[0].mxu0 %v1246
      %v1369 = vpop.f32.mrb[0].mxu0
      %v1370 = vadd.f32 %v1270, %v1369
      %v1371 = vpop.f32.mrb[0].mxu0
      %v1372 = vadd.f32 %v1270, %v1371
      %1373 = vdwg.mxu0
      %1374 = vmatprep.subr.mxu0 %v1003
      %1375 = vmatpush1.msra.mxu0 %v1002
      %1376 = vmatprep.subr.mxu0 %v1007
      %1377 = vmatpush1.msra.mxu0 %v1006
      %1378 = vmatprep.subr.mxu0 %v1035
      %1379 = vmatpush1.msra.mxu0 %v1034
      %1380 = vmatprep.subr.mxu0 %v1039
      %1381 = vmatpush1.msra.mxu0 %v1038
      %1382 = vmatprep.subr.mxu0 %v1067
      %1383 = vmatpush1.msra.mxu0 %v1066
      %1384 = vmatprep.subr.mxu0 %v1071
      %1385 = vmatpush1.msra.mxu0 %v1070
      %1386 = vmatprep.subr.mxu0 %v1099
      %1387 = vmatpush1.msra.mxu0 %v1098
      %1388 = vmatprep.subr.mxu0 %v1103
      %1389 = vmatpush1.msra.mxu0 %v1102
      %1390 = vmatprep.subr.mxu0 %v1107
      %1391 = vmatpush1.msra.mxu0 %v1106
      %1392 = vmatprep.subr.mxu0 %v1111
      %1393 = vmatpush1.msra.mxu0 %v1110
      %1394 = vmatprep.subr.mxu0 %v1139
      %1395 = vmatpush1.msra.mxu0 %v1138
      %1396 = vmatprep.subr.mxu0 %v1143
      %1397 = vmatpush1.msra.mxu0 %v1142
      %1398 = vmatprep.subr.mxu0 %v1171
      %1399 = vmatpush1.msra.mxu0 %v1170
      %1400 = vmatprep.subr.mxu0 %v1175
      %1401 = vmatpush1.msra.mxu0 %v1174
      %1402 = vmatprep.subr.mxu0 %v1203
      %1403 = vmatpush1.msra.mxu0 %v1202
      %1404 = vmatprep.subr.mxu0 %v1207
      %1405 = vmatpush1.msra.mxu0 %v1206
      %1406 = vmatprep.subr.mxu0 %v1235
      %1407 = vmatpush1.msra.mxu0 %v1234
      %1408 = vmatprep.subr.mxu0 %v1239
      %1409 = vmatpush1.msra.mxu0 %v1238
      %1410 = vmatprep.subr.mxu0 0.0
      %1411 = vmatpush1.msra.mxu0 0.0
      %1412 = vmatprep.subr.mxu0 0.0
      %1413 = vmatpush1.msra.mxu0 0.0
      %1414 = vmatprep.subr.mxu0 0.0
      %1415 = vmatpush1.msra.mxu0 0.0
      %1416 = vmatprep.subr.mxu0 0.0
      %1417 = vmatpush1.msra.mxu0 0.0
      %1418 = vmatprep.subr.mxu0 0.0
      %1419 = vmatpush1.msra.mxu0 0.0
      %1420 = vmatprep.subr.mxu0 0.0
      %1421 = vmatpush1.msra.mxu0 0.0
      %1422 = vmatprep.subr.mxu0 0.0
      %1423 = vmatpush1.msra.mxu0 0.0
      %1424 = vmatprep.subr.mxu0 0.0
      %1425 = vmatpush1.msra.mxu0 0.0
      %1426 = vmatprep.subr.mxu0 0.0
      %1427 = vmatpush1.msra.mxu0 0.0
      %1428 = vmatprep.subr.mxu0 0.0
      %1429 = vmatpush1.msra.mxu0 0.0
      %1430 = vmatprep.subr.mxu0 0.0
      %1431 = vmatpush1.msra.mxu0 0.0
      %1432 = vmatprep.subr.mxu0 0.0
      %1433 = vmatpush1.msra.mxu0 0.0
      %1434 = vmatprep.subr.mxu0 0.0
      %1435 = vmatpush1.msra.mxu0 0.0
      %1436 = vmatprep.subr.mxu0 0.0
      %1437 = vmatpush1.msra.mxu0 0.0
      %1438 = vmatprep.mubr.f32.mxu0 %v1274
      %1439 = vmatmul.mubr.f32.gmra.mrb[0].mxu0 %v1240
      %v1440 = vpop.f32.mrb[0].mxu0
      %v1441 = vadd.f32 %v1255, %v1440
      %v1442 = vpop.f32.mrb[0].mxu0
      %v1443 = vadd.f32 %v1255, %v1442
      %1444 = vmatprep.mubr.f32.mxu0 %v1277
      %1445 = vmatmul.mubr.f32.gmra.mrb[0].mxu0 %v1242
      %v1446 = vpop.f32.mrb[0].mxu0
      %v1447 = vadd.f32 %v1260, %v1446
      %v1448 = vpop.f32.mrb[0].mxu0
      %v1449 = vadd.f32 %v1260, %v1448
      %1450 = vmatprep.mubr.f32.mxu0 %v1280
      %1451 = vmatmul.mubr.f32.gmra.mrb[0].mxu0 %v1244
      %v1452 = vpop.f32.mrb[0].mxu0
      %v1453 = vadd.f32 %v1265, %v1452
      %v1454 = vpop.f32.mrb[0].mxu0
      %v1455 = vadd.f32 %v1265, %v1454
      %1456 = vmatprep.mubr.f32.mxu0 %v1283
      %1457 = vmatmul.mubr.f32.gmra.mrb[0].mxu0 %v1246
      %v1458 = vpop.f32.mrb[0].mxu0
      %v1459 = vadd.f32 %v1270, %v1458
      %v1460 = vpop.f32.mrb[0].mxu0
      %v1461 = vadd.f32 %v1270, %v1460
      %1462 = vdwg.mxu0
      %v1463 = vmax.f32 %v1352, 0.0
      %v1464 = vmax.f32 %v1354, 0.0
      %v1465 = vmax.f32 %v1441, 0.0
      %v1466 = vmax.f32 %v1443, 0.0
      %v1467 = vmax.f32 %v1358, 0.0
      %v1468 = vmax.f32 %v1360, 0.0
      %v1469 = vmax.f32 %v1447, 0.0
      %v1470 = vmax.f32 %v1449, 0.0
      %v1471 = vmax.f32 %v1364, 0.0
      %v1472 = vmax.f32 %v1366, 0.0
      %v1473 = vmax.f32 %v1453, 0.0
      %v1474 = vmax.f32 %v1455, 0.0
      %v1475 = vmax.f32 %v1370, 0.0
      %v1476 = vmax.f32 %v1372, 0.0
      %v1477 = vmax.f32 %v1459, 0.0
      %v1478 = vmax.f32 %v1461, 0.0
      %1479 = vrot.lane.b32.xlu0 %v1463, 127
      %v1480 = vpop.permute.xlu0 %1479
      %1481 = vrot.lane.b32.xlu0 %v1467, 127
      %v1482 = vpop.permute.xlu0 %1481
      %1483 = vrot.lane.b32.xlu0 %v1471, 127
      %v1484 = vpop.permute.xlu0 %1483
      %1485 = vrot.lane.b32.xlu0 %v1475, 127
      %v1486 = vpop.permute.xlu0 %1485
      %1487 = vrot.lane.b32.xlu0 %v1464, 127
      %v1488 = vpop.permute.xlu0 %1487
      %1489 = vrot.lane.b32.xlu0 %v1468, 127
      %v1490 = vpop.permute.xlu0 %1489
      %1491 = vrot.lane.b32.xlu0 %v1472, 127
      %v1492 = vpop.permute.xlu0 %1491
      %1493 = vrot.lane.b32.xlu0 %v1476, 127
      %v1494 = vpop.permute.xlu0 %1493
      %1495 = vrot.lane.b32.xlu0 %v1465, 127
      %v1496 = vpop.permute.xlu0 %1495
      %1497 = vrot.lane.b32.xlu0 %v1469, 127
      %v1498 = vpop.permute.xlu0 %1497
      %1499 = vrot.lane.b32.xlu0 %v1473, 127
      %v1500 = vpop.permute.xlu0 %1499
      %1501 = vrot.lane.b32.xlu0 %v1477, 127
      %v1502 = vpop.permute.xlu0 %1501
      %1503 = vrot.lane.b32.xlu0 %v1466, 127
      %v1504 = vpop.permute.xlu0 %1503
      %1505 = vrot.lane.b32.xlu0 %v1470, 127
      %v1506 = vpop.permute.xlu0 %1505
      %1507 = vrot.lane.b32.xlu0 %v1474, 127
      %v1508 = vpop.permute.xlu0 %1507
      %1509 = vrot.lane.b32.xlu0 %v1478, 127
      %v1510 = vpop.permute.xlu0 %1509
      %v1511 = vsel %vm641, %v1496, %v1504
      %v1512 = vsel %vm641, %v1498, %v1506
      %v1513 = vsel %vm641, %v1500, %v1508
      %v1514 = vsel %vm641, %v1502, %v1510
      %v1515 = vsel %vm641, %v1488, %v1496
      %v1516 = vsel %vm641, %v1490, %v1498
      %v1517 = vsel %vm641, %v1492, %v1500
      %v1518 = vsel %vm641, %v1494, %v1502
      %v1519 = vsel %vm641, %v1480, %v1488
      %v1520 = vsel %vm641, %v1482, %v1490
      %v1521 = vsel %vm641, %v1484, %v1492
      %v1522 = vsel %vm641, %v1486, %v1494
      %v1523 = vsel %vm641, %v1504, %v1480
      %v1524 = vsel %vm641, %v1506, %v1482
      %v1525 = vsel %vm641, %v1508, %v1484
      %v1526 = vsel %vm641, %v1510, %v1486
      %v1527 = vmax.f32 %v1463, %v1519
      %v1528 = vmax.f32 %v1464, %v1515
      %v1529 = vmax.f32 %v1465, %v1511
      %v1530 = vmax.f32 %v1466, %v1523
      %v1531 = vmax.f32 %v1467, %v1520
      %v1532 = vmax.f32 %v1468, %v1516
      %v1533 = vmax.f32 %v1469, %v1512
      %v1534 = vmax.f32 %v1470, %v1524
      %v1535 = vmax.f32 %v1471, %v1521
      %v1536 = vmax.f32 %v1472, %v1517
      %v1537 = vmax.f32 %v1473, %v1513
      %v1538 = vmax.f32 %v1474, %v1525
      %v1539 = vmax.f32 %v1475, %v1522
      %v1540 = vmax.f32 %v1476, %v1518
      %v1541 = vmax.f32 %v1477, %v1514
      %v1542 = vmax.f32 %v1478, %v1526
      %1543 = vrot.lane.b32.xlu0 %v1463, 112
      %v1544 = vpop.permute.xlu0 %1543
      %1545 = vrot.lane.b32.xlu0 %v1467, 112
      %v1546 = vpop.permute.xlu0 %1545
      %1547 = vrot.lane.b32.xlu0 %v1471, 112
      %v1548 = vpop.permute.xlu0 %1547
      %1549 = vrot.lane.b32.xlu0 %v1475, 112
      %v1550 = vpop.permute.xlu0 %1549
      %1551 = vrot.lane.b32.xlu0 %v1464, 112
      %v1552 = vpop.permute.xlu0 %1551
      %1553 = vrot.lane.b32.xlu0 %v1468, 112
      %v1554 = vpop.permute.xlu0 %1553
      %1555 = vrot.lane.b32.xlu0 %v1472, 112
      %v1556 = vpop.permute.xlu0 %1555
      %1557 = vrot.lane.b32.xlu0 %v1476, 112
      %v1558 = vpop.permute.xlu0 %1557
      %1559 = vrot.lane.b32.xlu0 %v1465, 112
      %v1560 = vpop.permute.xlu0 %1559
      %1561 = vrot.lane.b32.xlu0 %v1469, 112
      %v1562 = vpop.permute.xlu0 %1561
      %1563 = vrot.lane.b32.xlu0 %v1473, 112
      %v1564 = vpop.permute.xlu0 %1563
      %1565 = vrot.lane.b32.xlu0 %v1477, 112
      %v1566 = vpop.permute.xlu0 %1565
      %1567 = vrot.lane.b32.xlu0 %v1466, 112
      %v1568 = vpop.permute.xlu0 %1567
      %1569 = vrot.lane.b32.xlu0 %v1470, 112
      %v1570 = vpop.permute.xlu0 %1569
      %1571 = vrot.lane.b32.xlu0 %v1474, 112
      %v1572 = vpop.permute.xlu0 %1571
      %1573 = vrot.lane.b32.xlu0 %v1478, 112
      %v1574 = vpop.permute.xlu0 %1573
      %v1575 = vsel %vm721, %v1560, %v1568
      %v1576 = vsel %vm721, %v1562, %v1570
      %v1577 = vsel %vm721, %v1564, %v1572
      %v1578 = vsel %vm721, %v1566, %v1574
      %v1579 = vsel %vm721, %v1552, %v1560
      %v1580 = vsel %vm721, %v1554, %v1562
      %v1581 = vsel %vm721, %v1556, %v1564
      %v1582 = vsel %vm721, %v1558, %v1566
      %v1583 = vsel %vm721, %v1544, %v1552
      %v1584 = vsel %vm721, %v1546, %v1554
      %v1585 = vsel %vm721, %v1548, %v1556
      %v1586 = vsel %vm721, %v1550, %v1558
      %v1587 = vsel %vm721, %v1568, %v1544
      %v1588 = vsel %vm721, %v1570, %v1546
      %v1589 = vsel %vm721, %v1572, %v1548
      %v1590 = vsel %vm721, %v1574, %v1550
      %v1591 = vmax.f32 %v1527, %v1583
      %v1592 = vmax.f32 %v1528, %v1579
      %v1593 = vmax.f32 %v1529, %v1575
      %v1594 = vmax.f32 %v1530, %v1587
      %v1595 = vmax.f32 %v1531, %v1584
      %v1596 = vmax.f32 %v1532, %v1580
      %v1597 = vmax.f32 %v1533, %v1576
      %v1598 = vmax.f32 %v1534, %v1588
      %v1599 = vmax.f32 %v1535, %v1585
      %v1600 = vmax.f32 %v1536, %v1581
      %v1601 = vmax.f32 %v1537, %v1577
      %v1602 = vmax.f32 %v1538, %v1589
      %v1603 = vmax.f32 %v1539, %v1586
      %v1604 = vmax.f32 %v1540, %v1582
      %v1605 = vmax.f32 %v1541, %v1578
      %v1606 = vmax.f32 %v1542, %v1590
      %1607 = vrot.lane.b32.xlu0 %v1463, 111
      %v1608 = vpop.permute.xlu0 %1607
      %1609 = vrot.lane.b32.xlu0 %v1467, 111
      %v1610 = vpop.permute.xlu0 %1609
      %1611 = vrot.lane.b32.xlu0 %v1471, 111
      %v1612 = vpop.permute.xlu0 %1611
      %1613 = vrot.lane.b32.xlu0 %v1475, 111
      %v1614 = vpop.permute.xlu0 %1613
      %1615 = vrot.lane.b32.xlu0 %v1464, 111
      %v1616 = vpop.permute.xlu0 %1615
      %1617 = vrot.lane.b32.xlu0 %v1468, 111
      %v1618 = vpop.permute.xlu0 %1617
      %1619 = vrot.lane.b32.xlu0 %v1472, 111
      %v1620 = vpop.permute.xlu0 %1619
      %1621 = vrot.lane.b32.xlu0 %v1476, 111
      %v1622 = vpop.permute.xlu0 %1621
      %1623 = vrot.lane.b32.xlu0 %v1465, 111
      %v1624 = vpop.permute.xlu0 %1623
      %1625 = vrot.lane.b32.xlu0 %v1469, 111
      %v1626 = vpop.permute.xlu0 %1625
      %1627 = vrot.lane.b32.xlu0 %v1473, 111
      %v1628 = vpop.permute.xlu0 %1627
      %1629 = vrot.lane.b32.xlu0 %v1477, 111
      %v1630 = vpop.permute.xlu0 %1629
      %1631 = vrot.lane.b32.xlu0 %v1466, 111
      %v1632 = vpop.permute.xlu0 %1631
      %1633 = vrot.lane.b32.xlu0 %v1470, 111
      %v1634 = vpop.permute.xlu0 %1633
      %1635 = vrot.lane.b32.xlu0 %v1474, 111
      %v1636 = vpop.permute.xlu0 %1635
      %1637 = vrot.lane.b32.xlu0 %v1478, 111
      %v1638 = vpop.permute.xlu0 %1637
      %v1639 = vsel %vm761, %v1624, %v1632
      %v1640 = vsel %vm761, %v1626, %v1634
      %v1641 = vsel %vm761, %v1628, %v1636
      %v1642 = vsel %vm761, %v1630, %v1638
      %v1643 = vsel %vm761, %v1616, %v1624
      %v1644 = vsel %vm761, %v1618, %v1626
      %v1645 = vsel %vm761, %v1620, %v1628
      %v1646 = vsel %vm761, %v1622, %v1630
      %v1647 = vsel %vm761, %v1608, %v1616
      %v1648 = vsel %vm761, %v1610, %v1618
      %v1649 = vsel %vm761, %v1612, %v1620
      %v1650 = vsel %vm761, %v1614, %v1622
      %v1651 = vsel %vm761, %v1632, %v1608
      %v1652 = vsel %vm761, %v1634, %v1610
      %v1653 = vsel %vm761, %v1636, %v1612
      %v1654 = vsel %vm761, %v1638, %v1614
      %v1655 = vmax.f32 %v1591, %v1647
      %v1656 = vmax.f32 %v1592, %v1643
      %v1657 = vmax.f32 %v1593, %v1639
      %v1658 = vmax.f32 %v1594, %v1651
      %v1659 = vmax.f32 %v1595, %v1648
      %v1660 = vmax.f32 %v1596, %v1644
      %v1661 = vmax.f32 %v1597, %v1640
      %v1662 = vmax.f32 %v1598, %v1652
      %v1663 = vmax.f32 %v1599, %v1649
      %v1664 = vmax.f32 %v1600, %v1645
      %v1665 = vmax.f32 %v1601, %v1641
      %v1666 = vmax.f32 %v1602, %v1653
      %v1667 = vmax.f32 %v1603, %v1650
      %v1668 = vmax.f32 %v1604, %v1646
      %v1669 = vmax.f32 %v1605, %v1642
      %v1670 = vmax.f32 %v1606, %v1654
      %1671 = vrot.lane.b32.xlu0 %v1655, 34
      %v1672 = vpop.permute.xlu0 %1671
      %1673 = vrot.lane.b32.xlu0 %v1659, 34
      %v1674 = vpop.permute.xlu0 %1673
      %1675 = vrot.lane.b32.xlu0 %v1663, 34
      %v1676 = vpop.permute.xlu0 %1675
      %1677 = vrot.lane.b32.xlu0 %v1667, 34
      %v1678 = vpop.permute.xlu0 %1677
      %1679 = vrot.lane.b32.xlu0 %v1656, 34
      %v1680 = vpop.permute.xlu0 %1679
      %1681 = vrot.lane.b32.xlu0 %v1660, 34
      %v1682 = vpop.permute.xlu0 %1681
      %1683 = vrot.lane.b32.xlu0 %v1664, 34
      %v1684 = vpop.permute.xlu0 %1683
      %1685 = vrot.lane.b32.xlu0 %v1668, 34
      %v1686 = vpop.permute.xlu0 %1685
      %1687 = vrot.lane.b32.xlu0 %v1657, 34
      %v1688 = vpop.permute.xlu0 %1687
      %1689 = vrot.lane.b32.xlu0 %v1661, 34
      %v1690 = vpop.permute.xlu0 %1689
      %1691 = vrot.lane.b32.xlu0 %v1665, 34
      %v1692 = vpop.permute.xlu0 %1691
      %1693 = vrot.lane.b32.xlu0 %v1669, 34
      %v1694 = vpop.permute.xlu0 %1693
      %1695 = vrot.lane.b32.xlu0 %v1658, 34
      %v1696 = vpop.permute.xlu0 %1695
      %1697 = vrot.lane.b32.xlu0 %v1662, 34
      %v1698 = vpop.permute.xlu0 %1697
      %1699 = vrot.lane.b32.xlu0 %v1666, 34
      %v1700 = vpop.permute.xlu0 %1699
      %1701 = vrot.lane.b32.xlu0 %v1670, 34
      %v1702 = vpop.permute.xlu0 %1701
      %vm1703 = vcmp.lt.s32.totalorder %v454, 34
      %v1704 = vsel %vm1703, %v1688, %v1696
      %v1705 = vsel %vm1703, %v1690, %v1698
      %v1706 = vsel %vm1703, %v1692, %v1700
      %v1707 = vsel %vm1703, %v1694, %v1702
      %v1708 = vsel %vm1703, %v1680, %v1688
      %v1709 = vsel %vm1703, %v1682, %v1690
      %v1710 = vsel %vm1703, %v1684, %v1692
      %v1711 = vsel %vm1703, %v1686, %v1694
      %v1712 = vsel %vm1703, %v1672, %v1680
      %v1713 = vsel %vm1703, %v1674, %v1682
      %v1714 = vsel %vm1703, %v1676, %v1684
      %v1715 = vsel %vm1703, %v1678, %v1686
      %v1716 = vsel %vm1703, %v1696, %v1672
      %v1717 = vsel %vm1703, %v1698, %v1674
      %v1718 = vsel %vm1703, %v1700, %v1676
      %v1719 = vsel %vm1703, %v1702, %v1678
      %v1720 = vld [vmem:[%s10] sm:$0xf]
      %v1722 = vlaneseq
      %v1723 = vshrl.u32 %v1722, 7
      %v1724 = vsub.s32 0, %v1723
      %v1725 = vrot.slane %v1720, %v1724
      %v1726 = vlaneseq
      %v1727 = vshrl.u32 %v1726, 7
      %v1728 = vsub.s32 1, %v1727
      %v1729 = vrot.slane %v1720, %v1728
      %v1730 = vlaneseq
      %v1731 = vshrl.u32 %v1730, 7
      %v1732 = vsub.s32 2, %v1731
      %v1733 = vrot.slane %v1720, %v1732
      %v1734 = vlaneseq
      %v1735 = vshrl.u32 %v1734, 7
      %v1736 = vsub.s32 3, %v1735
      %v1737 = vrot.slane %v1720, %v1736
      %v1742 = vmul.f32 %v1716, %v1725
      %v1743 = vmul.f32 %v1712, %v1729
      %v1744 = vmul.f32 %v1708, %v1733
      %v1745 = vmul.f32 %v1704, %v1737
      %v1746 = vmul.f32 %v1717, %v1725
      %v1747 = vmul.f32 %v1713, %v1729
      %v1748 = vmul.f32 %v1709, %v1733
      %v1749 = vmul.f32 %v1705, %v1737
      %v1750 = vmul.f32 %v1718, %v1725
      %v1751 = vmul.f32 %v1714, %v1729
      %v1752 = vmul.f32 %v1710, %v1733
      %v1753 = vmul.f32 %v1706, %v1737
      %v1754 = vmul.f32 %v1719, %v1725
      %v1755 = vmul.f32 %v1715, %v1729
      %v1756 = vmul.f32 %v1711, %v1733
      %v1757 = vmul.f32 %v1707, %v1737
      %1758 = vrot.lane.b32.xlu0 %v1655, 32
      %v1759 = vpop.permute.xlu0 %1758
      %1760 = vrot.lane.b32.xlu0 %v1659, 32
      %v1761 = vpop.permute.xlu0 %1760
      %1762 = vrot.lane.b32.xlu0 %v1663, 32
      %v1763 = vpop.permute.xlu0 %1762
      %1764 = vrot.lane.b32.xlu0 %v1667, 32
      %v1765 = vpop.permute.xlu0 %1764
      %1766 = vrot.lane.b32.xlu0 %v1656, 32
      %v1767 = vpop.permute.xlu0 %1766
      %1768 = vrot.lane.b32.xlu0 %v1660, 32
      %v1769 = vpop.permute.xlu0 %1768
      %1770 = vrot.lane.b32.xlu0 %v1664, 32
      %v1771 = vpop.permute.xlu0 %1770
      %1772 = vrot.lane.b32.xlu0 %v1668, 32
      %v1773 = vpop.permute.xlu0 %1772
      %1774 = vrot.lane.b32.xlu0 %v1657, 32
      %v1775 = vpop.permute.xlu0 %1774
      %1776 = vrot.lane.b32.xlu0 %v1661, 32
      %v1777 = vpop.permute.xlu0 %1776
      %1778 = vrot.lane.b32.xlu0 %v1665, 32
      %v1779 = vpop.permute.xlu0 %1778
      %1780 = vrot.lane.b32.xlu0 %v1669, 32
      %v1781 = vpop.permute.xlu0 %1780
      %1782 = vrot.lane.b32.xlu0 %v1658, 32
      %v1783 = vpop.permute.xlu0 %1782
      %1784 = vrot.lane.b32.xlu0 %v1662, 32
      %v1785 = vpop.permute.xlu0 %1784
      %1786 = vrot.lane.b32.xlu0 %v1666, 32
      %v1787 = vpop.permute.xlu0 %1786
      %1788 = vrot.lane.b32.xlu0 %v1670, 32
      %v1789 = vpop.permute.xlu0 %1788
      %vm1790 = vcmp.lt.s32.totalorder %v454, 32
      %v1791 = vsel %vm1790, %v1775, %v1783
      %v1792 = vsel %vm1790, %v1777, %v1785
      %v1793 = vsel %vm1790, %v1779, %v1787
      %v1794 = vsel %vm1790, %v1781, %v1789
      %v1795 = vsel %vm1790, %v1767, %v1775
      %v1796 = vsel %vm1790, %v1769, %v1777
      %v1797 = vsel %vm1790, %v1771, %v1779
      %v1798 = vsel %vm1790, %v1773, %v1781
      %v1799 = vsel %vm1790, %v1759, %v1767
      %v1800 = vsel %vm1790, %v1761, %v1769
      %v1801 = vsel %vm1790, %v1763, %v1771
      %v1802 = vsel %vm1790, %v1765, %v1773
      %v1803 = vsel %vm1790, %v1783, %v1759
      %v1804 = vsel %vm1790, %v1785, %v1761
      %v1805 = vsel %vm1790, %v1787, %v1763
      %v1806 = vsel %vm1790, %v1789, %v1765
      %s1807 = scalar_lea.vmem %s10, 4
      %v1808 = vld [vmem:[%s1807] sm:$0xf]
      %v1810 = vlaneseq
      %v1811 = vshrl.u32 %v1810, 7
      %v1812 = vsub.s32 0, %v1811
      %v1813 = vrot.slane %v1808, %v1812
      %v1814 = vlaneseq
      %v1815 = vshrl.u32 %v1814, 7
      %v1816 = vsub.s32 1, %v1815
      %v1817 = vrot.slane %v1808, %v1816
      %v1818 = vlaneseq
      %v1819 = vshrl.u32 %v1818, 7
      %v1820 = vsub.s32 2, %v1819
      %v1821 = vrot.slane %v1808, %v1820
      %v1822 = vlaneseq
      %v1823 = vshrl.u32 %v1822, 7
      %v1824 = vsub.s32 3, %v1823
      %v1825 = vrot.slane %v1808, %v1824
      %v1830 = vmul.f32 %v1803, %v1813
      %v1831 = vmul.f32 %v1799, %v1817
      %v1832 = vmul.f32 %v1795, %v1821
      %v1833 = vmul.f32 %v1791, %v1825
      %v1834 = vmul.f32 %v1804, %v1813
      %v1835 = vmul.f32 %v1800, %v1817
      %v1836 = vmul.f32 %v1796, %v1821
      %v1837 = vmul.f32 %v1792, %v1825
      %v1838 = vmul.f32 %v1805, %v1813
      %v1839 = vmul.f32 %v1801, %v1817
      %v1840 = vmul.f32 %v1797, %v1821
      %v1841 = vmul.f32 %v1793, %v1825
      %v1842 = vmul.f32 %v1806, %v1813
      %v1843 = vmul.f32 %v1802, %v1817
      %v1844 = vmul.f32 %v1798, %v1821
      %v1845 = vmul.f32 %v1794, %v1825
      %1846 = vrot.lane.b32.xlu0 %v1655, 30
      %v1847 = vpop.permute.xlu0 %1846
      %1848 = vrot.lane.b32.xlu0 %v1659, 30
      %v1849 = vpop.permute.xlu0 %1848
      %1850 = vrot.lane.b32.xlu0 %v1663, 30
      %v1851 = vpop.permute.xlu0 %1850
      %1852 = vrot.lane.b32.xlu0 %v1667, 30
      %v1853 = vpop.permute.xlu0 %1852
      %1854 = vrot.lane.b32.xlu0 %v1656, 30
      %v1855 = vpop.permute.xlu0 %1854
      %1856 = vrot.lane.b32.xlu0 %v1660, 30
      %v1857 = vpop.permute.xlu0 %1856
      %1858 = vrot.lane.b32.xlu0 %v1664, 30
      %v1859 = vpop.permute.xlu0 %1858
      %1860 = vrot.lane.b32.xlu0 %v1668, 30
      %v1861 = vpop.permute.xlu0 %1860
      %1862 = vrot.lane.b32.xlu0 %v1657, 30
      %v1863 = vpop.permute.xlu0 %1862
      %1864 = vrot.lane.b32.xlu0 %v1661, 30
      %v1865 = vpop.permute.xlu0 %1864
      %1866 = vrot.lane.b32.xlu0 %v1665, 30
      %v1867 = vpop.permute.xlu0 %1866
      %1868 = vrot.lane.b32.xlu0 %v1669, 30
      %v1869 = vpop.permute.xlu0 %1868
      %1870 = vrot.lane.b32.xlu0 %v1658, 30
      %v1871 = vpop.permute.xlu0 %1870
      %1872 = vrot.lane.b32.xlu0 %v1662, 30
      %v1873 = vpop.permute.xlu0 %1872
      %1874 = vrot.lane.b32.xlu0 %v1666, 30
      %v1875 = vpop.permute.xlu0 %1874
      %1876 = vrot.lane.b32.xlu0 %v1670, 30
      %v1877 = vpop.permute.xlu0 %1876
      %vm1878 = vcmp.lt.s32.totalorder %v454, 30
      %v1879 = vsel %vm1878, %v1863, %v1871
      %v1880 = vsel %vm1878, %v1865, %v1873
      %v1881 = vsel %vm1878, %v1867, %v1875
      %v1882 = vsel %vm1878, %v1869, %v1877
      %v1883 = vsel %vm1878, %v1855, %v1863
      %v1884 = vsel %vm1878, %v1857, %v1865
      %v1885 = vsel %vm1878, %v1859, %v1867
      %v1886 = vsel %vm1878, %v1861, %v1869
      %v1887 = vsel %vm1878, %v1847, %v1855
      %v1888 = vsel %vm1878, %v1849, %v1857
      %v1889 = vsel %vm1878, %v1851, %v1859
      %v1890 = vsel %vm1878, %v1853, %v1861
      %v1891 = vsel %vm1878, %v1871, %v1847
      %v1892 = vsel %vm1878, %v1873, %v1849
      %v1893 = vsel %vm1878, %v1875, %v1851
      %v1894 = vsel %vm1878, %v1877, %v1853
      %s1895 = scalar_lea.vmem %s10, 8
      %v1896 = vld [vmem:[%s1895] sm:$0xf]
      %v1898 = vlaneseq
      %v1899 = vshrl.u32 %v1898, 7
      %v1900 = vsub.s32 0, %v1899
      %v1901 = vrot.slane %v1896, %v1900
      %v1902 = vlaneseq
      %v1903 = vshrl.u32 %v1902, 7
      %v1904 = vsub.s32 1, %v1903
      %v1905 = vrot.slane %v1896, %v1904
      %v1906 = vlaneseq
      %v1907 = vshrl.u32 %v1906, 7
      %v1908 = vsub.s32 2, %v1907
      %v1909 = vrot.slane %v1896, %v1908
      %v1910 = vlaneseq
      %v1911 = vshrl.u32 %v1910, 7
      %v1912 = vsub.s32 3, %v1911
      %v1913 = vrot.slane %v1896, %v1912
      %v1918 = vmul.f32 %v1891, %v1901
      %v1919 = vmul.f32 %v1887, %v1905
      %v1920 = vmul.f32 %v1883, %v1909
      %v1921 = vmul.f32 %v1879, %v1913
      %v1922 = vmul.f32 %v1892, %v1901
      %v1923 = vmul.f32 %v1888, %v1905
      %v1924 = vmul.f32 %v1884, %v1909
      %v1925 = vmul.f32 %v1880, %v1913
      %v1926 = vmul.f32 %v1893, %v1901
      %v1927 = vmul.f32 %v1889, %v1905
      %v1928 = vmul.f32 %v1885, %v1909
      %v1929 = vmul.f32 %v1881, %v1913
      %v1930 = vmul.f32 %v1894, %v1901
      %v1931 = vmul.f32 %v1890, %v1905
      %v1932 = vmul.f32 %v1886, %v1909
      %v1933 = vmul.f32 %v1882, %v1913
      %1934 = vrot.lane.b32.xlu0 %v1655, 2
      %v1935 = vpop.permute.xlu0 %1934
      %1936 = vrot.lane.b32.xlu0 %v1659, 2
      %v1937 = vpop.permute.xlu0 %1936
      %1938 = vrot.lane.b32.xlu0 %v1663, 2
      %v1939 = vpop.permute.xlu0 %1938
      %1940 = vrot.lane.b32.xlu0 %v1667, 2
      %v1941 = vpop.permute.xlu0 %1940
      %1942 = vrot.lane.b32.xlu0 %v1656, 2
      %v1943 = vpop.permute.xlu0 %1942
      %1944 = vrot.lane.b32.xlu0 %v1660, 2
      %v1945 = vpop.permute.xlu0 %1944
      %1946 = vrot.lane.b32.xlu0 %v1664, 2
      %v1947 = vpop.permute.xlu0 %1946
      %1948 = vrot.lane.b32.xlu0 %v1668, 2
      %v1949 = vpop.permute.xlu0 %1948
      %1950 = vrot.lane.b32.xlu0 %v1657, 2
      %v1951 = vpop.permute.xlu0 %1950
      %1952 = vrot.lane.b32.xlu0 %v1661, 2
      %v1953 = vpop.permute.xlu0 %1952
      %1954 = vrot.lane.b32.xlu0 %v1665, 2
      %v1955 = vpop.permute.xlu0 %1954
      %1956 = vrot.lane.b32.xlu0 %v1669, 2
      %v1957 = vpop.permute.xlu0 %1956
      %1958 = vrot.lane.b32.xlu0 %v1658, 2
      %v1959 = vpop.permute.xlu0 %1958
      %1960 = vrot.lane.b32.xlu0 %v1662, 2
      %v1961 = vpop.permute.xlu0 %1960
      %1962 = vrot.lane.b32.xlu0 %v1666, 2
      %v1963 = vpop.permute.xlu0 %1962
      %1964 = vrot.lane.b32.xlu0 %v1670, 2
      %v1965 = vpop.permute.xlu0 %1964
      %vm1966 = vcmp.lt.s32.totalorder %v454, 2
      %v1967 = vsel %vm1966, %v1951, %v1959
      %v1968 = vsel %vm1966, %v1953, %v1961
      %v1969 = vsel %vm1966, %v1955, %v1963
      %v1970 = vsel %vm1966, %v1957, %v1965
      %v1971 = vsel %vm1966, %v1943, %v1951
      %v1972 = vsel %vm1966, %v1945, %v1953
      %v1973 = vsel %vm1966, %v1947, %v1955
      %v1974 = vsel %vm1966, %v1949, %v1957
      %v1975 = vsel %vm1966, %v1935, %v1943
      %v1976 = vsel %vm1966, %v1937, %v1945
      %v1977 = vsel %vm1966, %v1939, %v1947
      %v1978 = vsel %vm1966, %v1941, %v1949
      %v1979 = vsel %vm1966, %v1959, %v1935
      %v1980 = vsel %vm1966, %v1961, %v1937
      %v1981 = vsel %vm1966, %v1963, %v1939
      %v1982 = vsel %vm1966, %v1965, %v1941
      %s1983 = scalar_lea.vmem %s10, 12
      %v1984 = vld [vmem:[%s1983] sm:$0xf]
      %v1986 = vlaneseq
      %v1987 = vshrl.u32 %v1986, 7
      %v1988 = vsub.s32 0, %v1987
      %v1989 = vrot.slane %v1984, %v1988
      %v1990 = vlaneseq
      %v1991 = vshrl.u32 %v1990, 7
      %v1992 = vsub.s32 1, %v1991
      %v1993 = vrot.slane %v1984, %v1992
      %v1994 = vlaneseq
      %v1995 = vshrl.u32 %v1994, 7
      %v1996 = vsub.s32 2, %v1995
      %v1997 = vrot.slane %v1984, %v1996
      %v1998 = vlaneseq
      %v1999 = vshrl.u32 %v1998, 7
      %v2000 = vsub.s32 3, %v1999
      %v2001 = vrot.slane %v1984, %v2000
      %v2006 = vmul.f32 %v1979, %v1989
      %v2007 = vmul.f32 %v1975, %v1993
      %v2008 = vmul.f32 %v1971, %v1997
      %v2009 = vmul.f32 %v1967, %v2001
      %v2010 = vmul.f32 %v1980, %v1989
      %v2011 = vmul.f32 %v1976, %v1993
      %v2012 = vmul.f32 %v1972, %v1997
      %v2013 = vmul.f32 %v1968, %v2001
      %v2014 = vmul.f32 %v1981, %v1989
      %v2015 = vmul.f32 %v1977, %v1993
      %v2016 = vmul.f32 %v1973, %v1997
      %v2017 = vmul.f32 %v1969, %v2001
      %v2018 = vmul.f32 %v1982, %v1989
      %v2019 = vmul.f32 %v1978, %v1993
      %v2020 = vmul.f32 %v1974, %v1997
      %v2021 = vmul.f32 %v1970, %v2001
      %s2022 = scalar_lea.vmem %s10, 16
      %v2023 = vld [vmem:[%s2022] sm:$0xf]
      %v2025 = vlaneseq
      %v2026 = vshrl.u32 %v2025, 7
      %v2027 = vsub.s32 0, %v2026
      %v2028 = vrot.slane %v2023, %v2027
      %v2029 = vlaneseq
      %v2030 = vshrl.u32 %v2029, 7
      %v2031 = vsub.s32 1, %v2030
      %v2032 = vrot.slane %v2023, %v2031
      %v2033 = vlaneseq
      %v2034 = vshrl.u32 %v2033, 7
      %v2035 = vsub.s32 2, %v2034
      %v2036 = vrot.slane %v2023, %v2035
      %v2037 = vlaneseq
      %v2038 = vshrl.u32 %v2037, 7
      %v2039 = vsub.s32 3, %v2038
      %v2040 = vrot.slane %v2023, %v2039
      %v2045 = vmul.f32 %v1655, %v2028
      %v2046 = vmul.f32 %v1656, %v2032
      %v2047 = vmul.f32 %v1657, %v2036
      %v2048 = vmul.f32 %v1658, %v2040
      %v2049 = vmul.f32 %v1659, %v2028
      %v2050 = vmul.f32 %v1660, %v2032
      %v2051 = vmul.f32 %v1661, %v2036
      %v2052 = vmul.f32 %v1662, %v2040
      %v2053 = vmul.f32 %v1663, %v2028
      %v2054 = vmul.f32 %v1664, %v2032
      %v2055 = vmul.f32 %v1665, %v2036
      %v2056 = vmul.f32 %v1666, %v2040
      %v2057 = vmul.f32 %v1667, %v2028
      %v2058 = vmul.f32 %v1668, %v2032
      %v2059 = vmul.f32 %v1669, %v2036
      %v2060 = vmul.f32 %v1670, %v2040
      %2061 = vrot.lane.b32.xlu0 %v1655, 126
      %v2062 = vpop.permute.xlu0 %2061
      %2063 = vrot.lane.b32.xlu0 %v1659, 126
      %v2064 = vpop.permute.xlu0 %2063
      %2065 = vrot.lane.b32.xlu0 %v1663, 126
      %v2066 = vpop.permute.xlu0 %2065
      %2067 = vrot.lane.b32.xlu0 %v1667, 126
      %v2068 = vpop.permute.xlu0 %2067
      %2069 = vrot.lane.b32.xlu0 %v1656, 126
      %v2070 = vpop.permute.xlu0 %2069
      %2071 = vrot.lane.b32.xlu0 %v1660, 126
      %v2072 = vpop.permute.xlu0 %2071
      %2073 = vrot.lane.b32.xlu0 %v1664, 126
      %v2074 = vpop.permute.xlu0 %2073
      %2075 = vrot.lane.b32.xlu0 %v1668, 126
      %v2076 = vpop.permute.xlu0 %2075
      %2077 = vrot.lane.b32.xlu0 %v1657, 126
      %v2078 = vpop.permute.xlu0 %2077
      %2079 = vrot.lane.b32.xlu0 %v1661, 126
      %v2080 = vpop.permute.xlu0 %2079
      %2081 = vrot.lane.b32.xlu0 %v1665, 126
      %v2082 = vpop.permute.xlu0 %2081
      %2083 = vrot.lane.b32.xlu0 %v1669, 126
      %v2084 = vpop.permute.xlu0 %2083
      %2085 = vrot.lane.b32.xlu0 %v1658, 126
      %v2086 = vpop.permute.xlu0 %2085
      %2087 = vrot.lane.b32.xlu0 %v1662, 126
      %v2088 = vpop.permute.xlu0 %2087
      %2089 = vrot.lane.b32.xlu0 %v1666, 126
      %v2090 = vpop.permute.xlu0 %2089
      %2091 = vrot.lane.b32.xlu0 %v1670, 126
      %v2092 = vpop.permute.xlu0 %2091
      %vm2093 = vcmp.lt.s32.totalorder %v454, 126
      %v2094 = vsel %vm2093, %v2078, %v2086
      %v2095 = vsel %vm2093, %v2080, %v2088
      %v2096 = vsel %vm2093, %v2082, %v2090
      %v2097 = vsel %vm2093, %v2084, %v2092
      %v2098 = vsel %vm2093, %v2070, %v2078
      %v2099 = vsel %vm2093, %v2072, %v2080
      %v2100 = vsel %vm2093, %v2074, %v2082
      %v2101 = vsel %vm2093, %v2076, %v2084
      %v2102 = vsel %vm2093, %v2062, %v2070
      %v2103 = vsel %vm2093, %v2064, %v2072
      %v2104 = vsel %vm2093, %v2066, %v2074
      %v2105 = vsel %vm2093, %v2068, %v2076
      %v2106 = vsel %vm2093, %v2086, %v2062
      %v2107 = vsel %vm2093, %v2088, %v2064
      %v2108 = vsel %vm2093, %v2090, %v2066
      %v2109 = vsel %vm2093, %v2092, %v2068
      %s2110 = scalar_lea.vmem %s10, 20
      %v2111 = vld [vmem:[%s2110] sm:$0xf]
      %v2113 = vlaneseq
      %v2114 = vshrl.u32 %v2113, 7
      %v2115 = vsub.s32 0, %v2114
      %v2116 = vrot.slane %v2111, %v2115
      %v2117 = vlaneseq
      %v2118 = vshrl.u32 %v2117, 7
      %v2119 = vsub.s32 1, %v2118
      %v2120 = vrot.slane %v2111, %v2119
      %v2121 = vlaneseq
      %v2122 = vshrl.u32 %v2121, 7
      %v2123 = vsub.s32 2, %v2122
      %v2124 = vrot.slane %v2111, %v2123
      %v2125 = vlaneseq
      %v2126 = vshrl.u32 %v2125, 7
      %v2127 = vsub.s32 3, %v2126
      %v2128 = vrot.slane %v2111, %v2127
      %v2133 = vmul.f32 %v2102, %v2116
      %v2134 = vmul.f32 %v2098, %v2120
      %v2135 = vmul.f32 %v2094, %v2124
      %v2136 = vmul.f32 %v2106, %v2128
      %v2137 = vmul.f32 %v2103, %v2116
      %v2138 = vmul.f32 %v2099, %v2120
      %v2139 = vmul.f32 %v2095, %v2124
      %v2140 = vmul.f32 %v2107, %v2128
      %v2141 = vmul.f32 %v2104, %v2116
      %v2142 = vmul.f32 %v2100, %v2120
      %v2143 = vmul.f32 %v2096, %v2124
      %v2144 = vmul.f32 %v2108, %v2128
      %v2145 = vmul.f32 %v2105, %v2116
      %v2146 = vmul.f32 %v2101, %v2120
      %v2147 = vmul.f32 %v2097, %v2124
      %v2148 = vmul.f32 %v2109, %v2128
      %2149 = vrot.lane.b32.xlu0 %v1655, 98
      %v2150 = vpop.permute.xlu0 %2149
      %2151 = vrot.lane.b32.xlu0 %v1659, 98
      %v2152 = vpop.permute.xlu0 %2151
      %2153 = vrot.lane.b32.xlu0 %v1663, 98
      %v2154 = vpop.permute.xlu0 %2153
      %2155 = vrot.lane.b32.xlu0 %v1667, 98
      %v2156 = vpop.permute.xlu0 %2155
      %2157 = vrot.lane.b32.xlu0 %v1656, 98
      %v2158 = vpop.permute.xlu0 %2157
      %2159 = vrot.lane.b32.xlu0 %v1660, 98
      %v2160 = vpop.permute.xlu0 %2159
      %2161 = vrot.lane.b32.xlu0 %v1664, 98
      %v2162 = vpop.permute.xlu0 %2161
      %2163 = vrot.lane.b32.xlu0 %v1668, 98
      %v2164 = vpop.permute.xlu0 %2163
      %2165 = vrot.lane.b32.xlu0 %v1657, 98
      %v2166 = vpop.permute.xlu0 %2165
      %2167 = vrot.lane.b32.xlu0 %v1661, 98
      %v2168 = vpop.permute.xlu0 %2167
      %2169 = vrot.lane.b32.xlu0 %v1665, 98
      %v2170 = vpop.permute.xlu0 %2169
      %2171 = vrot.lane.b32.xlu0 %v1669, 98
      %v2172 = vpop.permute.xlu0 %2171
      %2173 = vrot.lane.b32.xlu0 %v1658, 98
      %v2174 = vpop.permute.xlu0 %2173
      %2175 = vrot.lane.b32.xlu0 %v1662, 98
      %v2176 = vpop.permute.xlu0 %2175
      %2177 = vrot.lane.b32.xlu0 %v1666, 98
      %v2178 = vpop.permute.xlu0 %2177
      %2179 = vrot.lane.b32.xlu0 %v1670, 98
      %v2180 = vpop.permute.xlu0 %2179
      %vm2181 = vcmp.lt.s32.totalorder %v454, 98
      %v2182 = vsel %vm2181, %v2166, %v2174
      %v2183 = vsel %vm2181, %v2168, %v2176
      %v2184 = vsel %vm2181, %v2170, %v2178
      %v2185 = vsel %vm2181, %v2172, %v2180
      %v2186 = vsel %vm2181, %v2158, %v2166
      %v2187 = vsel %vm2181, %v2160, %v2168
      %v2188 = vsel %vm2181, %v2162, %v2170
      %v2189 = vsel %vm2181, %v2164, %v2172
      %v2190 = vsel %vm2181, %v2150, %v2158
      %v2191 = vsel %vm2181, %v2152, %v2160
      %v2192 = vsel %vm2181, %v2154, %v2162
      %v2193 = vsel %vm2181, %v2156, %v2164
      %v2194 = vsel %vm2181, %v2174, %v2150
      %v2195 = vsel %vm2181, %v2176, %v2152
      %v2196 = vsel %vm2181, %v2178, %v2154
      %v2197 = vsel %vm2181, %v2180, %v2156
      %s2198 = scalar_lea.vmem %s10, 24
      %v2199 = vld [vmem:[%s2198] sm:$0xf]
      %v2201 = vlaneseq
      %v2202 = vshrl.u32 %v2201, 7
      %v2203 = vsub.s32 0, %v2202
      %v2204 = vrot.slane %v2199, %v2203
      %v2205 = vlaneseq
      %v2206 = vshrl.u32 %v2205, 7
      %v2207 = vsub.s32 1, %v2206
      %v2208 = vrot.slane %v2199, %v2207
      %v2209 = vlaneseq
      %v2210 = vshrl.u32 %v2209, 7
      %v2211 = vsub.s32 2, %v2210
      %v2212 = vrot.slane %v2199, %v2211
      %v2213 = vlaneseq
      %v2214 = vshrl.u32 %v2213, 7
      %v2215 = vsub.s32 3, %v2214
      %v2216 = vrot.slane %v2199, %v2215
      %v2221 = vmul.f32 %v2190, %v2204
      %v2222 = vmul.f32 %v2186, %v2208
      %v2223 = vmul.f32 %v2182, %v2212
      %v2224 = vmul.f32 %v2194, %v2216
      %v2225 = vmul.f32 %v2191, %v2204
      %v2226 = vmul.f32 %v2187, %v2208
      %v2227 = vmul.f32 %v2183, %v2212
      %v2228 = vmul.f32 %v2195, %v2216
      %v2229 = vmul.f32 %v2192, %v2204
      %v2230 = vmul.f32 %v2188, %v2208
      %v2231 = vmul.f32 %v2184, %v2212
      %v2232 = vmul.f32 %v2196, %v2216
      %v2233 = vmul.f32 %v2193, %v2204
      %v2234 = vmul.f32 %v2189, %v2208
      %v2235 = vmul.f32 %v2185, %v2212
      %v2236 = vmul.f32 %v2197, %v2216
      %2237 = vrot.lane.b32.xlu0 %v1655, 96
      %v2238 = vpop.permute.xlu0 %2237
      %2239 = vrot.lane.b32.xlu0 %v1659, 96
      %v2240 = vpop.permute.xlu0 %2239
      %2241 = vrot.lane.b32.xlu0 %v1663, 96
      %v2242 = vpop.permute.xlu0 %2241
      %2243 = vrot.lane.b32.xlu0 %v1667, 96
      %v2244 = vpop.permute.xlu0 %2243
      %2245 = vrot.lane.b32.xlu0 %v1656, 96
      %v2246 = vpop.permute.xlu0 %2245
      %2247 = vrot.lane.b32.xlu0 %v1660, 96
      %v2248 = vpop.permute.xlu0 %2247
      %2249 = vrot.lane.b32.xlu0 %v1664, 96
      %v2250 = vpop.permute.xlu0 %2249
      %2251 = vrot.lane.b32.xlu0 %v1668, 96
      %v2252 = vpop.permute.xlu0 %2251
      %2253 = vrot.lane.b32.xlu0 %v1657, 96
      %v2254 = vpop.permute.xlu0 %2253
      %2255 = vrot.lane.b32.xlu0 %v1661, 96
      %v2256 = vpop.permute.xlu0 %2255
      %2257 = vrot.lane.b32.xlu0 %v1665, 96
      %v2258 = vpop.permute.xlu0 %2257
      %2259 = vrot.lane.b32.xlu0 %v1669, 96
      %v2260 = vpop.permute.xlu0 %2259
      %2261 = vrot.lane.b32.xlu0 %v1658, 96
      %v2262 = vpop.permute.xlu0 %2261
      %2263 = vrot.lane.b32.xlu0 %v1662, 96
      %v2264 = vpop.permute.xlu0 %2263
      %2265 = vrot.lane.b32.xlu0 %v1666, 96
      %v2266 = vpop.permute.xlu0 %2265
      %2267 = vrot.lane.b32.xlu0 %v1670, 96
      %v2268 = vpop.permute.xlu0 %2267
      %vm2269 = vcmp.lt.s32.totalorder %v454, 96
      %v2270 = vsel %vm2269, %v2254, %v2262
      %v2271 = vsel %vm2269, %v2256, %v2264
      %v2272 = vsel %vm2269, %v2258, %v2266
      %v2273 = vsel %vm2269, %v2260, %v2268
      %v2274 = vsel %vm2269, %v2246, %v2254
      %v2275 = vsel %vm2269, %v2248, %v2256
      %v2276 = vsel %vm2269, %v2250, %v2258
      %v2277 = vsel %vm2269, %v2252, %v2260
      %v2278 = vsel %vm2269, %v2238, %v2246
      %v2279 = vsel %vm2269, %v2240, %v2248
      %v2280 = vsel %vm2269, %v2242, %v2250
      %v2281 = vsel %vm2269, %v2244, %v2252
      %v2282 = vsel %vm2269, %v2262, %v2238
      %v2283 = vsel %vm2269, %v2264, %v2240
      %v2284 = vsel %vm2269, %v2266, %v2242
      %v2285 = vsel %vm2269, %v2268, %v2244
      %s2286 = scalar_lea.vmem %s10, 28
      %v2287 = vld [vmem:[%s2286] sm:$0xf]
      %v2289 = vlaneseq
      %v2290 = vshrl.u32 %v2289, 7
      %v2291 = vsub.s32 0, %v2290
      %v2292 = vrot.slane %v2287, %v2291
      %v2293 = vlaneseq
      %v2294 = vshrl.u32 %v2293, 7
      %v2295 = vsub.s32 1, %v2294
      %v2296 = vrot.slane %v2287, %v2295
      %v2297 = vlaneseq
      %v2298 = vshrl.u32 %v2297, 7
      %v2299 = vsub.s32 2, %v2298
      %v2300 = vrot.slane %v2287, %v2299
      %v2301 = vlaneseq
      %v2302 = vshrl.u32 %v2301, 7
      %v2303 = vsub.s32 3, %v2302
      %v2304 = vrot.slane %v2287, %v2303
      %v2309 = vmul.f32 %v2278, %v2292
      %v2310 = vmul.f32 %v2274, %v2296
      %v2311 = vmul.f32 %v2270, %v2300
      %v2312 = vmul.f32 %v2282, %v2304
      %v2313 = vmul.f32 %v2279, %v2292
      %v2314 = vmul.f32 %v2275, %v2296
      %v2315 = vmul.f32 %v2271, %v2300
      %v2316 = vmul.f32 %v2283, %v2304
      %v2317 = vmul.f32 %v2280, %v2292
      %v2318 = vmul.f32 %v2276, %v2296
      %v2319 = vmul.f32 %v2272, %v2300
      %v2320 = vmul.f32 %v2284, %v2304
      %v2321 = vmul.f32 %v2281, %v2292
      %v2322 = vmul.f32 %v2277, %v2296
      %v2323 = vmul.f32 %v2273, %v2300
      %v2324 = vmul.f32 %v2285, %v2304
      %2325 = vrot.lane.b32.xlu0 %v1655, 94
      %v2326 = vpop.permute.xlu0 %2325
      %2327 = vrot.lane.b32.xlu0 %v1659, 94
      %v2328 = vpop.permute.xlu0 %2327
      %2329 = vrot.lane.b32.xlu0 %v1663, 94
      %v2330 = vpop.permute.xlu0 %2329
      %2331 = vrot.lane.b32.xlu0 %v1667, 94
      %v2332 = vpop.permute.xlu0 %2331
      %2333 = vrot.lane.b32.xlu0 %v1656, 94
      %v2334 = vpop.permute.xlu0 %2333
      %2335 = vrot.lane.b32.xlu0 %v1660, 94
      %v2336 = vpop.permute.xlu0 %2335
      %2337 = vrot.lane.b32.xlu0 %v1664, 94
      %v2338 = vpop.permute.xlu0 %2337
      %2339 = vrot.lane.b32.xlu0 %v1668, 94
      %v2340 = vpop.permute.xlu0 %2339
      %2341 = vrot.lane.b32.xlu0 %v1657, 94
      %v2342 = vpop.permute.xlu0 %2341
      %2343 = vrot.lane.b32.xlu0 %v1661, 94
      %v2344 = vpop.permute.xlu0 %2343
      %2345 = vrot.lane.b32.xlu0 %v1665, 94
      %v2346 = vpop.permute.xlu0 %2345
      %2347 = vrot.lane.b32.xlu0 %v1669, 94
      %v2348 = vpop.permute.xlu0 %2347
      %2349 = vrot.lane.b32.xlu0 %v1658, 94
      %v2350 = vpop.permute.xlu0 %2349
      %2351 = vrot.lane.b32.xlu0 %v1662, 94
      %v2352 = vpop.permute.xlu0 %2351
      %2353 = vrot.lane.b32.xlu0 %v1666, 94
      %v2354 = vpop.permute.xlu0 %2353
      %2355 = vrot.lane.b32.xlu0 %v1670, 94
      %v2356 = vpop.permute.xlu0 %2355
      %vm2357 = vcmp.lt.s32.totalorder %v454, 94
      %v2358 = vsel %vm2357, %v2342, %v2350
      %v2359 = vsel %vm2357, %v2344, %v2352
      %v2360 = vsel %vm2357, %v2346, %v2354
      %v2361 = vsel %vm2357, %v2348, %v2356
      %v2362 = vsel %vm2357, %v2334, %v2342
      %v2363 = vsel %vm2357, %v2336, %v2344
      %v2364 = vsel %vm2357, %v2338, %v2346
      %v2365 = vsel %vm2357, %v2340, %v2348
      %v2366 = vsel %vm2357, %v2326, %v2334
      %v2367 = vsel %vm2357, %v2328, %v2336
      %v2368 = vsel %vm2357, %v2330, %v2338
      %v2369 = vsel %vm2357, %v2332, %v2340
      %v2370 = vsel %vm2357, %v2350, %v2326
      %v2371 = vsel %vm2357, %v2352, %v2328
      %v2372 = vsel %vm2357, %v2354, %v2330
      %v2373 = vsel %vm2357, %v2356, %v2332
      %s2374 = scalar_lea.vmem %s10, 32
      %v2375 = vld [vmem:[%s2374] sm:$0xf]
      %v2377 = vlaneseq
      %v2378 = vshrl.u32 %v2377, 7
      %v2379 = vsub.s32 0, %v2378
      %v2380 = vrot.slane %v2375, %v2379
      %v2381 = vlaneseq
      %v2382 = vshrl.u32 %v2381, 7
      %v2383 = vsub.s32 1, %v2382
      %v2384 = vrot.slane %v2375, %v2383
      %v2385 = vlaneseq
      %v2386 = vshrl.u32 %v2385, 7
      %v2387 = vsub.s32 2, %v2386
      %v2388 = vrot.slane %v2375, %v2387
      %v2389 = vlaneseq
      %v2390 = vshrl.u32 %v2389, 7
      %v2391 = vsub.s32 3, %v2390
      %v2392 = vrot.slane %v2375, %v2391
      %v2397 = vmul.f32 %v2366, %v2380
      %v2398 = vmul.f32 %v2362, %v2384
      %v2399 = vmul.f32 %v2358, %v2388
      %v2400 = vmul.f32 %v2370, %v2392
      %v2401 = vmul.f32 %v2367, %v2380
      %v2402 = vmul.f32 %v2363, %v2384
      %v2403 = vmul.f32 %v2359, %v2388
      %v2404 = vmul.f32 %v2371, %v2392
      %v2405 = vmul.f32 %v2368, %v2380
      %v2406 = vmul.f32 %v2364, %v2384
      %v2407 = vmul.f32 %v2360, %v2388
      %v2408 = vmul.f32 %v2372, %v2392
      %v2409 = vmul.f32 %v2369, %v2380
      %v2410 = vmul.f32 %v2365, %v2384
      %v2411 = vmul.f32 %v2361, %v2388
      %v2412 = vmul.f32 %v2373, %v2392
      %v2413 = vld [vmem:[%s5] sm:$0xff]
      %v2414 = vld [vmem:[%s5 + $0x8] sm:$0xff]
      %v2415 = vld [vmem:[%s5 + $0x10] sm:$0xff]
      %v2416 = vld [vmem:[%s5 + $0x18] sm:$0xff]
      %v2417 = vld [vmem:[%s5 + $0x20] sm:$0xff]
      %v2418 = vld [vmem:[%s5 + $0x28] sm:$0xff]
      %v2419 = vld [vmem:[%s6] sm:$0xff]
      %v2420 = vld [vmem:[%s6 + $0x8] sm:$0xff]
      %2422 = vset.pattern.permute.xlu0 0
      %2423 = vperm.xlu0 %2422, %v2419
      %v2424 = vpop.permute.xlu0 %2423
      %2427 = vset.pattern.permute.xlu0 0
      %2428 = vperm.xlu0 %2427, %v2420
      %v2429 = vpop.permute.xlu0 %2428
      %vm2431 = vcmask 261120
      %v2433 = vsel %vm2431, %v2415, 0
      %v2436 = vsel %vm2431, %v2418, 0
      %2438 = vmatprep.subr.mxu0 %v1743
      %2439 = vmatpush1.msra.mxu0 %v1742
      %2440 = vmatprep.subr.mxu0 %v1747
      %2441 = vmatpush1.msra.mxu0 %v1746
      %2442 = vmatprep.subr.mxu0 %v1751
      %2443 = vmatpush1.msra.mxu0 %v1750
      %2444 = vmatprep.subr.mxu0 %v1755
      %2445 = vmatpush1.msra.mxu0 %v1754
      %2446 = vmatprep.subr.mxu0 %v1831
      %2447 = vmatpush1.msra.mxu0 %v1830
      %2448 = vmatprep.subr.mxu0 %v1835
      %2449 = vmatpush1.msra.mxu0 %v1834
      %2450 = vmatprep.subr.mxu0 %v1839
      %2451 = vmatpush1.msra.mxu0 %v1838
      %2452 = vmatprep.subr.mxu0 %v1843
      %2453 = vmatpush1.msra.mxu0 %v1842
      %2454 = vmatprep.subr.mxu0 %v1919
      %2455 = vmatpush1.msra.mxu0 %v1918
      %2456 = vmatprep.subr.mxu0 %v1923
      %2457 = vmatpush1.msra.mxu0 %v1922
      %2458 = vmatprep.subr.mxu0 %v1927
      %2459 = vmatpush1.msra.mxu0 %v1926
      %2460 = vmatprep.subr.mxu0 %v1931
      %2461 = vmatpush1.msra.mxu0 %v1930
      %2462 = vmatprep.subr.mxu0 %v2007
      %2463 = vmatpush1.msra.mxu0 %v2006
      %2464 = vmatprep.subr.mxu0 %v2011
      %2465 = vmatpush1.msra.mxu0 %v2010
      %2466 = vmatprep.subr.mxu0 %v2015
      %2467 = vmatpush1.msra.mxu0 %v2014
      %2468 = vmatprep.subr.mxu0 %v2019
      %2469 = vmatpush1.msra.mxu0 %v2018
      %2470 = vmatprep.subr.mxu0 %v2046
      %2471 = vmatpush1.msra.mxu0 %v2045
      %2472 = vmatprep.subr.mxu0 %v2050
      %2473 = vmatpush1.msra.mxu0 %v2049
      %2474 = vmatprep.subr.mxu0 %v2054
      %2475 = vmatpush1.msra.mxu0 %v2053
      %2476 = vmatprep.subr.mxu0 %v2058
      %2477 = vmatpush1.msra.mxu0 %v2057
      %2478 = vmatprep.subr.mxu0 %v2134
      %2479 = vmatpush1.msra.mxu0 %v2133
      %2480 = vmatprep.subr.mxu0 %v2138
      %2481 = vmatpush1.msra.mxu0 %v2137
      %2482 = vmatprep.subr.mxu0 %v2142
      %2483 = vmatpush1.msra.mxu0 %v2141
      %2484 = vmatprep.subr.mxu0 %v2146
      %2485 = vmatpush1.msra.mxu0 %v2145
      %2486 = vmatprep.subr.mxu0 %v2222
      %2487 = vmatpush1.msra.mxu0 %v2221
      %2488 = vmatprep.subr.mxu0 %v2226
      %2489 = vmatpush1.msra.mxu0 %v2225
      %2490 = vmatprep.subr.mxu0 %v2230
      %2491 = vmatpush1.msra.mxu0 %v2229
      %2492 = vmatprep.subr.mxu0 %v2234
      %2493 = vmatpush1.msra.mxu0 %v2233
      %2494 = vmatprep.subr.mxu0 %v2310
      %2495 = vmatpush1.msra.mxu0 %v2309
      %2496 = vmatprep.subr.mxu0 %v2314
      %2497 = vmatpush1.msra.mxu0 %v2313
      %2498 = vmatprep.subr.mxu0 %v2318
      %2499 = vmatpush1.msra.mxu0 %v2317
      %2500 = vmatprep.subr.mxu0 %v2322
      %2501 = vmatpush1.msra.mxu0 %v2321
      %2502 = vmatprep.mubr.f32.mxu0 %v2414
      %2503 = vmatmul.mubr.f32.gmra.mrb[0].mxu0 %v2413
      %v2504 = vpop.f32.mrb[0].mxu0
      %v2505 = vadd.f32 %v2424, %v2504
      %v2506 = vpop.f32.mrb[0].mxu0
      %v2507 = vadd.f32 %v2424, %v2506
      %2508 = vmatprep.mubr.f32.mxu0 %v2417
      %2509 = vmatmul.mubr.f32.gmra.mrb[0].mxu0 %v2416
      %v2510 = vpop.f32.mrb[0].mxu0
      %v2511 = vadd.f32 %v2429, %v2510
      %v2512 = vpop.f32.mrb[0].mxu0
      %v2513 = vadd.f32 %v2429, %v2512
      %2514 = vdwg.mxu0
      %2515 = vmatprep.subr.mxu0 %v2398
      %2516 = vmatpush1.msra.mxu0 %v2397
      %2517 = vmatprep.subr.mxu0 %v2402
      %2518 = vmatpush1.msra.mxu0 %v2401
      %2519 = vmatprep.subr.mxu0 %v2406
      %2520 = vmatpush1.msra.mxu0 %v2405
      %2521 = vmatprep.subr.mxu0 %v2410
      %2522 = vmatpush1.msra.mxu0 %v2409
      %2523 = vmatprep.subr.mxu0 0.0
      %2524 = vmatpush1.msra.mxu0 0.0
      %2525 = vmatprep.subr.mxu0 0.0
      %2526 = vmatpush1.msra.mxu0 0.0
      %2527 = vmatprep.subr.mxu0 0.0
      %2528 = vmatpush1.msra.mxu0 0.0
      %2529 = vmatprep.subr.mxu0 0.0
      %2530 = vmatpush1.msra.mxu0 0.0
      %2531 = vmatprep.subr.mxu0 0.0
      %2532 = vmatpush1.msra.mxu0 0.0
      %2533 = vmatprep.subr.mxu0 0.0
      %2534 = vmatpush1.msra.mxu0 0.0
      %2535 = vmatprep.subr.mxu0 0.0
      %2536 = vmatpush1.msra.mxu0 0.0
      %2537 = vmatprep.subr.mxu0 0.0
      %2538 = vmatpush1.msra.mxu0 0.0
      %2539 = vmatprep.subr.mxu0 0.0
      %2540 = vmatpush1.msra.mxu0 0.0
      %2541 = vmatprep.subr.mxu0 0.0
      %2542 = vmatpush1.msra.mxu0 0.0
      %2543 = vmatprep.subr.mxu0 0.0
      %2544 = vmatpush1.msra.mxu0 0.0
      %2545 = vmatprep.subr.mxu0 0.0
      %2546 = vmatpush1.msra.mxu0 0.0
      %2547 = vmatprep.subr.mxu0 0.0
      %2548 = vmatpush1.msra.mxu0 0.0
      %2549 = vmatprep.subr.mxu0 0.0
      %2550 = vmatpush1.msra.mxu0 0.0
      %2551 = vmatprep.subr.mxu0 0.0
      %2552 = vmatpush1.msra.mxu0 0.0
      %2553 = vmatprep.subr.mxu0 0.0
      %2554 = vmatpush1.msra.mxu0 0.0
      %2555 = vmatprep.subr.mxu0 0.0
      %2556 = vmatpush1.msra.mxu0 0.0
      %2557 = vmatprep.subr.mxu0 0.0
      %2558 = vmatpush1.msra.mxu0 0.0
      %2559 = vmatprep.subr.mxu0 0.0
      %2560 = vmatpush1.msra.mxu0 0.0
      %2561 = vmatprep.subr.mxu0 0.0
      %2562 = vmatpush1.msra.mxu0 0.0
      %2563 = vmatprep.subr.mxu0 0.0
      %2564 = vmatpush1.msra.mxu0 0.0
      %2565 = vmatprep.subr.mxu0 0.0
      %2566 = vmatpush1.msra.mxu0 0.0
      %2567 = vmatprep.subr.mxu0 0.0
      %2568 = vmatpush1.msra.mxu0 0.0
      %2569 = vmatprep.subr.mxu0 0.0
      %2570 = vmatpush1.msra.mxu0 0.0
      %2571 = vmatprep.subr.mxu0 0.0
      %2572 = vmatpush1.msra.mxu0 0.0
      %2573 = vmatprep.subr.mxu0 0.0
      %2574 = vmatpush1.msra.mxu0 0.0
      %2575 = vmatprep.subr.mxu0 0.0
      %2576 = vmatpush1.msra.mxu0 0.0
      %2577 = vmatprep.subr.mxu0 0.0
      %2578 = vmatpush1.msra.mxu0 0.0
      %2579 = vmatprep.mubr.f32.mxu0 0.0
      %2580 = vmatmul.mubr.f32.gmra.mrb[0].mxu0 %v2433
      %v2581 = vpop.f32.mrb[0].mxu0
      %v2582 = vadd.f32 %v2505, %v2581
      %v2583 = vpop.f32.mrb[0].mxu0
      %v2584 = vadd.f32 %v2507, %v2583
      %2585 = vmatprep.mubr.f32.mxu0 0.0
      %2586 = vmatmul.mubr.f32.gmra.mrb[0].mxu0 %v2436
      %v2587 = vpop.f32.mrb[0].mxu0
      %v2588 = vadd.f32 %v2511, %v2587
      %v2589 = vpop.f32.mrb[0].mxu0
      %v2590 = vadd.f32 %v2513, %v2589
      %2591 = vdwg.mxu0
      %2592 = vmatprep.subr.mxu0 %v1745
      %2593 = vmatpush1.msra.mxu0 %v1744
      %2594 = vmatprep.subr.mxu0 %v1749
      %2595 = vmatpush1.msra.mxu0 %v1748
      %2596 = vmatprep.subr.mxu0 %v1753
      %2597 = vmatpush1.msra.mxu0 %v1752
      %2598 = vmatprep.subr.mxu0 %v1757
      %2599 = vmatpush1.msra.mxu0 %v1756
      %2600 = vmatprep.subr.mxu0 %v1833
      %2601 = vmatpush1.msra.mxu0 %v1832
      %2602 = vmatprep.subr.mxu0 %v1837
      %2603 = vmatpush1.msra.mxu0 %v1836
      %2604 = vmatprep.subr.mxu0 %v1841
      %2605 = vmatpush1.msra.mxu0 %v1840
      %2606 = vmatprep.subr.mxu0 %v1845
      %2607 = vmatpush1.msra.mxu0 %v1844
      %2608 = vmatprep.subr.mxu0 %v1921
      %2609 = vmatpush1.msra.mxu0 %v1920
      %2610 = vmatprep.subr.mxu0 %v1925
      %2611 = vmatpush1.msra.mxu0 %v1924
      %2612 = vmatprep.subr.mxu0 %v1929
      %2613 = vmatpush1.msra.mxu0 %v1928
      %2614 = vmatprep.subr.mxu0 %v1933
      %2615 = vmatpush1.msra.mxu0 %v1932
      %2616 = vmatprep.subr.mxu0 %v2009
      %2617 = vmatpush1.msra.mxu0 %v2008
      %2618 = vmatprep.subr.mxu0 %v2013
      %2619 = vmatpush1.msra.mxu0 %v2012
      %2620 = vmatprep.subr.mxu0 %v2017
      %2621 = vmatpush1.msra.mxu0 %v2016
      %2622 = vmatprep.subr.mxu0 %v2021
      %2623 = vmatpush1.msra.mxu0 %v2020
      %2624 = vmatprep.subr.mxu0 %v2048
      %2625 = vmatpush1.msra.mxu0 %v2047
      %2626 = vmatprep.subr.mxu0 %v2052
      %2627 = vmatpush1.msra.mxu0 %v2051
      %2628 = vmatprep.subr.mxu0 %v2056
      %2629 = vmatpush1.msra.mxu0 %v2055
      %2630 = vmatprep.subr.mxu0 %v2060
      %2631 = vmatpush1.msra.mxu0 %v2059
      %2632 = vmatprep.subr.mxu0 %v2136
      %2633 = vmatpush1.msra.mxu0 %v2135
      %2634 = vmatprep.subr.mxu0 %v2140
      %2635 = vmatpush1.msra.mxu0 %v2139
      %2636 = vmatprep.subr.mxu0 %v2144
      %2637 = vmatpush1.msra.mxu0 %v2143
      %2638 = vmatprep.subr.mxu0 %v2148
      %2639 = vmatpush1.msra.mxu0 %v2147
      %2640 = vmatprep.subr.mxu0 %v2224
      %2641 = vmatpush1.msra.mxu0 %v2223
      %2642 = vmatprep.subr.mxu0 %v2228
      %2643 = vmatpush1.msra.mxu0 %v2227
      %2644 = vmatprep.subr.mxu0 %v2232
      %2645 = vmatpush1.msra.mxu0 %v2231
      %2646 = vmatprep.subr.mxu0 %v2236
      %2647 = vmatpush1.msra.mxu0 %v2235
      %2648 = vmatprep.subr.mxu0 %v2312
      %2649 = vmatpush1.msra.mxu0 %v2311
      %2650 = vmatprep.subr.mxu0 %v2316
      %2651 = vmatpush1.msra.mxu0 %v2315
      %2652 = vmatprep.subr.mxu0 %v2320
      %2653 = vmatpush1.msra.mxu0 %v2319
      %2654 = vmatprep.subr.mxu0 %v2324
      %2655 = vmatpush1.msra.mxu0 %v2323
      %2656 = vmatprep.mubr.f32.mxu0 %v2414
      %2657 = vmatmul.mubr.f32.gmra.mrb[0].mxu0 %v2413
      %v2658 = vpop.f32.mrb[0].mxu0
      %v2659 = vadd.f32 %v2424, %v2658
      %v2660 = vpop.f32.mrb[0].mxu0
      %v2661 = vadd.f32 %v2424, %v2660
      %2662 = vmatprep.mubr.f32.mxu0 %v2417
      %2663 = vmatmul.mubr.f32.gmra.mrb[0].mxu0 %v2416
      %v2664 = vpop.f32.mrb[0].mxu0
      %v2665 = vadd.f32 %v2429, %v2664
      %v2666 = vpop.f32.mrb[0].mxu0
      %v2667 = vadd.f32 %v2429, %v2666
      %2668 = vdwg.mxu0
      %2669 = vmatprep.subr.mxu0 %v2400
      %2670 = vmatpush1.msra.mxu0 %v2399
      %2671 = vmatprep.subr.mxu0 %v2404
      %2672 = vmatpush1.msra.mxu0 %v2403
      %2673 = vmatprep.subr.mxu0 %v2408
      %2674 = vmatpush1.msra.mxu0 %v2407
      %2675 = vmatprep.subr.mxu0 %v2412
      %2676 = vmatpush1.msra.mxu0 %v2411
      %2677 = vmatprep.subr.mxu0 0.0
      %2678 = vmatpush1.msra.mxu0 0.0
      %2679 = vmatprep.subr.mxu0 0.0
      %2680 = vmatpush1.msra.mxu0 0.0
      %2681 = vmatprep.subr.mxu0 0.0
      %2682 = vmatpush1.msra.mxu0 0.0
      %2683 = vmatprep.subr.mxu0 0.0
      %2684 = vmatpush1.msra.mxu0 0.0
      %2685 = vmatprep.subr.mxu0 0.0
      %2686 = vmatpush1.msra.mxu0 0.0
      %2687 = vmatprep.subr.mxu0 0.0
      %2688 = vmatpush1.msra.mxu0 0.0
      %2689 = vmatprep.subr.mxu0 0.0
      %2690 = vmatpush1.msra.mxu0 0.0
      %2691 = vmatprep.subr.mxu0 0.0
      %2692 = vmatpush1.msra.mxu0 0.0
      %2693 = vmatprep.subr.mxu0 0.0
      %2694 = vmatpush1.msra.mxu0 0.0
      %2695 = vmatprep.subr.mxu0 0.0
      %2696 = vmatpush1.msra.mxu0 0.0
      %2697 = vmatprep.subr.mxu0 0.0
      %2698 = vmatpush1.msra.mxu0 0.0
      %2699 = vmatprep.subr.mxu0 0.0
      %2700 = vmatpush1.msra.mxu0 0.0
      %2701 = vmatprep.subr.mxu0 0.0
      %2702 = vmatpush1.msra.mxu0 0.0
      %2703 = vmatprep.subr.mxu0 0.0
      %2704 = vmatpush1.msra.mxu0 0.0
      %2705 = vmatprep.subr.mxu0 0.0
      %2706 = vmatpush1.msra.mxu0 0.0
      %2707 = vmatprep.subr.mxu0 0.0
      %2708 = vmatpush1.msra.mxu0 0.0
      %2709 = vmatprep.subr.mxu0 0.0
      %2710 = vmatpush1.msra.mxu0 0.0
      %2711 = vmatprep.subr.mxu0 0.0
      %2712 = vmatpush1.msra.mxu0 0.0
      %2713 = vmatprep.subr.mxu0 0.0
      %2714 = vmatpush1.msra.mxu0 0.0
      %2715 = vmatprep.subr.mxu0 0.0
      %2716 = vmatpush1.msra.mxu0 0.0
      %2717 = vmatprep.subr.mxu0 0.0
      %2718 = vmatpush1.msra.mxu0 0.0
      %2719 = vmatprep.subr.mxu0 0.0
      %2720 = vmatpush1.msra.mxu0 0.0
      %2721 = vmatprep.subr.mxu0 0.0
      %2722 = vmatpush1.msra.mxu0 0.0
      %2723 = vmatprep.subr.mxu0 0.0
      %2724 = vmatpush1.msra.mxu0 0.0
      %2725 = vmatprep.subr.mxu0 0.0
      %2726 = vmatpush1.msra.mxu0 0.0
      %2727 = vmatprep.subr.mxu0 0.0
      %2728 = vmatpush1.msra.mxu0 0.0
      %2729 = vmatprep.subr.mxu0 0.0
      %2730 = vmatpush1.msra.mxu0 0.0
      %2731 = vmatprep.subr.mxu0 0.0
      %2732 = vmatpush1.msra.mxu0 0.0
      %2733 = vmatprep.mubr.f32.mxu0 0.0
      %2734 = vmatmul.mubr.f32.gmra.mrb[0].mxu0 %v2433
      %v2735 = vpop.f32.mrb[0].mxu0
      %v2736 = vadd.f32 %v2659, %v2735
      %v2737 = vpop.f32.mrb[0].mxu0
      %v2738 = vadd.f32 %v2661, %v2737
      %2739 = vmatprep.mubr.f32.mxu0 0.0
      %2740 = vmatmul.mubr.f32.gmra.mrb[0].mxu0 %v2436
      %v2741 = vpop.f32.mrb[0].mxu0
      %v2742 = vadd.f32 %v2665, %v2741
      %v2743 = vpop.f32.mrb[0].mxu0
      %v2744 = vadd.f32 %v2667, %v2743
      %2745 = vdwg.mxu0
      %v2746 = vmax.f32 %v2582, 0.0
      %v2747 = vmax.f32 %v2584, 0.0
      %v2748 = vmax.f32 %v2736, 0.0
      %v2749 = vmax.f32 %v2738, 0.0
      %v2750 = vmax.f32 %v2588, 0.0
      %v2751 = vmax.f32 %v2590, 0.0
      %v2752 = vmax.f32 %v2742, 0.0
      %v2753 = vmax.f32 %v2744, 0.0
      %2754 = vrot.lane.b32.xlu0 %v2746, 34
      %v2755 = vpop.permute.xlu0 %2754
      %2756 = vrot.lane.b32.xlu0 %v2750, 34
      %v2757 = vpop.permute.xlu0 %2756
      %2758 = vrot.lane.b32.xlu0 %v2747, 34
      %v2759 = vpop.permute.xlu0 %2758
      %2760 = vrot.lane.b32.xlu0 %v2751, 34
      %v2761 = vpop.permute.xlu0 %2760
      %2762 = vrot.lane.b32.xlu0 %v2748, 34
      %v2763 = vpop.permute.xlu0 %2762
      %2764 = vrot.lane.b32.xlu0 %v2752, 34
      %v2765 = vpop.permute.xlu0 %2764
      %2766 = vrot.lane.b32.xlu0 %v2749, 34
      %v2767 = vpop.permute.xlu0 %2766
      %2768 = vrot.lane.b32.xlu0 %v2753, 34
      %v2769 = vpop.permute.xlu0 %2768
      %v2770 = vsel %vm1703, %v2763, %v2767
      %v2771 = vsel %vm1703, %v2765, %v2769
      %v2772 = vsel %vm1703, %v2759, %v2763
      %v2773 = vsel %vm1703, %v2761, %v2765
      %v2774 = vsel %vm1703, %v2755, %v2759
      %v2775 = vsel %vm1703, %v2757, %v2761
      %v2776 = vsel %vm1703, %v2767, %v2755
      %v2777 = vsel %vm1703, %v2769, %v2757
      %v2778 = vld [vmem:[%s12] sm:$0xf]
      %v2780 = vlaneseq
      %v2781 = vshrl.u32 %v2780, 7
      %v2782 = vsub.s32 0, %v2781
      %v2783 = vrot.slane %v2778, %v2782
      %v2784 = vlaneseq
      %v2785 = vshrl.u32 %v2784, 7
      %v2786 = vsub.s32 1, %v2785
      %v2787 = vrot.slane %v2778, %v2786
      %v2788 = vlaneseq
      %v2789 = vshrl.u32 %v2788, 7
      %v2790 = vsub.s32 2, %v2789
      %v2791 = vrot.slane %v2778, %v2790
      %v2792 = vlaneseq
      %v2793 = vshrl.u32 %v2792, 7
      %v2794 = vsub.s32 3, %v2793
      %v2795 = vrot.slane %v2778, %v2794
      %v2800 = vmul.f32 %v2776, %v2783
      %v2801 = vmul.f32 %v2774, %v2787
      %v2802 = vmul.f32 %v2772, %v2791
      %v2803 = vmul.f32 %v2770, %v2795
      %v2804 = vmul.f32 %v2777, %v2783
      %v2805 = vmul.f32 %v2775, %v2787
      %v2806 = vmul.f32 %v2773, %v2791
      %v2807 = vmul.f32 %v2771, %v2795
      %v2808 = vadd.f32 %v2800, 0.0
      %v2809 = vadd.f32 %v2801, 0.0
      %v2810 = vadd.f32 %v2802, 0.0
      %v2811 = vadd.f32 %v2803, 0.0
      %v2812 = vadd.f32 %v2804, 0.0
      %v2813 = vadd.f32 %v2805, 0.0
      %v2814 = vadd.f32 %v2806, 0.0
      %v2815 = vadd.f32 %v2807, 0.0
      %2816 = vrot.lane.b32.xlu0 %v2746, 33
      %v2817 = vpop.permute.xlu0 %2816
      %2818 = vrot.lane.b32.xlu0 %v2750, 33
      %v2819 = vpop.permute.xlu0 %2818
      %2820 = vrot.lane.b32.xlu0 %v2747, 33
      %v2821 = vpop.permute.xlu0 %2820
      %2822 = vrot.lane.b32.xlu0 %v2751, 33
      %v2823 = vpop.permute.xlu0 %2822
      %2824 = vrot.lane.b32.xlu0 %v2748, 33
      %v2825 = vpop.permute.xlu0 %2824
      %2826 = vrot.lane.b32.xlu0 %v2752, 33
      %v2827 = vpop.permute.xlu0 %2826
      %2828 = vrot.lane.b32.xlu0 %v2749, 33
      %v2829 = vpop.permute.xlu0 %2828
      %2830 = vrot.lane.b32.xlu0 %v2753, 33
      %v2831 = vpop.permute.xlu0 %2830
      %vm2832 = vcmp.lt.s32.totalorder %v454, 33
      %v2833 = vsel %vm2832, %v2825, %v2829
      %v2834 = vsel %vm2832, %v2827, %v2831
      %v2835 = vsel %vm2832, %v2821, %v2825
      %v2836 = vsel %vm2832, %v2823, %v2827
      %v2837 = vsel %vm2832, %v2817, %v2821
      %v2838 = vsel %vm2832, %v2819, %v2823
      %v2839 = vsel %vm2832, %v2829, %v2817
      %v2840 = vsel %vm2832, %v2831, %v2819
      %s2841 = scalar_lea.vmem %s12, 4
      %v2842 = vld [vmem:[%s2841] sm:$0xf]
      %v2844 = vlaneseq
      %v2845 = vshrl.u32 %v2844, 7
      %v2846 = vsub.s32 0, %v2845
      %v2847 = vrot.slane %v2842, %v2846
      %v2848 = vlaneseq
      %v2849 = vshrl.u32 %v2848, 7
      %v2850 = vsub.s32 1, %v2849
      %v2851 = vrot.slane %v2842, %v2850
      %v2852 = vlaneseq
      %v2853 = vshrl.u32 %v2852, 7
      %v2854 = vsub.s32 2, %v2853
      %v2855 = vrot.slane %v2842, %v2854
      %v2856 = vlaneseq
      %v2857 = vshrl.u32 %v2856, 7
      %v2858 = vsub.s32 3, %v2857
      %v2859 = vrot.slane %v2842, %v2858
      %v2864 = vmul.f32 %v2839, %v2847
      %v2865 = vmul.f32 %v2837, %v2851
      %v2866 = vmul.f32 %v2835, %v2855
      %v2867 = vmul.f32 %v2833, %v2859
      %v2868 = vmul.f32 %v2840, %v2847
      %v2869 = vmul.f32 %v2838, %v2851
      %v2870 = vmul.f32 %v2836, %v2855
      %v2871 = vmul.f32 %v2834, %v2859
      %v2872 = vadd.f32 %v2808, %v2864
      %v2873 = vadd.f32 %v2809, %v2865
      %v2874 = vadd.f32 %v2810, %v2866
      %v2875 = vadd.f32 %v2811, %v2867
      %v2876 = vadd.f32 %v2812, %v2868
      %v2877 = vadd.f32 %v2813, %v2869
      %v2878 = vadd.f32 %v2814, %v2870
      %v2879 = vadd.f32 %v2815, %v2871
      %2880 = vrot.lane.b32.xlu0 %v2746, 32
      %v2881 = vpop.permute.xlu0 %2880
      %2882 = vrot.lane.b32.xlu0 %v2750, 32
      %v2883 = vpop.permute.xlu0 %2882
      %2884 = vrot.lane.b32.xlu0 %v2747, 32
      %v2885 = vpop.permute.xlu0 %2884
      %2886 = vrot.lane.b32.xlu0 %v2751, 32
      %v2887 = vpop.permute.xlu0 %2886
      %2888 = vrot.lane.b32.xlu0 %v2748, 32
      %v2889 = vpop.permute.xlu0 %2888
      %2890 = vrot.lane.b32.xlu0 %v2752, 32
      %v2891 = vpop.permute.xlu0 %2890
      %2892 = vrot.lane.b32.xlu0 %v2749, 32
      %v2893 = vpop.permute.xlu0 %2892
      %2894 = vrot.lane.b32.xlu0 %v2753, 32
      %v2895 = vpop.permute.xlu0 %2894
      %v2896 = vsel %vm1790, %v2889, %v2893
      %v2897 = vsel %vm1790, %v2891, %v2895
      %v2898 = vsel %vm1790, %v2885, %v2889
      %v2899 = vsel %vm1790, %v2887, %v2891
      %v2900 = vsel %vm1790, %v2881, %v2885
      %v2901 = vsel %vm1790, %v2883, %v2887
      %v2902 = vsel %vm1790, %v2893, %v2881
      %v2903 = vsel %vm1790, %v2895, %v2883
      %s2904 = scalar_lea.vmem %s12, 8
      %v2905 = vld [vmem:[%s2904] sm:$0xf]
      %v2907 = vlaneseq
      %v2908 = vshrl.u32 %v2907, 7
      %v2909 = vsub.s32 0, %v2908
      %v2910 = vrot.slane %v2905, %v2909
      %v2911 = vlaneseq
      %v2912 = vshrl.u32 %v2911, 7
      %v2913 = vsub.s32 1, %v2912
      %v2914 = vrot.slane %v2905, %v2913
      %v2915 = vlaneseq
      %v2916 = vshrl.u32 %v2915, 7
      %v2917 = vsub.s32 2, %v2916
      %v2918 = vrot.slane %v2905, %v2917
      %v2919 = vlaneseq
      %v2920 = vshrl.u32 %v2919, 7
      %v2921 = vsub.s32 3, %v2920
      %v2922 = vrot.slane %v2905, %v2921
      %v2927 = vmul.f32 %v2902, %v2910
      %v2928 = vmul.f32 %v2900, %v2914
      %v2929 = vmul.f32 %v2898, %v2918
      %v2930 = vmul.f32 %v2896, %v2922
      %v2931 = vmul.f32 %v2903, %v2910
      %v2932 = vmul.f32 %v2901, %v2914
      %v2933 = vmul.f32 %v2899, %v2918
      %v2934 = vmul.f32 %v2897, %v2922
      %v2935 = vadd.f32 %v2872, %v2927
      %v2936 = vadd.f32 %v2873, %v2928
      %v2937 = vadd.f32 %v2874, %v2929
      %v2938 = vadd.f32 %v2875, %v2930
      %v2939 = vadd.f32 %v2876, %v2931
      %v2940 = vadd.f32 %v2877, %v2932
      %v2941 = vadd.f32 %v2878, %v2933
      %v2942 = vadd.f32 %v2879, %v2934
      %2943 = vrot.lane.b32.xlu0 %v2746, 31
      %v2944 = vpop.permute.xlu0 %2943
      %2945 = vrot.lane.b32.xlu0 %v2750, 31
      %v2946 = vpop.permute.xlu0 %2945
      %2947 = vrot.lane.b32.xlu0 %v2747, 31
      %v2948 = vpop.permute.xlu0 %2947
      %2949 = vrot.lane.b32.xlu0 %v2751, 31
      %v2950 = vpop.permute.xlu0 %2949
      %2951 = vrot.lane.b32.xlu0 %v2748, 31
      %v2952 = vpop.permute.xlu0 %2951
      %2953 = vrot.lane.b32.xlu0 %v2752, 31
      %v2954 = vpop.permute.xlu0 %2953
      %2955 = vrot.lane.b32.xlu0 %v2749, 31
      %v2956 = vpop.permute.xlu0 %2955
      %2957 = vrot.lane.b32.xlu0 %v2753, 31
      %v2958 = vpop.permute.xlu0 %2957
      %vm2959 = vcmp.lt.s32.totalorder %v454, 31
      %v2960 = vsel %vm2959, %v2952, %v2956
      %v2961 = vsel %vm2959, %v2954, %v2958
      %v2962 = vsel %vm2959, %v2948, %v2952
      %v2963 = vsel %vm2959, %v2950, %v2954
      %v2964 = vsel %vm2959, %v2944, %v2948
      %v2965 = vsel %vm2959, %v2946, %v2950
      %v2966 = vsel %vm2959, %v2956, %v2944
      %v2967 = vsel %vm2959, %v2958, %v2946
      %s2968 = scalar_lea.vmem %s12, 12
      %v2969 = vld [vmem:[%s2968] sm:$0xf]
      %v2971 = vlaneseq
      %v2972 = vshrl.u32 %v2971, 7
      %v2973 = vsub.s32 0, %v2972
      %v2974 = vrot.slane %v2969, %v2973
      %v2975 = vlaneseq
      %v2976 = vshrl.u32 %v2975, 7
      %v2977 = vsub.s32 1, %v2976
      %v2978 = vrot.slane %v2969, %v2977
      %v2979 = vlaneseq
      %v2980 = vshrl.u32 %v2979, 7
      %v2981 = vsub.s32 2, %v2980
      %v2982 = vrot.slane %v2969, %v2981
      %v2983 = vlaneseq
      %v2984 = vshrl.u32 %v2983, 7
      %v2985 = vsub.s32 3, %v2984
      %v2986 = vrot.slane %v2969, %v2985
      %v2991 = vmul.f32 %v2966, %v2974
      %v2992 = vmul.f32 %v2964, %v2978
      %v2993 = vmul.f32 %v2962, %v2982
      %v2994 = vmul.f32 %v2960, %v2986
      %v2995 = vmul.f32 %v2967, %v2974
      %v2996 = vmul.f32 %v2965, %v2978
      %v2997 = vmul.f32 %v2963, %v2982
      %v2998 = vmul.f32 %v2961, %v2986
      %v2999 = vadd.f32 %v2935, %v2991
      %v3000 = vadd.f32 %v2936, %v2992
      %v3001 = vadd.f32 %v2937, %v2993
      %v3002 = vadd.f32 %v2938, %v2994
      %v3003 = vadd.f32 %v2939, %v2995
      %v3004 = vadd.f32 %v2940, %v2996
      %v3005 = vadd.f32 %v2941, %v2997
      %v3006 = vadd.f32 %v2942, %v2998
      %3007 = vrot.lane.b32.xlu0 %v2746, 18
      %v3008 = vpop.permute.xlu0 %3007
      %3009 = vrot.lane.b32.xlu0 %v2750, 18
      %v3010 = vpop.permute.xlu0 %3009
      %3011 = vrot.lane.b32.xlu0 %v2747, 18
      %v3012 = vpop.permute.xlu0 %3011
      %3013 = vrot.lane.b32.xlu0 %v2751, 18
      %v3014 = vpop.permute.xlu0 %3013
      %3015 = vrot.lane.b32.xlu0 %v2748, 18
      %v3016 = vpop.permute.xlu0 %3015
      %3017 = vrot.lane.b32.xlu0 %v2752, 18
      %v3018 = vpop.permute.xlu0 %3017
      %3019 = vrot.lane.b32.xlu0 %v2749, 18
      %v3020 = vpop.permute.xlu0 %3019
      %3021 = vrot.lane.b32.xlu0 %v2753, 18
      %v3022 = vpop.permute.xlu0 %3021
      %vm3023 = vcmp.lt.s32.totalorder %v454, 18
      %v3024 = vsel %vm3023, %v3016, %v3020
      %v3025 = vsel %vm3023, %v3018, %v3022
      %v3026 = vsel %vm3023, %v3012, %v3016
      %v3027 = vsel %vm3023, %v3014, %v3018
      %v3028 = vsel %vm3023, %v3008, %v3012
      %v3029 = vsel %vm3023, %v3010, %v3014
      %v3030 = vsel %vm3023, %v3020, %v3008
      %v3031 = vsel %vm3023, %v3022, %v3010
      %s3032 = scalar_lea.vmem %s12, 16
      %v3033 = vld [vmem:[%s3032] sm:$0xf]
      %v3035 = vlaneseq
      %v3036 = vshrl.u32 %v3035, 7
      %v3037 = vsub.s32 0, %v3036
      %v3038 = vrot.slane %v3033, %v3037
      %v3039 = vlaneseq
      %v3040 = vshrl.u32 %v3039, 7
      %v3041 = vsub.s32 1, %v3040
      %v3042 = vrot.slane %v3033, %v3041
      %v3043 = vlaneseq
      %v3044 = vshrl.u32 %v3043, 7
      %v3045 = vsub.s32 2, %v3044
      %v3046 = vrot.slane %v3033, %v3045
      %v3047 = vlaneseq
      %v3048 = vshrl.u32 %v3047, 7
      %v3049 = vsub.s32 3, %v3048
      %v3050 = vrot.slane %v3033, %v3049
      %v3055 = vmul.f32 %v3030, %v3038
      %v3056 = vmul.f32 %v3028, %v3042
      %v3057 = vmul.f32 %v3026, %v3046
      %v3058 = vmul.f32 %v3024, %v3050
      %v3059 = vmul.f32 %v3031, %v3038
      %v3060 = vmul.f32 %v3029, %v3042
      %v3061 = vmul.f32 %v3027, %v3046
      %v3062 = vmul.f32 %v3025, %v3050
      %v3063 = vadd.f32 %v2999, %v3055
      %v3064 = vadd.f32 %v3000, %v3056
      %v3065 = vadd.f32 %v3001, %v3057
      %v3066 = vadd.f32 %v3002, %v3058
      %v3067 = vadd.f32 %v3003, %v3059
      %v3068 = vadd.f32 %v3004, %v3060
      %v3069 = vadd.f32 %v3005, %v3061
      %v3070 = vadd.f32 %v3006, %v3062
      %3071 = vrot.lane.b32.xlu0 %v2746, 17
      %v3072 = vpop.permute.xlu0 %3071
      %3073 = vrot.lane.b32.xlu0 %v2750, 17
      %v3074 = vpop.permute.xlu0 %3073
      %3075 = vrot.lane.b32.xlu0 %v2747, 17
      %v3076 = vpop.permute.xlu0 %3075
      %3077 = vrot.lane.b32.xlu0 %v2751, 17
      %v3078 = vpop.permute.xlu0 %3077
      %3079 = vrot.lane.b32.xlu0 %v2748, 17
      %v3080 = vpop.permute.xlu0 %3079
      %3081 = vrot.lane.b32.xlu0 %v2752, 17
      %v3082 = vpop.permute.xlu0 %3081
      %3083 = vrot.lane.b32.xlu0 %v2749, 17
      %v3084 = vpop.permute.xlu0 %3083
      %3085 = vrot.lane.b32.xlu0 %v2753, 17
      %v3086 = vpop.permute.xlu0 %3085
      %v3087 = vsel %vm455, %v3080, %v3084
      %v3088 = vsel %vm455, %v3082, %v3086
      %v3089 = vsel %vm455, %v3076, %v3080
      %v3090 = vsel %vm455, %v3078, %v3082
      %v3091 = vsel %vm455, %v3072, %v3076
      %v3092 = vsel %vm455, %v3074, %v3078
      %v3093 = vsel %vm455, %v3084, %v3072
      %v3094 = vsel %vm455, %v3086, %v3074
      %s3095 = scalar_lea.vmem %s12, 20
      %v3096 = vld [vmem:[%s3095] sm:$0xf]
      %v3098 = vlaneseq
      %v3099 = vshrl.u32 %v3098, 7
      %v3100 = vsub.s32 0, %v3099
      %v3101 = vrot.slane %v3096, %v3100
      %v3102 = vlaneseq
      %v3103 = vshrl.u32 %v3102, 7
      %v3104 = vsub.s32 1, %v3103
      %v3105 = vrot.slane %v3096, %v3104
      %v3106 = vlaneseq
      %v3107 = vshrl.u32 %v3106, 7
      %v3108 = vsub.s32 2, %v3107
      %v3109 = vrot.slane %v3096, %v3108
      %v3110 = vlaneseq
      %v3111 = vshrl.u32 %v3110, 7
      %v3112 = vsub.s32 3, %v3111
      %v3113 = vrot.slane %v3096, %v3112
      %v3118 = vmul.f32 %v3093, %v3101
      %v3119 = vmul.f32 %v3091, %v3105
      %v3120 = vmul.f32 %v3089, %v3109
      %v3121 = vmul.f32 %v3087, %v3113
      %v3122 = vmul.f32 %v3094, %v3101
      %v3123 = vmul.f32 %v3092, %v3105
      %v3124 = vmul.f32 %v3090, %v3109
      %v3125 = vmul.f32 %v3088, %v3113
      %v3126 = vadd.f32 %v3063, %v3118
      %v3127 = vadd.f32 %v3064, %v3119
      %v3128 = vadd.f32 %v3065, %v3120
      %v3129 = vadd.f32 %v3066, %v3121
      %v3130 = vadd.f32 %v3067, %v3122
      %v3131 = vadd.f32 %v3068, %v3123
      %v3132 = vadd.f32 %v3069, %v3124
      %v3133 = vadd.f32 %v3070, %v3125
      %3134 = vrot.lane.b32.xlu0 %v2746, 16
      %v3135 = vpop.permute.xlu0 %3134
      %3136 = vrot.lane.b32.xlu0 %v2750, 16
      %v3137 = vpop.permute.xlu0 %3136
      %3138 = vrot.lane.b32.xlu0 %v2747, 16
      %v3139 = vpop.permute.xlu0 %3138
      %3140 = vrot.lane.b32.xlu0 %v2751, 16
      %v3141 = vpop.permute.xlu0 %3140
      %3142 = vrot.lane.b32.xlu0 %v2748, 16
      %v3143 = vpop.permute.xlu0 %3142
      %3144 = vrot.lane.b32.xlu0 %v2752, 16
      %v3145 = vpop.permute.xlu0 %3144
      %3146 = vrot.lane.b32.xlu0 %v2749, 16
      %v3147 = vpop.permute.xlu0 %3146
      %3148 = vrot.lane.b32.xlu0 %v2753, 16
      %v3149 = vpop.permute.xlu0 %3148
      %v3150 = vsel %vm494, %v3143, %v3147
      %v3151 = vsel %vm494, %v3145, %v3149
      %v3152 = vsel %vm494, %v3139, %v3143
      %v3153 = vsel %vm494, %v3141, %v3145
      %v3154 = vsel %vm494, %v3135, %v3139
      %v3155 = vsel %vm494, %v3137, %v3141
      %v3156 = vsel %vm494, %v3147, %v3135
      %v3157 = vsel %vm494, %v3149, %v3137
      %s3158 = scalar_lea.vmem %s12, 24
      %v3159 = vld [vmem:[%s3158] sm:$0xf]
      %v3161 = vlaneseq
      %v3162 = vshrl.u32 %v3161, 7
      %v3163 = vsub.s32 0, %v3162
      %v3164 = vrot.slane %v3159, %v3163
      %v3165 = vlaneseq
      %v3166 = vshrl.u32 %v3165, 7
      %v3167 = vsub.s32 1, %v3166
      %v3168 = vrot.slane %v3159, %v3167
      %v3169 = vlaneseq
      %v3170 = vshrl.u32 %v3169, 7
      %v3171 = vsub.s32 2, %v3170
      %v3172 = vrot.slane %v3159, %v3171
      %v3173 = vlaneseq
      %v3174 = vshrl.u32 %v3173, 7
      %v3175 = vsub.s32 3, %v3174
      %v3176 = vrot.slane %v3159, %v3175
      %v3181 = vmul.f32 %v3156, %v3164
      %v3182 = vmul.f32 %v3154, %v3168
      %v3183 = vmul.f32 %v3152, %v3172
      %v3184 = vmul.f32 %v3150, %v3176
      %v3185 = vmul.f32 %v3157, %v3164
      %v3186 = vmul.f32 %v3155, %v3168
      %v3187 = vmul.f32 %v3153, %v3172
      %v3188 = vmul.f32 %v3151, %v3176
      %v3189 = vadd.f32 %v3126, %v3181
      %v3190 = vadd.f32 %v3127, %v3182
      %v3191 = vadd.f32 %v3128, %v3183
      %v3192 = vadd.f32 %v3129, %v3184
      %v3193 = vadd.f32 %v3130, %v3185
      %v3194 = vadd.f32 %v3131, %v3186
      %v3195 = vadd.f32 %v3132, %v3187
      %v3196 = vadd.f32 %v3133, %v3188
      %3197 = vrot.lane.b32.xlu0 %v2746, 15
      %v3198 = vpop.permute.xlu0 %3197
      %3199 = vrot.lane.b32.xlu0 %v2750, 15
      %v3200 = vpop.permute.xlu0 %3199
      %3201 = vrot.lane.b32.xlu0 %v2747, 15
      %v3202 = vpop.permute.xlu0 %3201
      %3203 = vrot.lane.b32.xlu0 %v2751, 15
      %v3204 = vpop.permute.xlu0 %3203
      %3205 = vrot.lane.b32.xlu0 %v2748, 15
      %v3206 = vpop.permute.xlu0 %3205
      %3207 = vrot.lane.b32.xlu0 %v2752, 15
      %v3208 = vpop.permute.xlu0 %3207
      %3209 = vrot.lane.b32.xlu0 %v2749, 15
      %v3210 = vpop.permute.xlu0 %3209
      %3211 = vrot.lane.b32.xlu0 %v2753, 15
      %v3212 = vpop.permute.xlu0 %3211
      %v3213 = vsel %vm534, %v3206, %v3210
      %v3214 = vsel %vm534, %v3208, %v3212
      %v3215 = vsel %vm534, %v3202, %v3206
      %v3216 = vsel %vm534, %v3204, %v3208
      %v3217 = vsel %vm534, %v3198, %v3202
      %v3218 = vsel %vm534, %v3200, %v3204
      %v3219 = vsel %vm534, %v3210, %v3198
      %v3220 = vsel %vm534, %v3212, %v3200
      %s3221 = scalar_lea.vmem %s12, 28
      %v3222 = vld [vmem:[%s3221] sm:$0xf]
      %v3224 = vlaneseq
      %v3225 = vshrl.u32 %v3224, 7
      %v3226 = vsub.s32 0, %v3225
      %v3227 = vrot.slane %v3222, %v3226
      %v3228 = vlaneseq
      %v3229 = vshrl.u32 %v3228, 7
      %v3230 = vsub.s32 1, %v3229
      %v3231 = vrot.slane %v3222, %v3230
      %v3232 = vlaneseq
      %v3233 = vshrl.u32 %v3232, 7
      %v3234 = vsub.s32 2, %v3233
      %v3235 = vrot.slane %v3222, %v3234
      %v3236 = vlaneseq
      %v3237 = vshrl.u32 %v3236, 7
      %v3238 = vsub.s32 3, %v3237
      %v3239 = vrot.slane %v3222, %v3238
      %v3244 = vmul.f32 %v3219, %v3227
      %v3245 = vmul.f32 %v3217, %v3231
      %v3246 = vmul.f32 %v3215, %v3235
      %v3247 = vmul.f32 %v3213, %v3239
      %v3248 = vmul.f32 %v3220, %v3227
      %v3249 = vmul.f32 %v3218, %v3231
      %v3250 = vmul.f32 %v3216, %v3235
      %v3251 = vmul.f32 %v3214, %v3239
      %v3252 = vadd.f32 %v3189, %v3244
      %v3253 = vadd.f32 %v3190, %v3245
      %v3254 = vadd.f32 %v3191, %v3246
      %v3255 = vadd.f32 %v3192, %v3247
      %v3256 = vadd.f32 %v3193, %v3248
      %v3257 = vadd.f32 %v3194, %v3249
      %v3258 = vadd.f32 %v3195, %v3250
      %v3259 = vadd.f32 %v3196, %v3251
      %3260 = vrot.lane.b32.xlu0 %v2746, 2
      %v3261 = vpop.permute.xlu0 %3260
      %3262 = vrot.lane.b32.xlu0 %v2750, 2
      %v3263 = vpop.permute.xlu0 %3262
      %3264 = vrot.lane.b32.xlu0 %v2747, 2
      %v3265 = vpop.permute.xlu0 %3264
      %3266 = vrot.lane.b32.xlu0 %v2751, 2
      %v3267 = vpop.permute.xlu0 %3266
      %3268 = vrot.lane.b32.xlu0 %v2748, 2
      %v3269 = vpop.permute.xlu0 %3268
      %3270 = vrot.lane.b32.xlu0 %v2752, 2
      %v3271 = vpop.permute.xlu0 %3270
      %3272 = vrot.lane.b32.xlu0 %v2749, 2
      %v3273 = vpop.permute.xlu0 %3272
      %3274 = vrot.lane.b32.xlu0 %v2753, 2
      %v3275 = vpop.permute.xlu0 %3274
      %v3276 = vsel %vm1966, %v3269, %v3273
      %v3277 = vsel %vm1966, %v3271, %v3275
      %v3278 = vsel %vm1966, %v3265, %v3269
      %v3279 = vsel %vm1966, %v3267, %v3271
      %v3280 = vsel %vm1966, %v3261, %v3265
      %v3281 = vsel %vm1966, %v3263, %v3267
      %v3282 = vsel %vm1966, %v3273, %v3261
      %v3283 = vsel %vm1966, %v3275, %v3263
      %s3284 = scalar_lea.vmem %s12, 32
      %v3285 = vld [vmem:[%s3284] sm:$0xf]
      %v3287 = vlaneseq
      %v3288 = vshrl.u32 %v3287, 7
      %v3289 = vsub.s32 0, %v3288
      %v3290 = vrot.slane %v3285, %v3289
      %v3291 = vlaneseq
      %v3292 = vshrl.u32 %v3291, 7
      %v3293 = vsub.s32 1, %v3292
      %v3294 = vrot.slane %v3285, %v3293
      %v3295 = vlaneseq
      %v3296 = vshrl.u32 %v3295, 7
      %v3297 = vsub.s32 2, %v3296
      %v3298 = vrot.slane %v3285, %v3297
      %v3299 = vlaneseq
      %v3300 = vshrl.u32 %v3299, 7
      %v3301 = vsub.s32 3, %v3300
      %v3302 = vrot.slane %v3285, %v3301
      %v3307 = vmul.f32 %v3282, %v3290
      %v3308 = vmul.f32 %v3280, %v3294
      %v3309 = vmul.f32 %v3278, %v3298
      %v3310 = vmul.f32 %v3276, %v3302
      %v3311 = vmul.f32 %v3283, %v3290
      %v3312 = vmul.f32 %v3281, %v3294
      %v3313 = vmul.f32 %v3279, %v3298
      %v3314 = vmul.f32 %v3277, %v3302
      %v3315 = vadd.f32 %v3252, %v3307
      %v3316 = vadd.f32 %v3253, %v3308
      %v3317 = vadd.f32 %v3254, %v3309
      %v3318 = vadd.f32 %v3255, %v3310
      %v3319 = vadd.f32 %v3256, %v3311
      %v3320 = vadd.f32 %v3257, %v3312
      %v3321 = vadd.f32 %v3258, %v3313
      %v3322 = vadd.f32 %v3259, %v3314
      %3323 = vrot.lane.b32.xlu0 %v2746, 1
      %v3324 = vpop.permute.xlu0 %3323
      %3325 = vrot.lane.b32.xlu0 %v2750, 1
      %v3326 = vpop.permute.xlu0 %3325
      %3327 = vrot.lane.b32.xlu0 %v2747, 1
      %v3328 = vpop.permute.xlu0 %3327
      %3329 = vrot.lane.b32.xlu0 %v2751, 1
      %v3330 = vpop.permute.xlu0 %3329
      %3331 = vrot.lane.b32.xlu0 %v2748, 1
      %v3332 = vpop.permute.xlu0 %3331
      %3333 = vrot.lane.b32.xlu0 %v2752, 1
      %v3334 = vpop.permute.xlu0 %3333
      %3335 = vrot.lane.b32.xlu0 %v2749, 1
      %v3336 = vpop.permute.xlu0 %3335
      %3337 = vrot.lane.b32.xlu0 %v2753, 1
      %v3338 = vpop.permute.xlu0 %3337
      %v3339 = vsel %vm574, %v3332, %v3336
      %v3340 = vsel %vm574, %v3334, %v3338
      %v3341 = vsel %vm574, %v3328, %v3332
      %v3342 = vsel %vm574, %v3330, %v3334
      %v3343 = vsel %vm574, %v3324, %v3328
      %v3344 = vsel %vm574, %v3326, %v3330
      %v3345 = vsel %vm574, %v3336, %v3324
      %v3346 = vsel %vm574, %v3338, %v3326
      %s3347 = scalar_lea.vmem %s12, 36
      %v3348 = vld [vmem:[%s3347] sm:$0xf]
      %v3350 = vlaneseq
      %v3351 = vshrl.u32 %v3350, 7
      %v3352 = vsub.s32 0, %v3351
      %v3353 = vrot.slane %v3348, %v3352
      %v3354 = vlaneseq
      %v3355 = vshrl.u32 %v3354, 7
      %v3356 = vsub.s32 1, %v3355
      %v3357 = vrot.slane %v3348, %v3356
      %v3358 = vlaneseq
      %v3359 = vshrl.u32 %v3358, 7
      %v3360 = vsub.s32 2, %v3359
      %v3361 = vrot.slane %v3348, %v3360
      %v3362 = vlaneseq
      %v3363 = vshrl.u32 %v3362, 7
      %v3364 = vsub.s32 3, %v3363
      %v3365 = vrot.slane %v3348, %v3364
      %v3370 = vmul.f32 %v3345, %v3353
      %v3371 = vmul.f32 %v3343, %v3357
      %v3372 = vmul.f32 %v3341, %v3361
      %v3373 = vmul.f32 %v3339, %v3365
      %v3374 = vmul.f32 %v3346, %v3353
      %v3375 = vmul.f32 %v3344, %v3357
      %v3376 = vmul.f32 %v3342, %v3361
      %v3377 = vmul.f32 %v3340, %v3365
      %v3378 = vadd.f32 %v3315, %v3370
      %v3379 = vadd.f32 %v3316, %v3371
      %v3380 = vadd.f32 %v3317, %v3372
      %v3381 = vadd.f32 %v3318, %v3373
      %v3382 = vadd.f32 %v3319, %v3374
      %v3383 = vadd.f32 %v3320, %v3375
      %v3384 = vadd.f32 %v3321, %v3376
      %v3385 = vadd.f32 %v3322, %v3377
      %s3386 = scalar_lea.vmem %s12, 40
      %v3387 = vld [vmem:[%s3386] sm:$0xf]
      %v3389 = vlaneseq
      %v3390 = vshrl.u32 %v3389, 7
      %v3391 = vsub.s32 0, %v3390
      %v3392 = vrot.slane %v3387, %v3391
      %v3393 = vlaneseq
      %v3394 = vshrl.u32 %v3393, 7
      %v3395 = vsub.s32 1, %v3394
      %v3396 = vrot.slane %v3387, %v3395
      %v3397 = vlaneseq
      %v3398 = vshrl.u32 %v3397, 7
      %v3399 = vsub.s32 2, %v3398
      %v3400 = vrot.slane %v3387, %v3399
      %v3401 = vlaneseq
      %v3402 = vshrl.u32 %v3401, 7
      %v3403 = vsub.s32 3, %v3402
      %v3404 = vrot.slane %v3387, %v3403
      %v3409 = vmul.f32 %v2746, %v3392
      %v3410 = vmul.f32 %v2747, %v3396
      %v3411 = vmul.f32 %v2748, %v3400
      %v3412 = vmul.f32 %v2749, %v3404
      %v3413 = vmul.f32 %v2750, %v3392
      %v3414 = vmul.f32 %v2751, %v3396
      %v3415 = vmul.f32 %v2752, %v3400
      %v3416 = vmul.f32 %v2753, %v3404
      %v3417 = vadd.f32 %v3378, %v3409
      %v3418 = vadd.f32 %v3379, %v3410
      %v3419 = vadd.f32 %v3380, %v3411
      %v3420 = vadd.f32 %v3381, %v3412
      %v3421 = vadd.f32 %v3382, %v3413
      %v3422 = vadd.f32 %v3383, %v3414
      %v3423 = vadd.f32 %v3384, %v3415
      %v3424 = vadd.f32 %v3385, %v3416
      %3425 = vrot.lane.b32.xlu0 %v2746, 127
      %v3426 = vpop.permute.xlu0 %3425
      %3427 = vrot.lane.b32.xlu0 %v2750, 127
      %v3428 = vpop.permute.xlu0 %3427
      %3429 = vrot.lane.b32.xlu0 %v2747, 127
      %v3430 = vpop.permute.xlu0 %3429
      %3431 = vrot.lane.b32.xlu0 %v2751, 127
      %v3432 = vpop.permute.xlu0 %3431
      %3433 = vrot.lane.b32.xlu0 %v2748, 127
      %v3434 = vpop.permute.xlu0 %3433
      %3435 = vrot.lane.b32.xlu0 %v2752, 127
      %v3436 = vpop.permute.xlu0 %3435
      %3437 = vrot.lane.b32.xlu0 %v2749, 127
      %v3438 = vpop.permute.xlu0 %3437
      %3439 = vrot.lane.b32.xlu0 %v2753, 127
      %v3440 = vpop.permute.xlu0 %3439
      %v3441 = vsel %vm641, %v3434, %v3438
      %v3442 = vsel %vm641, %v3436, %v3440
      %v3443 = vsel %vm641, %v3430, %v3434
      %v3444 = vsel %vm641, %v3432, %v3436
      %v3445 = vsel %vm641, %v3426, %v3430
      %v3446 = vsel %vm641, %v3428, %v3432
      %v3447 = vsel %vm641, %v3438, %v3426
      %v3448 = vsel %vm641, %v3440, %v3428
      %s3449 = scalar_lea.vmem %s12, 44
      %v3450 = vld [vmem:[%s3449] sm:$0xf]
      %v3452 = vlaneseq
      %v3453 = vshrl.u32 %v3452, 7
      %v3454 = vsub.s32 0, %v3453
      %v3455 = vrot.slane %v3450, %v3454
      %v3456 = vlaneseq
      %v3457 = vshrl.u32 %v3456, 7
      %v3458 = vsub.s32 1, %v3457
      %v3459 = vrot.slane %v3450, %v3458
      %v3460 = vlaneseq
      %v3461 = vshrl.u32 %v3460, 7
      %v3462 = vsub.s32 2, %v3461
      %v3463 = vrot.slane %v3450, %v3462
      %v3464 = vlaneseq
      %v3465 = vshrl.u32 %v3464, 7
      %v3466 = vsub.s32 3, %v3465
      %v3467 = vrot.slane %v3450, %v3466
      %v3472 = vmul.f32 %v3445, %v3455
      %v3473 = vmul.f32 %v3443, %v3459
      %v3474 = vmul.f32 %v3441, %v3463
      %v3475 = vmul.f32 %v3447, %v3467
      %v3476 = vmul.f32 %v3446, %v3455
      %v3477 = vmul.f32 %v3444, %v3459
      %v3478 = vmul.f32 %v3442, %v3463
      %v3479 = vmul.f32 %v3448, %v3467
      %v3480 = vadd.f32 %v3417, %v3472
      %v3481 = vadd.f32 %v3418, %v3473
      %v3482 = vadd.f32 %v3419, %v3474
      %v3483 = vadd.f32 %v3420, %v3475
      %v3484 = vadd.f32 %v3421, %v3476
      %v3485 = vadd.f32 %v3422, %v3477
      %v3486 = vadd.f32 %v3423, %v3478
      %v3487 = vadd.f32 %v3424, %v3479
      %3488 = vrot.lane.b32.xlu0 %v2746, 114
      %v3489 = vpop.permute.xlu0 %3488
      %3490 = vrot.lane.b32.xlu0 %v2750, 114
      %v3491 = vpop.permute.xlu0 %3490
      %3492 = vrot.lane.b32.xlu0 %v2747, 114
      %v3493 = vpop.permute.xlu0 %3492
      %3494 = vrot.lane.b32.xlu0 %v2751, 114
      %v3495 = vpop.permute.xlu0 %3494
      %3496 = vrot.lane.b32.xlu0 %v2748, 114
      %v3497 = vpop.permute.xlu0 %3496
      %3498 = vrot.lane.b32.xlu0 %v2752, 114
      %v3499 = vpop.permute.xlu0 %3498
      %3500 = vrot.lane.b32.xlu0 %v2749, 114
      %v3501 = vpop.permute.xlu0 %3500
      %3502 = vrot.lane.b32.xlu0 %v2753, 114
      %v3503 = vpop.permute.xlu0 %3502
      %vm3504 = vcmp.lt.s32.totalorder %v454, 114
      %v3505 = vsel %vm3504, %v3497, %v3501
      %v3506 = vsel %vm3504, %v3499, %v3503
      %v3507 = vsel %vm3504, %v3493, %v3497
      %v3508 = vsel %vm3504, %v3495, %v3499
      %v3509 = vsel %vm3504, %v3489, %v3493
      %v3510 = vsel %vm3504, %v3491, %v3495
      %v3511 = vsel %vm3504, %v3501, %v3489
      %v3512 = vsel %vm3504, %v3503, %v3491
      %s3513 = scalar_lea.vmem %s12, 48
      %v3514 = vld [vmem:[%s3513] sm:$0xf]
      %v3516 = vlaneseq
      %v3517 = vshrl.u32 %v3516, 7
      %v3518 = vsub.s32 0, %v3517
      %v3519 = vrot.slane %v3514, %v3518
      %v3520 = vlaneseq
      %v3521 = vshrl.u32 %v3520, 7
      %v3522 = vsub.s32 1, %v3521
      %v3523 = vrot.slane %v3514, %v3522
      %v3524 = vlaneseq
      %v3525 = vshrl.u32 %v3524, 7
      %v3526 = vsub.s32 2, %v3525
      %v3527 = vrot.slane %v3514, %v3526
      %v3528 = vlaneseq
      %v3529 = vshrl.u32 %v3528, 7
      %v3530 = vsub.s32 3, %v3529
      %v3531 = vrot.slane %v3514, %v3530
      %v3536 = vmul.f32 %v3509, %v3519
      %v3537 = vmul.f32 %v3507, %v3523
      %v3538 = vmul.f32 %v3505, %v3527
      %v3539 = vmul.f32 %v3511, %v3531
      %v3540 = vmul.f32 %v3510, %v3519
      %v3541 = vmul.f32 %v3508, %v3523
      %v3542 = vmul.f32 %v3506, %v3527
      %v3543 = vmul.f32 %v3512, %v3531
      %v3544 = vadd.f32 %v3480, %v3536
      %v3545 = vadd.f32 %v3481, %v3537
      %v3546 = vadd.f32 %v3482, %v3538
      %v3547 = vadd.f32 %v3483, %v3539
      %v3548 = vadd.f32 %v3484, %v3540
      %v3549 = vadd.f32 %v3485, %v3541
      %v3550 = vadd.f32 %v3486, %v3542
      %v3551 = vadd.f32 %v3487, %v3543
      %3552 = vrot.lane.b32.xlu0 %v2746, 113
      %v3553 = vpop.permute.xlu0 %3552
      %3554 = vrot.lane.b32.xlu0 %v2750, 113
      %v3555 = vpop.permute.xlu0 %3554
      %3556 = vrot.lane.b32.xlu0 %v2747, 113
      %v3557 = vpop.permute.xlu0 %3556
      %3558 = vrot.lane.b32.xlu0 %v2751, 113
      %v3559 = vpop.permute.xlu0 %3558
      %3560 = vrot.lane.b32.xlu0 %v2748, 113
      %v3561 = vpop.permute.xlu0 %3560
      %3562 = vrot.lane.b32.xlu0 %v2752, 113
      %v3563 = vpop.permute.xlu0 %3562
      %3564 = vrot.lane.b32.xlu0 %v2749, 113
      %v3565 = vpop.permute.xlu0 %3564
      %3566 = vrot.lane.b32.xlu0 %v2753, 113
      %v3567 = vpop.permute.xlu0 %3566
      %v3568 = vsel %vm681, %v3561, %v3565
      %v3569 = vsel %vm681, %v3563, %v3567
      %v3570 = vsel %vm681, %v3557, %v3561
      %v3571 = vsel %vm681, %v3559, %v3563
      %v3572 = vsel %vm681, %v3553, %v3557
      %v3573 = vsel %vm681, %v3555, %v3559
      %v3574 = vsel %vm681, %v3565, %v3553
      %v3575 = vsel %vm681, %v3567, %v3555
      %s3576 = scalar_lea.vmem %s12, 52
      %v3577 = vld [vmem:[%s3576] sm:$0xf]
      %v3579 = vlaneseq
      %v3580 = vshrl.u32 %v3579, 7
      %v3581 = vsub.s32 0, %v3580
      %v3582 = vrot.slane %v3577, %v3581
      %v3583 = vlaneseq
      %v3584 = vshrl.u32 %v3583, 7
      %v3585 = vsub.s32 1, %v3584
      %v3586 = vrot.slane %v3577, %v3585
      %v3587 = vlaneseq
      %v3588 = vshrl.u32 %v3587, 7
      %v3589 = vsub.s32 2, %v3588
      %v3590 = vrot.slane %v3577, %v3589
      %v3591 = vlaneseq
      %v3592 = vshrl.u32 %v3591, 7
      %v3593 = vsub.s32 3, %v3592
      %v3594 = vrot.slane %v3577, %v3593
      %v3599 = vmul.f32 %v3572, %v3582
      %v3600 = vmul.f32 %v3570, %v3586
      %v3601 = vmul.f32 %v3568, %v3590
      %v3602 = vmul.f32 %v3574, %v3594
      %v3603 = vmul.f32 %v3573, %v3582
      %v3604 = vmul.f32 %v3571, %v3586
      %v3605 = vmul.f32 %v3569, %v3590
      %v3606 = vmul.f32 %v3575, %v3594
      %v3607 = vadd.f32 %v3544, %v3599
      %v3608 = vadd.f32 %v3545, %v3600
      %v3609 = vadd.f32 %v3546, %v3601
      %v3610 = vadd.f32 %v3547, %v3602
      %v3611 = vadd.f32 %v3548, %v3603
      %v3612 = vadd.f32 %v3549, %v3604
      %v3613 = vadd.f32 %v3550, %v3605
      %v3614 = vadd.f32 %v3551, %v3606
      %3615 = vrot.lane.b32.xlu0 %v2746, 112
      %v3616 = vpop.permute.xlu0 %3615
      %3617 = vrot.lane.b32.xlu0 %v2750, 112
      %v3618 = vpop.permute.xlu0 %3617
      %3619 = vrot.lane.b32.xlu0 %v2747, 112
      %v3620 = vpop.permute.xlu0 %3619
      %3621 = vrot.lane.b32.xlu0 %v2751, 112
      %v3622 = vpop.permute.xlu0 %3621
      %3623 = vrot.lane.b32.xlu0 %v2748, 112
      %v3624 = vpop.permute.xlu0 %3623
      %3625 = vrot.lane.b32.xlu0 %v2752, 112
      %v3626 = vpop.permute.xlu0 %3625
      %3627 = vrot.lane.b32.xlu0 %v2749, 112
      %v3628 = vpop.permute.xlu0 %3627
      %3629 = vrot.lane.b32.xlu0 %v2753, 112
      %v3630 = vpop.permute.xlu0 %3629
      %v3631 = vsel %vm721, %v3624, %v3628
      %v3632 = vsel %vm721, %v3626, %v3630
      %v3633 = vsel %vm721, %v3620, %v3624
      %v3634 = vsel %vm721, %v3622, %v3626
      %v3635 = vsel %vm721, %v3616, %v3620
      %v3636 = vsel %vm721, %v3618, %v3622
      %v3637 = vsel %vm721, %v3628, %v3616
      %v3638 = vsel %vm721, %v3630, %v3618
      %s3639 = scalar_lea.vmem %s12, 56
      %v3640 = vld [vmem:[%s3639] sm:$0xf]
      %v3642 = vlaneseq
      %v3643 = vshrl.u32 %v3642, 7
      %v3644 = vsub.s32 0, %v3643
      %v3645 = vrot.slane %v3640, %v3644
      %v3646 = vlaneseq
      %v3647 = vshrl.u32 %v3646, 7
      %v3648 = vsub.s32 1, %v3647
      %v3649 = vrot.slane %v3640, %v3648
      %v3650 = vlaneseq
      %v3651 = vshrl.u32 %v3650, 7
      %v3652 = vsub.s32 2, %v3651
      %v3653 = vrot.slane %v3640, %v3652
      %v3654 = vlaneseq
      %v3655 = vshrl.u32 %v3654, 7
      %v3656 = vsub.s32 3, %v3655
      %v3657 = vrot.slane %v3640, %v3656
      %v3662 = vmul.f32 %v3635, %v3645
      %v3663 = vmul.f32 %v3633, %v3649
      %v3664 = vmul.f32 %v3631, %v3653
      %v3665 = vmul.f32 %v3637, %v3657
      %v3666 = vmul.f32 %v3636, %v3645
      %v3667 = vmul.f32 %v3634, %v3649
      %v3668 = vmul.f32 %v3632, %v3653
      %v3669 = vmul.f32 %v3638, %v3657
      %v3670 = vadd.f32 %v3607, %v3662
      %v3671 = vadd.f32 %v3608, %v3663
      %v3672 = vadd.f32 %v3609, %v3664
      %v3673 = vadd.f32 %v3610, %v3665
      %v3674 = vadd.f32 %v3611, %v3666
      %v3675 = vadd.f32 %v3612, %v3667
      %v3676 = vadd.f32 %v3613, %v3668
      %v3677 = vadd.f32 %v3614, %v3669
      %3678 = vrot.lane.b32.xlu0 %v2746, 111
      %v3679 = vpop.permute.xlu0 %3678
      %3680 = vrot.lane.b32.xlu0 %v2750, 111
      %v3681 = vpop.permute.xlu0 %3680
      %3682 = vrot.lane.b32.xlu0 %v2747, 111
      %v3683 = vpop.permute.xlu0 %3682
      %3684 = vrot.lane.b32.xlu0 %v2751, 111
      %v3685 = vpop.permute.xlu0 %3684
      %3686 = vrot.lane.b32.xlu0 %v2748, 111
      %v3687 = vpop.permute.xlu0 %3686
      %3688 = vrot.lane.b32.xlu0 %v2752, 111
      %v3689 = vpop.permute.xlu0 %3688
      %3690 = vrot.lane.b32.xlu0 %v2749, 111
      %v3691 = vpop.permute.xlu0 %3690
      %3692 = vrot.lane.b32.xlu0 %v2753, 111
      %v3693 = vpop.permute.xlu0 %3692
      %v3694 = vsel %vm761, %v3687, %v3691
      %v3695 = vsel %vm761, %v3689, %v3693
      %v3696 = vsel %vm761, %v3683, %v3687
      %v3697 = vsel %vm761, %v3685, %v3689
      %v3698 = vsel %vm761, %v3679, %v3683
      %v3699 = vsel %vm761, %v3681, %v3685
      %v3700 = vsel %vm761, %v3691, %v3679
      %v3701 = vsel %vm761, %v3693, %v3681
      %s3702 = scalar_lea.vmem %s12, 60
      %v3703 = vld [vmem:[%s3702] sm:$0xf]
      %v3705 = vlaneseq
      %v3706 = vshrl.u32 %v3705, 7
      %v3707 = vsub.s32 0, %v3706
      %v3708 = vrot.slane %v3703, %v3707
      %v3709 = vlaneseq
      %v3710 = vshrl.u32 %v3709, 7
      %v3711 = vsub.s32 1, %v3710
      %v3712 = vrot.slane %v3703, %v3711
      %v3713 = vlaneseq
      %v3714 = vshrl.u32 %v3713, 7
      %v3715 = vsub.s32 2, %v3714
      %v3716 = vrot.slane %v3703, %v3715
      %v3717 = vlaneseq
      %v3718 = vshrl.u32 %v3717, 7
      %v3719 = vsub.s32 3, %v3718
      %v3720 = vrot.slane %v3703, %v3719
      %v3725 = vmul.f32 %v3698, %v3708
      %v3726 = vmul.f32 %v3696, %v3712
      %v3727 = vmul.f32 %v3694, %v3716
      %v3728 = vmul.f32 %v3700, %v3720
      %v3729 = vmul.f32 %v3699, %v3708
      %v3730 = vmul.f32 %v3697, %v3712
      %v3731 = vmul.f32 %v3695, %v3716
      %v3732 = vmul.f32 %v3701, %v3720
      %v3733 = vadd.f32 %v3670, %v3725
      %v3734 = vadd.f32 %v3671, %v3726
      %v3735 = vadd.f32 %v3672, %v3727
      %v3736 = vadd.f32 %v3673, %v3728
      %v3737 = vadd.f32 %v3674, %v3729
      %v3738 = vadd.f32 %v3675, %v3730
      %v3739 = vadd.f32 %v3676, %v3731
      %v3740 = vadd.f32 %v3677, %v3732
      %3741 = vrot.lane.b32.xlu0 %v3733, 34
      %v3742 = vpop.permute.xlu0 %3741
      %3743 = vrot.lane.b32.xlu0 %v3737, 34
      %v3744 = vpop.permute.xlu0 %3743
      %3745 = vrot.lane.b32.xlu0 %v3734, 34
      %v3746 = vpop.permute.xlu0 %3745
      %3747 = vrot.lane.b32.xlu0 %v3738, 34
      %v3748 = vpop.permute.xlu0 %3747
      %3749 = vrot.lane.b32.xlu0 %v3735, 34
      %v3750 = vpop.permute.xlu0 %3749
      %3751 = vrot.lane.b32.xlu0 %v3739, 34
      %v3752 = vpop.permute.xlu0 %3751
      %3753 = vrot.lane.b32.xlu0 %v3736, 34
      %v3754 = vpop.permute.xlu0 %3753
      %3755 = vrot.lane.b32.xlu0 %v3740, 34
      %v3756 = vpop.permute.xlu0 %3755
      %v3757 = vsel %vm1703, %v3750, %v3754
      %v3758 = vsel %vm1703, %v3752, %v3756
      %v3759 = vsel %vm1703, %v3746, %v3750
      %v3760 = vsel %vm1703, %v3748, %v3752
      %v3761 = vsel %vm1703, %v3742, %v3746
      %v3762 = vsel %vm1703, %v3744, %v3748
      %v3763 = vsel %vm1703, %v3754, %v3742
      %v3764 = vsel %vm1703, %v3756, %v3744
      %v3765 = vld [vmem:[%s11] sm:$0xf]
      %v3767 = vlaneseq
      %v3768 = vshrl.u32 %v3767, 7
      %v3769 = vsub.s32 0, %v3768
      %v3770 = vrot.slane %v3765, %v3769
      %v3771 = vlaneseq
      %v3772 = vshrl.u32 %v3771, 7
      %v3773 = vsub.s32 1, %v3772
      %v3774 = vrot.slane %v3765, %v3773
      %v3775 = vlaneseq
      %v3776 = vshrl.u32 %v3775, 7
      %v3777 = vsub.s32 2, %v3776
      %v3778 = vrot.slane %v3765, %v3777
      %v3779 = vlaneseq
      %v3780 = vshrl.u32 %v3779, 7
      %v3781 = vsub.s32 3, %v3780
      %v3782 = vrot.slane %v3765, %v3781
      %v3787 = vmul.f32 %v3763, %v3770
      %v3788 = vmul.f32 %v3761, %v3774
      %v3789 = vmul.f32 %v3759, %v3778
      %v3790 = vmul.f32 %v3757, %v3782
      %v3791 = vmul.f32 %v3764, %v3770
      %v3792 = vmul.f32 %v3762, %v3774
      %v3793 = vmul.f32 %v3760, %v3778
      %v3794 = vmul.f32 %v3758, %v3782
      %3795 = vrot.lane.b32.xlu0 %v3733, 33
      %v3796 = vpop.permute.xlu0 %3795
      %3797 = vrot.lane.b32.xlu0 %v3737, 33
      %v3798 = vpop.permute.xlu0 %3797
      %3799 = vrot.lane.b32.xlu0 %v3734, 33
      %v3800 = vpop.permute.xlu0 %3799
      %3801 = vrot.lane.b32.xlu0 %v3738, 33
      %v3802 = vpop.permute.xlu0 %3801
      %3803 = vrot.lane.b32.xlu0 %v3735, 33
      %v3804 = vpop.permute.xlu0 %3803
      %3805 = vrot.lane.b32.xlu0 %v3739, 33
      %v3806 = vpop.permute.xlu0 %3805
      %3807 = vrot.lane.b32.xlu0 %v3736, 33
      %v3808 = vpop.permute.xlu0 %3807
      %3809 = vrot.lane.b32.xlu0 %v3740, 33
      %v3810 = vpop.permute.xlu0 %3809
      %v3811 = vsel %vm2832, %v3804, %v3808
      %v3812 = vsel %vm2832, %v3806, %v3810
      %v3813 = vsel %vm2832, %v3800, %v3804
      %v3814 = vsel %vm2832, %v3802, %v3806
      %v3815 = vsel %vm2832, %v3796, %v3800
      %v3816 = vsel %vm2832, %v3798, %v3802
      %v3817 = vsel %vm2832, %v3808, %v3796
      %v3818 = vsel %vm2832, %v3810, %v3798
      %s3819 = scalar_lea.vmem %s11, 4
      %v3820 = vld [vmem:[%s3819] sm:$0xf]
      %v3822 = vlaneseq
      %v3823 = vshrl.u32 %v3822, 7
      %v3824 = vsub.s32 0, %v3823
      %v3825 = vrot.slane %v3820, %v3824
      %v3826 = vlaneseq
      %v3827 = vshrl.u32 %v3826, 7
      %v3828 = vsub.s32 1, %v3827
      %v3829 = vrot.slane %v3820, %v3828
      %v3830 = vlaneseq
      %v3831 = vshrl.u32 %v3830, 7
      %v3832 = vsub.s32 2, %v3831
      %v3833 = vrot.slane %v3820, %v3832
      %v3834 = vlaneseq
      %v3835 = vshrl.u32 %v3834, 7
      %v3836 = vsub.s32 3, %v3835
      %v3837 = vrot.slane %v3820, %v3836
      %v3842 = vmul.f32 %v3817, %v3825
      %v3843 = vmul.f32 %v3815, %v3829
      %v3844 = vmul.f32 %v3813, %v3833
      %v3845 = vmul.f32 %v3811, %v3837
      %v3846 = vmul.f32 %v3818, %v3825
      %v3847 = vmul.f32 %v3816, %v3829
      %v3848 = vmul.f32 %v3814, %v3833
      %v3849 = vmul.f32 %v3812, %v3837
      %3850 = vrot.lane.b32.xlu0 %v3733, 32
      %v3851 = vpop.permute.xlu0 %3850
      %3852 = vrot.lane.b32.xlu0 %v3737, 32
      %v3853 = vpop.permute.xlu0 %3852
      %3854 = vrot.lane.b32.xlu0 %v3734, 32
      %v3855 = vpop.permute.xlu0 %3854
      %3856 = vrot.lane.b32.xlu0 %v3738, 32
      %v3857 = vpop.permute.xlu0 %3856
      %3858 = vrot.lane.b32.xlu0 %v3735, 32
      %v3859 = vpop.permute.xlu0 %3858
      %3860 = vrot.lane.b32.xlu0 %v3739, 32
      %v3861 = vpop.permute.xlu0 %3860
      %3862 = vrot.lane.b32.xlu0 %v3736, 32
      %v3863 = vpop.permute.xlu0 %3862
      %3864 = vrot.lane.b32.xlu0 %v3740, 32
      %v3865 = vpop.permute.xlu0 %3864
      %v3866 = vsel %vm1790, %v3859, %v3863
      %v3867 = vsel %vm1790, %v3861, %v3865
      %v3868 = vsel %vm1790, %v3855, %v3859
      %v3869 = vsel %vm1790, %v3857, %v3861
      %v3870 = vsel %vm1790, %v3851, %v3855
      %v3871 = vsel %vm1790, %v3853, %v3857
      %v3872 = vsel %vm1790, %v3863, %v3851
      %v3873 = vsel %vm1790, %v3865, %v3853
      %s3874 = scalar_lea.vmem %s11, 8
      %v3875 = vld [vmem:[%s3874] sm:$0xf]
      %v3877 = vlaneseq
      %v3878 = vshrl.u32 %v3877, 7
      %v3879 = vsub.s32 0, %v3878
      %v3880 = vrot.slane %v3875, %v3879
      %v3881 = vlaneseq
      %v3882 = vshrl.u32 %v3881, 7
      %v3883 = vsub.s32 1, %v3882
      %v3884 = vrot.slane %v3875, %v3883
      %v3885 = vlaneseq
      %v3886 = vshrl.u32 %v3885, 7
      %v3887 = vsub.s32 2, %v3886
      %v3888 = vrot.slane %v3875, %v3887
      %v3889 = vlaneseq
      %v3890 = vshrl.u32 %v3889, 7
      %v3891 = vsub.s32 3, %v3890
      %v3892 = vrot.slane %v3875, %v3891
      %v3897 = vmul.f32 %v3872, %v3880
      %v3898 = vmul.f32 %v3870, %v3884
      %v3899 = vmul.f32 %v3868, %v3888
      %v3900 = vmul.f32 %v3866, %v3892
      %v3901 = vmul.f32 %v3873, %v3880
      %v3902 = vmul.f32 %v3871, %v3884
      %v3903 = vmul.f32 %v3869, %v3888
      %v3904 = vmul.f32 %v3867, %v3892
      %3905 = vrot.lane.b32.xlu0 %v3733, 31
      %v3906 = vpop.permute.xlu0 %3905
      %3907 = vrot.lane.b32.xlu0 %v3737, 31
      %v3908 = vpop.permute.xlu0 %3907
      %3909 = vrot.lane.b32.xlu0 %v3734, 31
      %v3910 = vpop.permute.xlu0 %3909
      %3911 = vrot.lane.b32.xlu0 %v3738, 31
      %v3912 = vpop.permute.xlu0 %3911
      %3913 = vrot.lane.b32.xlu0 %v3735, 31
      %v3914 = vpop.permute.xlu0 %3913
      %3915 = vrot.lane.b32.xlu0 %v3739, 31
      %v3916 = vpop.permute.xlu0 %3915
      %3917 = vrot.lane.b32.xlu0 %v3736, 31
      %v3918 = vpop.permute.xlu0 %3917
      %3919 = vrot.lane.b32.xlu0 %v3740, 31
      %v3920 = vpop.permute.xlu0 %3919
      %v3921 = vsel %vm2959, %v3914, %v3918
      %v3922 = vsel %vm2959, %v3916, %v3920
      %v3923 = vsel %vm2959, %v3910, %v3914
      %v3924 = vsel %vm2959, %v3912, %v3916
      %v3925 = vsel %vm2959, %v3906, %v3910
      %v3926 = vsel %vm2959, %v3908, %v3912
      %v3927 = vsel %vm2959, %v3918, %v3906
      %v3928 = vsel %vm2959, %v3920, %v3908
      %s3929 = scalar_lea.vmem %s11, 12
      %v3930 = vld [vmem:[%s3929] sm:$0xf]
      %v3932 = vlaneseq
      %v3933 = vshrl.u32 %v3932, 7
      %v3934 = vsub.s32 0, %v3933
      %v3935 = vrot.slane %v3930, %v3934
      %v3936 = vlaneseq
      %v3937 = vshrl.u32 %v3936, 7
      %v3938 = vsub.s32 1, %v3937
      %v3939 = vrot.slane %v3930, %v3938
      %v3940 = vlaneseq
      %v3941 = vshrl.u32 %v3940, 7
      %v3942 = vsub.s32 2, %v3941
      %v3943 = vrot.slane %v3930, %v3942
      %v3944 = vlaneseq
      %v3945 = vshrl.u32 %v3944, 7
      %v3946 = vsub.s32 3, %v3945
      %v3947 = vrot.slane %v3930, %v3946
      %v3952 = vmul.f32 %v3927, %v3935
      %v3953 = vmul.f32 %v3925, %v3939
      %v3954 = vmul.f32 %v3923, %v3943
      %v3955 = vmul.f32 %v3921, %v3947
      %v3956 = vmul.f32 %v3928, %v3935
      %v3957 = vmul.f32 %v3926, %v3939
      %v3958 = vmul.f32 %v3924, %v3943
      %v3959 = vmul.f32 %v3922, %v3947
      %3960 = vrot.lane.b32.xlu0 %v3733, 30
      %v3961 = vpop.permute.xlu0 %3960
      %3962 = vrot.lane.b32.xlu0 %v3737, 30
      %v3963 = vpop.permute.xlu0 %3962
      %3964 = vrot.lane.b32.xlu0 %v3734, 30
      %v3965 = vpop.permute.xlu0 %3964
      %3966 = vrot.lane.b32.xlu0 %v3738, 30
      %v3967 = vpop.permute.xlu0 %3966
      %3968 = vrot.lane.b32.xlu0 %v3735, 30
      %v3969 = vpop.permute.xlu0 %3968
      %3970 = vrot.lane.b32.xlu0 %v3739, 30
      %v3971 = vpop.permute.xlu0 %3970
      %3972 = vrot.lane.b32.xlu0 %v3736, 30
      %v3973 = vpop.permute.xlu0 %3972
      %3974 = vrot.lane.b32.xlu0 %v3740, 30
      %v3975 = vpop.permute.xlu0 %3974
      %v3976 = vsel %vm1878, %v3969, %v3973
      %v3977 = vsel %vm1878, %v3971, %v3975
      %v3978 = vsel %vm1878, %v3965, %v3969
      %v3979 = vsel %vm1878, %v3967, %v3971
      %v3980 = vsel %vm1878, %v3961, %v3965
      %v3981 = vsel %vm1878, %v3963, %v3967
      %v3982 = vsel %vm1878, %v3973, %v3961
      %v3983 = vsel %vm1878, %v3975, %v3963
      %s3984 = scalar_lea.vmem %s11, 16
      %v3985 = vld [vmem:[%s3984] sm:$0xf]
      %v3987 = vlaneseq
      %v3988 = vshrl.u32 %v3987, 7
      %v3989 = vsub.s32 0, %v3988
      %v3990 = vrot.slane %v3985, %v3989
      %v3991 = vlaneseq
      %v3992 = vshrl.u32 %v3991, 7
      %v3993 = vsub.s32 1, %v3992
      %v3994 = vrot.slane %v3985, %v3993
      %v3995 = vlaneseq
      %v3996 = vshrl.u32 %v3995, 7
      %v3997 = vsub.s32 2, %v3996
      %v3998 = vrot.slane %v3985, %v3997
      %v3999 = vlaneseq
      %v4000 = vshrl.u32 %v3999, 7
      %v4001 = vsub.s32 3, %v4000
      %v4002 = vrot.slane %v3985, %v4001
      %v4007 = vmul.f32 %v3982, %v3990
      %v4008 = vmul.f32 %v3980, %v3994
      %v4009 = vmul.f32 %v3978, %v3998
      %v4010 = vmul.f32 %v3976, %v4002
      %v4011 = vmul.f32 %v3983, %v3990
      %v4012 = vmul.f32 %v3981, %v3994
      %v4013 = vmul.f32 %v3979, %v3998
      %v4014 = vmul.f32 %v3977, %v4002
      %4015 = vrot.lane.b32.xlu0 %v3733, 18
      %v4016 = vpop.permute.xlu0 %4015
      %4017 = vrot.lane.b32.xlu0 %v3737, 18
      %v4018 = vpop.permute.xlu0 %4017
      %4019 = vrot.lane.b32.xlu0 %v3734, 18
      %v4020 = vpop.permute.xlu0 %4019
      %4021 = vrot.lane.b32.xlu0 %v3738, 18
      %v4022 = vpop.permute.xlu0 %4021
      %4023 = vrot.lane.b32.xlu0 %v3735, 18
      %v4024 = vpop.permute.xlu0 %4023
      %4025 = vrot.lane.b32.xlu0 %v3739, 18
      %v4026 = vpop.permute.xlu0 %4025
      %4027 = vrot.lane.b32.xlu0 %v3736, 18
      %v4028 = vpop.permute.xlu0 %4027
      %4029 = vrot.lane.b32.xlu0 %v3740, 18
      %v4030 = vpop.permute.xlu0 %4029
      %v4031 = vsel %vm3023, %v4024, %v4028
      %v4032 = vsel %vm3023, %v4026, %v4030
      %v4033 = vsel %vm3023, %v4020, %v4024
      %v4034 = vsel %vm3023, %v4022, %v4026
      %v4035 = vsel %vm3023, %v4016, %v4020
      %v4036 = vsel %vm3023, %v4018, %v4022
      %v4037 = vsel %vm3023, %v4028, %v4016
      %v4038 = vsel %vm3023, %v4030, %v4018
      %s4039 = scalar_lea.vmem %s11, 20
      %v4040 = vld [vmem:[%s4039] sm:$0xf]
      %v4042 = vlaneseq
      %v4043 = vshrl.u32 %v4042, 7
      %v4044 = vsub.s32 0, %v4043
      %v4045 = vrot.slane %v4040, %v4044
      %v4046 = vlaneseq
      %v4047 = vshrl.u32 %v4046, 7
      %v4048 = vsub.s32 1, %v4047
      %v4049 = vrot.slane %v4040, %v4048
      %v4050 = vlaneseq
      %v4051 = vshrl.u32 %v4050, 7
      %v4052 = vsub.s32 2, %v4051
      %v4053 = vrot.slane %v4040, %v4052
      %v4054 = vlaneseq
      %v4055 = vshrl.u32 %v4054, 7
      %v4056 = vsub.s32 3, %v4055
      %v4057 = vrot.slane %v4040, %v4056
      %v4062 = vmul.f32 %v4037, %v4045
      %v4063 = vmul.f32 %v4035, %v4049
      %v4064 = vmul.f32 %v4033, %v4053
      %v4065 = vmul.f32 %v4031, %v4057
      %v4066 = vmul.f32 %v4038, %v4045
      %v4067 = vmul.f32 %v4036, %v4049
      %v4068 = vmul.f32 %v4034, %v4053
      %v4069 = vmul.f32 %v4032, %v4057
      %4070 = vrot.lane.b32.xlu0 %v3733, 17
      %v4071 = vpop.permute.xlu0 %4070
      %4072 = vrot.lane.b32.xlu0 %v3737, 17
      %v4073 = vpop.permute.xlu0 %4072
      %4074 = vrot.lane.b32.xlu0 %v3734, 17
      %v4075 = vpop.permute.xlu0 %4074
      %4076 = vrot.lane.b32.xlu0 %v3738, 17
      %v4077 = vpop.permute.xlu0 %4076
      %4078 = vrot.lane.b32.xlu0 %v3735, 17
      %v4079 = vpop.permute.xlu0 %4078
      %4080 = vrot.lane.b32.xlu0 %v3739, 17
      %v4081 = vpop.permute.xlu0 %4080
      %4082 = vrot.lane.b32.xlu0 %v3736, 17
      %v4083 = vpop.permute.xlu0 %4082
      %4084 = vrot.lane.b32.xlu0 %v3740, 17
      %v4085 = vpop.permute.xlu0 %4084
      %v4086 = vsel %vm455, %v4079, %v4083
      %v4087 = vsel %vm455, %v4081, %v4085
      %v4088 = vsel %vm455, %v4075, %v4079
      %v4089 = vsel %vm455, %v4077, %v4081
      %v4090 = vsel %vm455, %v4071, %v4075
      %v4091 = vsel %vm455, %v4073, %v4077
      %v4092 = vsel %vm455, %v4083, %v4071
      %v4093 = vsel %vm455, %v4085, %v4073
      %s4094 = scalar_lea.vmem %s11, 24
      %v4095 = vld [vmem:[%s4094] sm:$0xf]
      %v4097 = vlaneseq
      %v4098 = vshrl.u32 %v4097, 7
      %v4099 = vsub.s32 0, %v4098
      %v4100 = vrot.slane %v4095, %v4099
      %v4101 = vlaneseq
      %v4102 = vshrl.u32 %v4101, 7
      %v4103 = vsub.s32 1, %v4102
      %v4104 = vrot.slane %v4095, %v4103
      %v4105 = vlaneseq
      %v4106 = vshrl.u32 %v4105, 7
      %v4107 = vsub.s32 2, %v4106
      %v4108 = vrot.slane %v4095, %v4107
      %v4109 = vlaneseq
      %v4110 = vshrl.u32 %v4109, 7
      %v4111 = vsub.s32 3, %v4110
      %v4112 = vrot.slane %v4095, %v4111
      %v4117 = vmul.f32 %v4092, %v4100
      %v4118 = vmul.f32 %v4090, %v4104
      %v4119 = vmul.f32 %v4088, %v4108
      %v4120 = vmul.f32 %v4086, %v4112
      %v4121 = vmul.f32 %v4093, %v4100
      %v4122 = vmul.f32 %v4091, %v4104
      %v4123 = vmul.f32 %v4089, %v4108
      %v4124 = vmul.f32 %v4087, %v4112
      %4125 = vrot.lane.b32.xlu0 %v3733, 16
      %v4126 = vpop.permute.xlu0 %4125
      %4127 = vrot.lane.b32.xlu0 %v3737, 16
      %v4128 = vpop.permute.xlu0 %4127
      %4129 = vrot.lane.b32.xlu0 %v3734, 16
      %v4130 = vpop.permute.xlu0 %4129
      %4131 = vrot.lane.b32.xlu0 %v3738, 16
      %v4132 = vpop.permute.xlu0 %4131
      %4133 = vrot.lane.b32.xlu0 %v3735, 16
      %v4134 = vpop.permute.xlu0 %4133
      %4135 = vrot.lane.b32.xlu0 %v3739, 16
      %v4136 = vpop.permute.xlu0 %4135
      %4137 = vrot.lane.b32.xlu0 %v3736, 16
      %v4138 = vpop.permute.xlu0 %4137
      %4139 = vrot.lane.b32.xlu0 %v3740, 16
      %v4140 = vpop.permute.xlu0 %4139
      %v4141 = vsel %vm494, %v4134, %v4138
      %v4142 = vsel %vm494, %v4136, %v4140
      %v4143 = vsel %vm494, %v4130, %v4134
      %v4144 = vsel %vm494, %v4132, %v4136
      %v4145 = vsel %vm494, %v4126, %v4130
      %v4146 = vsel %vm494, %v4128, %v4132
      %v4147 = vsel %vm494, %v4138, %v4126
      %v4148 = vsel %vm494, %v4140, %v4128
      %s4149 = scalar_lea.vmem %s11, 28
      %v4150 = vld [vmem:[%s4149] sm:$0xf]
      %v4152 = vlaneseq
      %v4153 = vshrl.u32 %v4152, 7
      %v4154 = vsub.s32 0, %v4153
      %v4155 = vrot.slane %v4150, %v4154
      %v4156 = vlaneseq
      %v4157 = vshrl.u32 %v4156, 7
      %v4158 = vsub.s32 1, %v4157
      %v4159 = vrot.slane %v4150, %v4158
      %v4160 = vlaneseq
      %v4161 = vshrl.u32 %v4160, 7
      %v4162 = vsub.s32 2, %v4161
      %v4163 = vrot.slane %v4150, %v4162
      %v4164 = vlaneseq
      %v4165 = vshrl.u32 %v4164, 7
      %v4166 = vsub.s32 3, %v4165
      %v4167 = vrot.slane %v4150, %v4166
      %v4172 = vmul.f32 %v4147, %v4155
      %v4173 = vmul.f32 %v4145, %v4159
      %v4174 = vmul.f32 %v4143, %v4163
      %v4175 = vmul.f32 %v4141, %v4167
      %v4176 = vmul.f32 %v4148, %v4155
      %v4177 = vmul.f32 %v4146, %v4159
      %v4178 = vmul.f32 %v4144, %v4163
      %v4179 = vmul.f32 %v4142, %v4167
      %4180 = vrot.lane.b32.xlu0 %v3733, 15
      %v4181 = vpop.permute.xlu0 %4180
      %4182 = vrot.lane.b32.xlu0 %v3737, 15
      %v4183 = vpop.permute.xlu0 %4182
      %4184 = vrot.lane.b32.xlu0 %v3734, 15
      %v4185 = vpop.permute.xlu0 %4184
      %4186 = vrot.lane.b32.xlu0 %v3738, 15
      %v4187 = vpop.permute.xlu0 %4186
      %4188 = vrot.lane.b32.xlu0 %v3735, 15
      %v4189 = vpop.permute.xlu0 %4188
      %4190 = vrot.lane.b32.xlu0 %v3739, 15
      %v4191 = vpop.permute.xlu0 %4190
      %4192 = vrot.lane.b32.xlu0 %v3736, 15
      %v4193 = vpop.permute.xlu0 %4192
      %4194 = vrot.lane.b32.xlu0 %v3740, 15
      %v4195 = vpop.permute.xlu0 %4194
      %v4196 = vsel %vm534, %v4189, %v4193
      %v4197 = vsel %vm534, %v4191, %v4195
      %v4198 = vsel %vm534, %v4185, %v4189
      %v4199 = vsel %vm534, %v4187, %v4191
      %v4200 = vsel %vm534, %v4181, %v4185
      %v4201 = vsel %vm534, %v4183, %v4187
      %v4202 = vsel %vm534, %v4193, %v4181
      %v4203 = vsel %vm534, %v4195, %v4183
      %s4204 = scalar_lea.vmem %s11, 32
      %v4205 = vld [vmem:[%s4204] sm:$0xf]
      %v4207 = vlaneseq
      %v4208 = vshrl.u32 %v4207, 7
      %v4209 = vsub.s32 0, %v4208
      %v4210 = vrot.slane %v4205, %v4209
      %v4211 = vlaneseq
      %v4212 = vshrl.u32 %v4211, 7
      %v4213 = vsub.s32 1, %v4212
      %v4214 = vrot.slane %v4205, %v4213
      %v4215 = vlaneseq
      %v4216 = vshrl.u32 %v4215, 7
      %v4217 = vsub.s32 2, %v4216
      %v4218 = vrot.slane %v4205, %v4217
      %v4219 = vlaneseq
      %v4220 = vshrl.u32 %v4219, 7
      %v4221 = vsub.s32 3, %v4220
      %v4222 = vrot.slane %v4205, %v4221
      %v4227 = vmul.f32 %v4202, %v4210
      %v4228 = vmul.f32 %v4200, %v4214
      %v4229 = vmul.f32 %v4198, %v4218
      %v4230 = vmul.f32 %v4196, %v4222
      %v4231 = vmul.f32 %v4203, %v4210
      %v4232 = vmul.f32 %v4201, %v4214
      %v4233 = vmul.f32 %v4199, %v4218
      %v4234 = vmul.f32 %v4197, %v4222
      %4235 = vrot.lane.b32.xlu0 %v3733, 14
      %v4236 = vpop.permute.xlu0 %4235
      %4237 = vrot.lane.b32.xlu0 %v3737, 14
      %v4238 = vpop.permute.xlu0 %4237
      %4239 = vrot.lane.b32.xlu0 %v3734, 14
      %v4240 = vpop.permute.xlu0 %4239
      %4241 = vrot.lane.b32.xlu0 %v3738, 14
      %v4242 = vpop.permute.xlu0 %4241
      %4243 = vrot.lane.b32.xlu0 %v3735, 14
      %v4244 = vpop.permute.xlu0 %4243
      %4245 = vrot.lane.b32.xlu0 %v3739, 14
      %v4246 = vpop.permute.xlu0 %4245
      %4247 = vrot.lane.b32.xlu0 %v3736, 14
      %v4248 = vpop.permute.xlu0 %4247
      %4249 = vrot.lane.b32.xlu0 %v3740, 14
      %v4250 = vpop.permute.xlu0 %4249
      %vm4251 = vcmp.lt.s32.totalorder %v454, 14
      %v4252 = vsel %vm4251, %v4244, %v4248
      %v4253 = vsel %vm4251, %v4246, %v4250
      %v4254 = vsel %vm4251, %v4240, %v4244
      %v4255 = vsel %vm4251, %v4242, %v4246
      %v4256 = vsel %vm4251, %v4236, %v4240
      %v4257 = vsel %vm4251, %v4238, %v4242
      %v4258 = vsel %vm4251, %v4248, %v4236
      %v4259 = vsel %vm4251, %v4250, %v4238
      %s4260 = scalar_lea.vmem %s11, 36
      %v4261 = vld [vmem:[%s4260] sm:$0xf]
      %v4263 = vlaneseq
      %v4264 = vshrl.u32 %v4263, 7
      %v4265 = vsub.s32 0, %v4264
      %v4266 = vrot.slane %v4261, %v4265
      %v4267 = vlaneseq
      %v4268 = vshrl.u32 %v4267, 7
      %v4269 = vsub.s32 1, %v4268
      %v4270 = vrot.slane %v4261, %v4269
      %v4271 = vlaneseq
      %v4272 = vshrl.u32 %v4271, 7
      %v4273 = vsub.s32 2, %v4272
      %v4274 = vrot.slane %v4261, %v4273
      %v4275 = vlaneseq
      %v4276 = vshrl.u32 %v4275, 7
      %v4277 = vsub.s32 3, %v4276
      %v4278 = vrot.slane %v4261, %v4277
      %v4283 = vmul.f32 %v4258, %v4266
      %v4284 = vmul.f32 %v4256, %v4270
      %v4285 = vmul.f32 %v4254, %v4274
      %v4286 = vmul.f32 %v4252, %v4278
      %v4287 = vmul.f32 %v4259, %v4266
      %v4288 = vmul.f32 %v4257, %v4270
      %v4289 = vmul.f32 %v4255, %v4274
      %v4290 = vmul.f32 %v4253, %v4278
      %4291 = vrot.lane.b32.xlu0 %v3733, 2
      %v4292 = vpop.permute.xlu0 %4291
      %4293 = vrot.lane.b32.xlu0 %v3737, 2
      %v4294 = vpop.permute.xlu0 %4293
      %4295 = vrot.lane.b32.xlu0 %v3734, 2
      %v4296 = vpop.permute.xlu0 %4295
      %4297 = vrot.lane.b32.xlu0 %v3738, 2
      %v4298 = vpop.permute.xlu0 %4297
      %4299 = vrot.lane.b32.xlu0 %v3735, 2
      %v4300 = vpop.permute.xlu0 %4299
      %4301 = vrot.lane.b32.xlu0 %v3739, 2
      %v4302 = vpop.permute.xlu0 %4301
      %4303 = vrot.lane.b32.xlu0 %v3736, 2
      %v4304 = vpop.permute.xlu0 %4303
      %4305 = vrot.lane.b32.xlu0 %v3740, 2
      %v4306 = vpop.permute.xlu0 %4305
      %v4307 = vsel %vm1966, %v4300, %v4304
      %v4308 = vsel %vm1966, %v4302, %v4306
      %v4309 = vsel %vm1966, %v4296, %v4300
      %v4310 = vsel %vm1966, %v4298, %v4302
      %v4311 = vsel %vm1966, %v4292, %v4296
      %v4312 = vsel %vm1966, %v4294, %v4298
      %v4313 = vsel %vm1966, %v4304, %v4292
      %v4314 = vsel %vm1966, %v4306, %v4294
      %s4315 = scalar_lea.vmem %s11, 40
      %v4316 = vld [vmem:[%s4315] sm:$0xf]
      %v4318 = vlaneseq
      %v4319 = vshrl.u32 %v4318, 7
      %v4320 = vsub.s32 0, %v4319
      %v4321 = vrot.slane %v4316, %v4320
      %v4322 = vlaneseq
      %v4323 = vshrl.u32 %v4322, 7
      %v4324 = vsub.s32 1, %v4323
      %v4325 = vrot.slane %v4316, %v4324
      %v4326 = vlaneseq
      %v4327 = vshrl.u32 %v4326, 7
      %v4328 = vsub.s32 2, %v4327
      %v4329 = vrot.slane %v4316, %v4328
      %v4330 = vlaneseq
      %v4331 = vshrl.u32 %v4330, 7
      %v4332 = vsub.s32 3, %v4331
      %v4333 = vrot.slane %v4316, %v4332
      %v4338 = vmul.f32 %v4313, %v4321
      %v4339 = vmul.f32 %v4311, %v4325
      %v4340 = vmul.f32 %v4309, %v4329
      %v4341 = vmul.f32 %v4307, %v4333
      %v4342 = vmul.f32 %v4314, %v4321
      %v4343 = vmul.f32 %v4312, %v4325
      %v4344 = vmul.f32 %v4310, %v4329
      %v4345 = vmul.f32 %v4308, %v4333
      %4346 = vrot.lane.b32.xlu0 %v3733, 1
      %v4347 = vpop.permute.xlu0 %4346
      %4348 = vrot.lane.b32.xlu0 %v3737, 1
      %v4349 = vpop.permute.xlu0 %4348
      %4350 = vrot.lane.b32.xlu0 %v3734, 1
      %v4351 = vpop.permute.xlu0 %4350
      %4352 = vrot.lane.b32.xlu0 %v3738, 1
      %v4353 = vpop.permute.xlu0 %4352
      %4354 = vrot.lane.b32.xlu0 %v3735, 1
      %v4355 = vpop.permute.xlu0 %4354
      %4356 = vrot.lane.b32.xlu0 %v3739, 1
      %v4357 = vpop.permute.xlu0 %4356
      %4358 = vrot.lane.b32.xlu0 %v3736, 1
      %v4359 = vpop.permute.xlu0 %4358
      %4360 = vrot.lane.b32.xlu0 %v3740, 1
      %v4361 = vpop.permute.xlu0 %4360
      %v4362 = vsel %vm574, %v4355, %v4359
      %v4363 = vsel %vm574, %v4357, %v4361
      %v4364 = vsel %vm574, %v4351, %v4355
      %v4365 = vsel %vm574, %v4353, %v4357
      %v4366 = vsel %vm574, %v4347, %v4351
      %v4367 = vsel %vm574, %v4349, %v4353
      %v4368 = vsel %vm574, %v4359, %v4347
      %v4369 = vsel %vm574, %v4361, %v4349
      %s4370 = scalar_lea.vmem %s11, 44
      %v4371 = vld [vmem:[%s4370] sm:$0xf]
      %v4373 = vlaneseq
      %v4374 = vshrl.u32 %v4373, 7
      %v4375 = vsub.s32 0, %v4374
      %v4376 = vrot.slane %v4371, %v4375
      %v4377 = vlaneseq
      %v4378 = vshrl.u32 %v4377, 7
      %v4379 = vsub.s32 1, %v4378
      %v4380 = vrot.slane %v4371, %v4379
      %v4381 = vlaneseq
      %v4382 = vshrl.u32 %v4381, 7
      %v4383 = vsub.s32 2, %v4382
      %v4384 = vrot.slane %v4371, %v4383
      %v4385 = vlaneseq
      %v4386 = vshrl.u32 %v4385, 7
      %v4387 = vsub.s32 3, %v4386
      %v4388 = vrot.slane %v4371, %v4387
      %v4393 = vmul.f32 %v4368, %v4376
      %v4394 = vmul.f32 %v4366, %v4380
      %v4395 = vmul.f32 %v4364, %v4384
      %v4396 = vmul.f32 %v4362, %v4388
      %v4397 = vmul.f32 %v4369, %v4376
      %v4398 = vmul.f32 %v4367, %v4380
      %v4399 = vmul.f32 %v4365, %v4384
      %v4400 = vmul.f32 %v4363, %v4388
      %s4401 = scalar_lea.vmem %s11, 48
      %v4402 = vld [vmem:[%s4401] sm:$0xf]
      %v4404 = vlaneseq
      %v4405 = vshrl.u32 %v4404, 7
      %v4406 = vsub.s32 0, %v4405
      %v4407 = vrot.slane %v4402, %v4406
      %v4408 = vlaneseq
      %v4409 = vshrl.u32 %v4408, 7
      %v4410 = vsub.s32 1, %v4409
      %v4411 = vrot.slane %v4402, %v4410
      %v4412 = vlaneseq
      %v4413 = vshrl.u32 %v4412, 7
      %v4414 = vsub.s32 2, %v4413
      %v4415 = vrot.slane %v4402, %v4414
      %v4416 = vlaneseq
      %v4417 = vshrl.u32 %v4416, 7
      %v4418 = vsub.s32 3, %v4417
      %v4419 = vrot.slane %v4402, %v4418
      %v4424 = vmul.f32 %v3733, %v4407
      %v4425 = vmul.f32 %v3734, %v4411
      %v4426 = vmul.f32 %v3735, %v4415
      %v4427 = vmul.f32 %v3736, %v4419
      %v4428 = vmul.f32 %v3737, %v4407
      %v4429 = vmul.f32 %v3738, %v4411
      %v4430 = vmul.f32 %v3739, %v4415
      %v4431 = vmul.f32 %v3740, %v4419
      %4432 = vrot.lane.b32.xlu0 %v3733, 127
      %v4433 = vpop.permute.xlu0 %4432
      %4434 = vrot.lane.b32.xlu0 %v3737, 127
      %v4435 = vpop.permute.xlu0 %4434
      %4436 = vrot.lane.b32.xlu0 %v3734, 127
      %v4437 = vpop.permute.xlu0 %4436
      %4438 = vrot.lane.b32.xlu0 %v3738, 127
      %v4439 = vpop.permute.xlu0 %4438
      %4440 = vrot.lane.b32.xlu0 %v3735, 127
      %v4441 = vpop.permute.xlu0 %4440
      %4442 = vrot.lane.b32.xlu0 %v3739, 127
      %v4443 = vpop.permute.xlu0 %4442
      %4444 = vrot.lane.b32.xlu0 %v3736, 127
      %v4445 = vpop.permute.xlu0 %4444
      %4446 = vrot.lane.b32.xlu0 %v3740, 127
      %v4447 = vpop.permute.xlu0 %4446
      %v4448 = vsel %vm641, %v4441, %v4445
      %v4449 = vsel %vm641, %v4443, %v4447
      %v4450 = vsel %vm641, %v4437, %v4441
      %v4451 = vsel %vm641, %v4439, %v4443
      %v4452 = vsel %vm641, %v4433, %v4437
      %v4453 = vsel %vm641, %v4435, %v4439
      %v4454 = vsel %vm641, %v4445, %v4433
      %v4455 = vsel %vm641, %v4447, %v4435
      %s4456 = scalar_lea.vmem %s11, 52
      %v4457 = vld [vmem:[%s4456] sm:$0xf]
      %v4459 = vlaneseq
      %v4460 = vshrl.u32 %v4459, 7
      %v4461 = vsub.s32 0, %v4460
      %v4462 = vrot.slane %v4457, %v4461
      %v4463 = vlaneseq
      %v4464 = vshrl.u32 %v4463, 7
      %v4465 = vsub.s32 1, %v4464
      %v4466 = vrot.slane %v4457, %v4465
      %v4467 = vlaneseq
      %v4468 = vshrl.u32 %v4467, 7
      %v4469 = vsub.s32 2, %v4468
      %v4470 = vrot.slane %v4457, %v4469
      %v4471 = vlaneseq
      %v4472 = vshrl.u32 %v4471, 7
      %v4473 = vsub.s32 3, %v4472
      %v4474 = vrot.slane %v4457, %v4473
      %v4479 = vmul.f32 %v4452, %v4462
      %v4480 = vmul.f32 %v4450, %v4466
      %v4481 = vmul.f32 %v4448, %v4470
      %v4482 = vmul.f32 %v4454, %v4474
      %v4483 = vmul.f32 %v4453, %v4462
      %v4484 = vmul.f32 %v4451, %v4466
      %v4485 = vmul.f32 %v4449, %v4470
      %v4486 = vmul.f32 %v4455, %v4474
      %4487 = vrot.lane.b32.xlu0 %v3733, 126
      %v4488 = vpop.permute.xlu0 %4487
      %4489 = vrot.lane.b32.xlu0 %v3737, 126
      %v4490 = vpop.permute.xlu0 %4489
      %4491 = vrot.lane.b32.xlu0 %v3734, 126
      %v4492 = vpop.permute.xlu0 %4491
      %4493 = vrot.lane.b32.xlu0 %v3738, 126
      %v4494 = vpop.permute.xlu0 %4493
      %4495 = vrot.lane.b32.xlu0 %v3735, 126
      %v4496 = vpop.permute.xlu0 %4495
      %4497 = vrot.lane.b32.xlu0 %v3739, 126
      %v4498 = vpop.permute.xlu0 %4497
      %4499 = vrot.lane.b32.xlu0 %v3736, 126
      %v4500 = vpop.permute.xlu0 %4499
      %4501 = vrot.lane.b32.xlu0 %v3740, 126
      %v4502 = vpop.permute.xlu0 %4501
      %v4503 = vsel %vm2093, %v4496, %v4500
      %v4504 = vsel %vm2093, %v4498, %v4502
      %v4505 = vsel %vm2093, %v4492, %v4496
      %v4506 = vsel %vm2093, %v4494, %v4498
      %v4507 = vsel %vm2093, %v4488, %v4492
      %v4508 = vsel %vm2093, %v4490, %v4494
      %v4509 = vsel %vm2093, %v4500, %v4488
      %v4510 = vsel %vm2093, %v4502, %v4490
      %s4511 = scalar_lea.vmem %s11, 56
      %v4512 = vld [vmem:[%s4511] sm:$0xf]
      %v4514 = vlaneseq
      %v4515 = vshrl.u32 %v4514, 7
      %v4516 = vsub.s32 0, %v4515
      %v4517 = vrot.slane %v4512, %v4516
      %v4518 = vlaneseq
      %v4519 = vshrl.u32 %v4518, 7
      %v4520 = vsub.s32 1, %v4519
      %v4521 = vrot.slane %v4512, %v4520
      %v4522 = vlaneseq
      %v4523 = vshrl.u32 %v4522, 7
      %v4524 = vsub.s32 2, %v4523
      %v4525 = vrot.slane %v4512, %v4524
      %v4526 = vlaneseq
      %v4527 = vshrl.u32 %v4526, 7
      %v4528 = vsub.s32 3, %v4527
      %v4529 = vrot.slane %v4512, %v4528
      %v4534 = vmul.f32 %v4507, %v4517
      %v4535 = vmul.f32 %v4505, %v4521
      %v4536 = vmul.f32 %v4503, %v4525
      %v4537 = vmul.f32 %v4509, %v4529
      %v4538 = vmul.f32 %v4508, %v4517
      %v4539 = vmul.f32 %v4506, %v4521
      %v4540 = vmul.f32 %v4504, %v4525
      %v4541 = vmul.f32 %v4510, %v4529
      %4542 = vrot.lane.b32.xlu0 %v3733, 114
      %v4543 = vpop.permute.xlu0 %4542
      %4544 = vrot.lane.b32.xlu0 %v3737, 114
      %v4545 = vpop.permute.xlu0 %4544
      %4546 = vrot.lane.b32.xlu0 %v3734, 114
      %v4547 = vpop.permute.xlu0 %4546
      %4548 = vrot.lane.b32.xlu0 %v3738, 114
      %v4549 = vpop.permute.xlu0 %4548
      %4550 = vrot.lane.b32.xlu0 %v3735, 114
      %v4551 = vpop.permute.xlu0 %4550
      %4552 = vrot.lane.b32.xlu0 %v3739, 114
      %v4553 = vpop.permute.xlu0 %4552
      %4554 = vrot.lane.b32.xlu0 %v3736, 114
      %v4555 = vpop.permute.xlu0 %4554
      %4556 = vrot.lane.b32.xlu0 %v3740, 114
      %v4557 = vpop.permute.xlu0 %4556
      %v4558 = vsel %vm3504, %v4551, %v4555
      %v4559 = vsel %vm3504, %v4553, %v4557
      %v4560 = vsel %vm3504, %v4547, %v4551
      %v4561 = vsel %vm3504, %v4549, %v4553
      %v4562 = vsel %vm3504, %v4543, %v4547
      %v4563 = vsel %vm3504, %v4545, %v4549
      %v4564 = vsel %vm3504, %v4555, %v4543
      %v4565 = vsel %vm3504, %v4557, %v4545
      %s4566 = scalar_lea.vmem %s11, 60
      %v4567 = vld [vmem:[%s4566] sm:$0xf]
      %v4569 = vlaneseq
      %v4570 = vshrl.u32 %v4569, 7
      %v4571 = vsub.s32 0, %v4570
      %v4572 = vrot.slane %v4567, %v4571
      %v4573 = vlaneseq
      %v4574 = vshrl.u32 %v4573, 7
      %v4575 = vsub.s32 1, %v4574
      %v4576 = vrot.slane %v4567, %v4575
      %v4577 = vlaneseq
      %v4578 = vshrl.u32 %v4577, 7
      %v4579 = vsub.s32 2, %v4578
      %v4580 = vrot.slane %v4567, %v4579
      %v4581 = vlaneseq
      %v4582 = vshrl.u32 %v4581, 7
      %v4583 = vsub.s32 3, %v4582
      %v4584 = vrot.slane %v4567, %v4583
      %v4589 = vmul.f32 %v4562, %v4572
      %v4590 = vmul.f32 %v4560, %v4576
      %v4591 = vmul.f32 %v4558, %v4580
      %v4592 = vmul.f32 %v4564, %v4584
      %v4593 = vmul.f32 %v4563, %v4572
      %v4594 = vmul.f32 %v4561, %v4576
      %v4595 = vmul.f32 %v4559, %v4580
      %v4596 = vmul.f32 %v4565, %v4584
      %4597 = vrot.lane.b32.xlu0 %v3733, 113
      %v4598 = vpop.permute.xlu0 %4597
      %4599 = vrot.lane.b32.xlu0 %v3737, 113
      %v4600 = vpop.permute.xlu0 %4599
      %4601 = vrot.lane.b32.xlu0 %v3734, 113
      %v4602 = vpop.permute.xlu0 %4601
      %4603 = vrot.lane.b32.xlu0 %v3738, 113
      %v4604 = vpop.permute.xlu0 %4603
      %4605 = vrot.lane.b32.xlu0 %v3735, 113
      %v4606 = vpop.permute.xlu0 %4605
      %4607 = vrot.lane.b32.xlu0 %v3739, 113
      %v4608 = vpop.permute.xlu0 %4607
      %4609 = vrot.lane.b32.xlu0 %v3736, 113
      %v4610 = vpop.permute.xlu0 %4609
      %4611 = vrot.lane.b32.xlu0 %v3740, 113
      %v4612 = vpop.permute.xlu0 %4611
      %v4613 = vsel %vm681, %v4606, %v4610
      %v4614 = vsel %vm681, %v4608, %v4612
      %v4615 = vsel %vm681, %v4602, %v4606
      %v4616 = vsel %vm681, %v4604, %v4608
      %v4617 = vsel %vm681, %v4598, %v4602
      %v4618 = vsel %vm681, %v4600, %v4604
      %v4619 = vsel %vm681, %v4610, %v4598
      %v4620 = vsel %vm681, %v4612, %v4600
      %s4621 = scalar_lea.vmem %s11, 64
      %v4622 = vld [vmem:[%s4621] sm:$0xf]
      %v4624 = vlaneseq
      %v4625 = vshrl.u32 %v4624, 7
      %v4626 = vsub.s32 0, %v4625
      %v4627 = vrot.slane %v4622, %v4626
      %v4628 = vlaneseq
      %v4629 = vshrl.u32 %v4628, 7
      %v4630 = vsub.s32 1, %v4629
      %v4631 = vrot.slane %v4622, %v4630
      %v4632 = vlaneseq
      %v4633 = vshrl.u32 %v4632, 7
      %v4634 = vsub.s32 2, %v4633
      %v4635 = vrot.slane %v4622, %v4634
      %v4636 = vlaneseq
      %v4637 = vshrl.u32 %v4636, 7
      %v4638 = vsub.s32 3, %v4637
      %v4639 = vrot.slane %v4622, %v4638
      %v4644 = vmul.f32 %v4617, %v4627
      %v4645 = vmul.f32 %v4615, %v4631
      %v4646 = vmul.f32 %v4613, %v4635
      %v4647 = vmul.f32 %v4619, %v4639
      %v4648 = vmul.f32 %v4618, %v4627
      %v4649 = vmul.f32 %v4616, %v4631
      %v4650 = vmul.f32 %v4614, %v4635
      %v4651 = vmul.f32 %v4620, %v4639
      %4652 = vrot.lane.b32.xlu0 %v3733, 112
      %v4653 = vpop.permute.xlu0 %4652
      %4654 = vrot.lane.b32.xlu0 %v3737, 112
      %v4655 = vpop.permute.xlu0 %4654
      %4656 = vrot.lane.b32.xlu0 %v3734, 112
      %v4657 = vpop.permute.xlu0 %4656
      %4658 = vrot.lane.b32.xlu0 %v3738, 112
      %v4659 = vpop.permute.xlu0 %4658
      %4660 = vrot.lane.b32.xlu0 %v3735, 112
      %v4661 = vpop.permute.xlu0 %4660
      %4662 = vrot.lane.b32.xlu0 %v3739, 112
      %v4663 = vpop.permute.xlu0 %4662
      %4664 = vrot.lane.b32.xlu0 %v3736, 112
      %v4665 = vpop.permute.xlu0 %4664
      %4666 = vrot.lane.b32.xlu0 %v3740, 112
      %v4667 = vpop.permute.xlu0 %4666
      %v4668 = vsel %vm721, %v4661, %v4665
      %v4669 = vsel %vm721, %v4663, %v4667
      %v4670 = vsel %vm721, %v4657, %v4661
      %v4671 = vsel %vm721, %v4659, %v4663
      %v4672 = vsel %vm721, %v4653, %v4657
      %v4673 = vsel %vm721, %v4655, %v4659
      %v4674 = vsel %vm721, %v4665, %v4653
      %v4675 = vsel %vm721, %v4667, %v4655
      %s4676 = scalar_lea.vmem %s11, 68
      %v4677 = vld [vmem:[%s4676] sm:$0xf]
      %v4679 = vlaneseq
      %v4680 = vshrl.u32 %v4679, 7
      %v4681 = vsub.s32 0, %v4680
      %v4682 = vrot.slane %v4677, %v4681
      %v4683 = vlaneseq
      %v4684 = vshrl.u32 %v4683, 7
      %v4685 = vsub.s32 1, %v4684
      %v4686 = vrot.slane %v4677, %v4685
      %v4687 = vlaneseq
      %v4688 = vshrl.u32 %v4687, 7
      %v4689 = vsub.s32 2, %v4688
      %v4690 = vrot.slane %v4677, %v4689
      %v4691 = vlaneseq
      %v4692 = vshrl.u32 %v4691, 7
      %v4693 = vsub.s32 3, %v4692
      %v4694 = vrot.slane %v4677, %v4693
      %v4699 = vmul.f32 %v4672, %v4682
      %v4700 = vmul.f32 %v4670, %v4686
      %v4701 = vmul.f32 %v4668, %v4690
      %v4702 = vmul.f32 %v4674, %v4694
      %v4703 = vmul.f32 %v4673, %v4682
      %v4704 = vmul.f32 %v4671, %v4686
      %v4705 = vmul.f32 %v4669, %v4690
      %v4706 = vmul.f32 %v4675, %v4694
      %4707 = vrot.lane.b32.xlu0 %v3733, 111
      %v4708 = vpop.permute.xlu0 %4707
      %4709 = vrot.lane.b32.xlu0 %v3737, 111
      %v4710 = vpop.permute.xlu0 %4709
      %4711 = vrot.lane.b32.xlu0 %v3734, 111
      %v4712 = vpop.permute.xlu0 %4711
      %4713 = vrot.lane.b32.xlu0 %v3738, 111
      %v4714 = vpop.permute.xlu0 %4713
      %4715 = vrot.lane.b32.xlu0 %v3735, 111
      %v4716 = vpop.permute.xlu0 %4715
      %4717 = vrot.lane.b32.xlu0 %v3739, 111
      %v4718 = vpop.permute.xlu0 %4717
      %4719 = vrot.lane.b32.xlu0 %v3736, 111
      %v4720 = vpop.permute.xlu0 %4719
      %4721 = vrot.lane.b32.xlu0 %v3740, 111
      %v4722 = vpop.permute.xlu0 %4721
      %v4723 = vsel %vm761, %v4716, %v4720
      %v4724 = vsel %vm761, %v4718, %v4722
      %v4725 = vsel %vm761, %v4712, %v4716
      %v4726 = vsel %vm761, %v4714, %v4718
      %v4727 = vsel %vm761, %v4708, %v4712
      %v4728 = vsel %vm761, %v4710, %v4714
      %v4729 = vsel %vm761, %v4720, %v4708
      %v4730 = vsel %vm761, %v4722, %v4710
      %s4731 = scalar_lea.vmem %s11, 72
      %v4732 = vld [vmem:[%s4731] sm:$0xf]
      %v4734 = vlaneseq
      %v4735 = vshrl.u32 %v4734, 7
      %v4736 = vsub.s32 0, %v4735
      %v4737 = vrot.slane %v4732, %v4736
      %v4738 = vlaneseq
      %v4739 = vshrl.u32 %v4738, 7
      %v4740 = vsub.s32 1, %v4739
      %v4741 = vrot.slane %v4732, %v4740
      %v4742 = vlaneseq
      %v4743 = vshrl.u32 %v4742, 7
      %v4744 = vsub.s32 2, %v4743
      %v4745 = vrot.slane %v4732, %v4744
      %v4746 = vlaneseq
      %v4747 = vshrl.u32 %v4746, 7
      %v4748 = vsub.s32 3, %v4747
      %v4749 = vrot.slane %v4732, %v4748
      %v4754 = vmul.f32 %v4727, %v4737
      %v4755 = vmul.f32 %v4725, %v4741
      %v4756 = vmul.f32 %v4723, %v4745
      %v4757 = vmul.f32 %v4729, %v4749
      %v4758 = vmul.f32 %v4728, %v4737
      %v4759 = vmul.f32 %v4726, %v4741
      %v4760 = vmul.f32 %v4724, %v4745
      %v4761 = vmul.f32 %v4730, %v4749
      %4762 = vrot.lane.b32.xlu0 %v3733, 110
      %v4763 = vpop.permute.xlu0 %4762
      %4764 = vrot.lane.b32.xlu0 %v3737, 110
      %v4765 = vpop.permute.xlu0 %4764
      %4766 = vrot.lane.b32.xlu0 %v3734, 110
      %v4767 = vpop.permute.xlu0 %4766
      %4768 = vrot.lane.b32.xlu0 %v3738, 110
      %v4769 = vpop.permute.xlu0 %4768
      %4770 = vrot.lane.b32.xlu0 %v3735, 110
      %v4771 = vpop.permute.xlu0 %4770
      %4772 = vrot.lane.b32.xlu0 %v3739, 110
      %v4773 = vpop.permute.xlu0 %4772
      %4774 = vrot.lane.b32.xlu0 %v3736, 110
      %v4775 = vpop.permute.xlu0 %4774
      %4776 = vrot.lane.b32.xlu0 %v3740, 110
      %v4777 = vpop.permute.xlu0 %4776
      %vm4778 = vcmp.lt.s32.totalorder %v454, 110
      %v4779 = vsel %vm4778, %v4771, %v4775
      %v4780 = vsel %vm4778, %v4773, %v4777
      %v4781 = vsel %vm4778, %v4767, %v4771
      %v4782 = vsel %vm4778, %v4769, %v4773
      %v4783 = vsel %vm4778, %v4763, %v4767
      %v4784 = vsel %vm4778, %v4765, %v4769
      %v4785 = vsel %vm4778, %v4775, %v4763
      %v4786 = vsel %vm4778, %v4777, %v4765
      %s4787 = scalar_lea.vmem %s11, 76
      %v4788 = vld [vmem:[%s4787] sm:$0xf]
      %v4790 = vlaneseq
      %v4791 = vshrl.u32 %v4790, 7
      %v4792 = vsub.s32 0, %v4791
      %v4793 = vrot.slane %v4788, %v4792
      %v4794 = vlaneseq
      %v4795 = vshrl.u32 %v4794, 7
      %v4796 = vsub.s32 1, %v4795
      %v4797 = vrot.slane %v4788, %v4796
      %v4798 = vlaneseq
      %v4799 = vshrl.u32 %v4798, 7
      %v4800 = vsub.s32 2, %v4799
      %v4801 = vrot.slane %v4788, %v4800
      %v4802 = vlaneseq
      %v4803 = vshrl.u32 %v4802, 7
      %v4804 = vsub.s32 3, %v4803
      %v4805 = vrot.slane %v4788, %v4804
      %v4810 = vmul.f32 %v4783, %v4793
      %v4811 = vmul.f32 %v4781, %v4797
      %v4812 = vmul.f32 %v4779, %v4801
      %v4813 = vmul.f32 %v4785, %v4805
      %v4814 = vmul.f32 %v4784, %v4793
      %v4815 = vmul.f32 %v4782, %v4797
      %v4816 = vmul.f32 %v4780, %v4801
      %v4817 = vmul.f32 %v4786, %v4805
      %4818 = vrot.lane.b32.xlu0 %v3733, 98
      %v4819 = vpop.permute.xlu0 %4818
      %4820 = vrot.lane.b32.xlu0 %v3737, 98
      %v4821 = vpop.permute.xlu0 %4820
      %4822 = vrot.lane.b32.xlu0 %v3734, 98
      %v4823 = vpop.permute.xlu0 %4822
      %4824 = vrot.lane.b32.xlu0 %v3738, 98
      %v4825 = vpop.permute.xlu0 %4824
      %4826 = vrot.lane.b32.xlu0 %v3735, 98
      %v4827 = vpop.permute.xlu0 %4826
      %4828 = vrot.lane.b32.xlu0 %v3739, 98
      %v4829 = vpop.permute.xlu0 %4828
      %4830 = vrot.lane.b32.xlu0 %v3736, 98
      %v4831 = vpop.permute.xlu0 %4830
      %4832 = vrot.lane.b32.xlu0 %v3740, 98
      %v4833 = vpop.permute.xlu0 %4832
      %v4834 = vsel %vm2181, %v4827, %v4831
      %v4835 = vsel %vm2181, %v4829, %v4833
      %v4836 = vsel %vm2181, %v4823, %v4827
      %v4837 = vsel %vm2181, %v4825, %v4829
      %v4838 = vsel %vm2181, %v4819, %v4823
      %v4839 = vsel %vm2181, %v4821, %v4825
      %v4840 = vsel %vm2181, %v4831, %v4819
      %v4841 = vsel %vm2181, %v4833, %v4821
      %s4842 = scalar_lea.vmem %s11, 80
      %v4843 = vld [vmem:[%s4842] sm:$0xf]
      %v4845 = vlaneseq
      %v4846 = vshrl.u32 %v4845, 7
      %v4847 = vsub.s32 0, %v4846
      %v4848 = vrot.slane %v4843, %v4847
      %v4849 = vlaneseq
      %v4850 = vshrl.u32 %v4849, 7
      %v4851 = vsub.s32 1, %v4850
      %v4852 = vrot.slane %v4843, %v4851
      %v4853 = vlaneseq
      %v4854 = vshrl.u32 %v4853, 7
      %v4855 = vsub.s32 2, %v4854
      %v4856 = vrot.slane %v4843, %v4855
      %v4857 = vlaneseq
      %v4858 = vshrl.u32 %v4857, 7
      %v4859 = vsub.s32 3, %v4858
      %v4860 = vrot.slane %v4843, %v4859
      %v4865 = vmul.f32 %v4838, %v4848
      %v4866 = vmul.f32 %v4836, %v4852
      %v4867 = vmul.f32 %v4834, %v4856
      %v4868 = vmul.f32 %v4840, %v4860
      %v4869 = vmul.f32 %v4839, %v4848
      %v4870 = vmul.f32 %v4837, %v4852
      %v4871 = vmul.f32 %v4835, %v4856
      %v4872 = vmul.f32 %v4841, %v4860
      %4873 = vrot.lane.b32.xlu0 %v3733, 97
      %v4874 = vpop.permute.xlu0 %4873
      %4875 = vrot.lane.b32.xlu0 %v3737, 97
      %v4876 = vpop.permute.xlu0 %4875
      %4877 = vrot.lane.b32.xlu0 %v3734, 97
      %v4878 = vpop.permute.xlu0 %4877
      %4879 = vrot.lane.b32.xlu0 %v3738, 97
      %v4880 = vpop.permute.xlu0 %4879
      %4881 = vrot.lane.b32.xlu0 %v3735, 97
      %v4882 = vpop.permute.xlu0 %4881
      %4883 = vrot.lane.b32.xlu0 %v3739, 97
      %v4884 = vpop.permute.xlu0 %4883
      %4885 = vrot.lane.b32.xlu0 %v3736, 97
      %v4886 = vpop.permute.xlu0 %4885
      %4887 = vrot.lane.b32.xlu0 %v3740, 97
      %v4888 = vpop.permute.xlu0 %4887
      %vm4889 = vcmp.lt.s32.totalorder %v454, 97
      %v4890 = vsel %vm4889, %v4882, %v4886
      %v4891 = vsel %vm4889, %v4884, %v4888
      %v4892 = vsel %vm4889, %v4878, %v4882
      %v4893 = vsel %vm4889, %v4880, %v4884
      %v4894 = vsel %vm4889, %v4874, %v4878
      %v4895 = vsel %vm4889, %v4876, %v4880
      %v4896 = vsel %vm4889, %v4886, %v4874
      %v4897 = vsel %vm4889, %v4888, %v4876
      %s4898 = scalar_lea.vmem %s11, 84
      %v4899 = vld [vmem:[%s4898] sm:$0xf]
      %v4901 = vlaneseq
      %v4902 = vshrl.u32 %v4901, 7
      %v4903 = vsub.s32 0, %v4902
      %v4904 = vrot.slane %v4899, %v4903
      %v4905 = vlaneseq
      %v4906 = vshrl.u32 %v4905, 7
      %v4907 = vsub.s32 1, %v4906
      %v4908 = vrot.slane %v4899, %v4907
      %v4909 = vlaneseq
      %v4910 = vshrl.u32 %v4909, 7
      %v4911 = vsub.s32 2, %v4910
      %v4912 = vrot.slane %v4899, %v4911
      %v4913 = vlaneseq
      %v4914 = vshrl.u32 %v4913, 7
      %v4915 = vsub.s32 3, %v4914
      %v4916 = vrot.slane %v4899, %v4915
      %v4921 = vmul.f32 %v4894, %v4904
      %v4922 = vmul.f32 %v4892, %v4908
      %v4923 = vmul.f32 %v4890, %v4912
      %v4924 = vmul.f32 %v4896, %v4916
      %v4925 = vmul.f32 %v4895, %v4904
      %v4926 = vmul.f32 %v4893, %v4908
      %v4927 = vmul.f32 %v4891, %v4912
      %v4928 = vmul.f32 %v4897, %v4916
      %4929 = vrot.lane.b32.xlu0 %v3733, 96
      %v4930 = vpop.permute.xlu0 %4929
      %4931 = vrot.lane.b32.xlu0 %v3737, 96
      %v4932 = vpop.permute.xlu0 %4931
      %4933 = vrot.lane.b32.xlu0 %v3734, 96
      %v4934 = vpop.permute.xlu0 %4933
      %4935 = vrot.lane.b32.xlu0 %v3738, 96
      %v4936 = vpop.permute.xlu0 %4935
      %4937 = vrot.lane.b32.xlu0 %v3735, 96
      %v4938 = vpop.permute.xlu0 %4937
      %4939 = vrot.lane.b32.xlu0 %v3739, 96
      %v4940 = vpop.permute.xlu0 %4939
      %4941 = vrot.lane.b32.xlu0 %v3736, 96
      %v4942 = vpop.permute.xlu0 %4941
      %4943 = vrot.lane.b32.xlu0 %v3740, 96
      %v4944 = vpop.permute.xlu0 %4943
      %v4945 = vsel %vm2269, %v4938, %v4942
      %v4946 = vsel %vm2269, %v4940, %v4944
      %v4947 = vsel %vm2269, %v4934, %v4938
      %v4948 = vsel %vm2269, %v4936, %v4940
      %v4949 = vsel %vm2269, %v4930, %v4934
      %v4950 = vsel %vm2269, %v4932, %v4936
      %v4951 = vsel %vm2269, %v4942, %v4930
      %v4952 = vsel %vm2269, %v4944, %v4932
      %s4953 = scalar_lea.vmem %s11, 88
      %v4954 = vld [vmem:[%s4953] sm:$0xf]
      %v4956 = vlaneseq
      %v4957 = vshrl.u32 %v4956, 7
      %v4958 = vsub.s32 0, %v4957
      %v4959 = vrot.slane %v4954, %v4958
      %v4960 = vlaneseq
      %v4961 = vshrl.u32 %v4960, 7
      %v4962 = vsub.s32 1, %v4961
      %v4963 = vrot.slane %v4954, %v4962
      %v4964 = vlaneseq
      %v4965 = vshrl.u32 %v4964, 7
      %v4966 = vsub.s32 2, %v4965
      %v4967 = vrot.slane %v4954, %v4966
      %v4968 = vlaneseq
      %v4969 = vshrl.u32 %v4968, 7
      %v4970 = vsub.s32 3, %v4969
      %v4971 = vrot.slane %v4954, %v4970
      %v4976 = vmul.f32 %v4949, %v4959
      %v4977 = vmul.f32 %v4947, %v4963
      %v4978 = vmul.f32 %v4945, %v4967
      %v4979 = vmul.f32 %v4951, %v4971
      %v4980 = vmul.f32 %v4950, %v4959
      %v4981 = vmul.f32 %v4948, %v4963
      %v4982 = vmul.f32 %v4946, %v4967
      %v4983 = vmul.f32 %v4952, %v4971
      %4984 = vrot.lane.b32.xlu0 %v3733, 95
      %v4985 = vpop.permute.xlu0 %4984
      %4986 = vrot.lane.b32.xlu0 %v3737, 95
      %v4987 = vpop.permute.xlu0 %4986
      %4988 = vrot.lane.b32.xlu0 %v3734, 95
      %v4989 = vpop.permute.xlu0 %4988
      %4990 = vrot.lane.b32.xlu0 %v3738, 95
      %v4991 = vpop.permute.xlu0 %4990
      %4992 = vrot.lane.b32.xlu0 %v3735, 95
      %v4993 = vpop.permute.xlu0 %4992
      %4994 = vrot.lane.b32.xlu0 %v3739, 95
      %v4995 = vpop.permute.xlu0 %4994
      %4996 = vrot.lane.b32.xlu0 %v3736, 95
      %v4997 = vpop.permute.xlu0 %4996
      %4998 = vrot.lane.b32.xlu0 %v3740, 95
      %v4999 = vpop.permute.xlu0 %4998
      %vm5000 = vcmp.lt.s32.totalorder %v454, 95
      %v5001 = vsel %vm5000, %v4993, %v4997
      %v5002 = vsel %vm5000, %v4995, %v4999
      %v5003 = vsel %vm5000, %v4989, %v4993
      %v5004 = vsel %vm5000, %v4991, %v4995
      %v5005 = vsel %vm5000, %v4985, %v4989
      %v5006 = vsel %vm5000, %v4987, %v4991
      %v5007 = vsel %vm5000, %v4997, %v4985
      %v5008 = vsel %vm5000, %v4999, %v4987
      %s5009 = scalar_lea.vmem %s11, 92
      %v5010 = vld [vmem:[%s5009] sm:$0xf]
      %v5012 = vlaneseq
      %v5013 = vshrl.u32 %v5012, 7
      %v5014 = vsub.s32 0, %v5013
      %v5015 = vrot.slane %v5010, %v5014
      %v5016 = vlaneseq
      %v5017 = vshrl.u32 %v5016, 7
      %v5018 = vsub.s32 1, %v5017
      %v5019 = vrot.slane %v5010, %v5018
      %v5020 = vlaneseq
      %v5021 = vshrl.u32 %v5020, 7
      %v5022 = vsub.s32 2, %v5021
      %v5023 = vrot.slane %v5010, %v5022
      %v5024 = vlaneseq
      %v5025 = vshrl.u32 %v5024, 7
      %v5026 = vsub.s32 3, %v5025
      %v5027 = vrot.slane %v5010, %v5026
      %v5032 = vmul.f32 %v5005, %v5015
      %v5033 = vmul.f32 %v5003, %v5019
      %v5034 = vmul.f32 %v5001, %v5023
      %v5035 = vmul.f32 %v5007, %v5027
      %v5036 = vmul.f32 %v5006, %v5015
      %v5037 = vmul.f32 %v5004, %v5019
      %v5038 = vmul.f32 %v5002, %v5023
      %v5039 = vmul.f32 %v5008, %v5027
      %5040 = vrot.lane.b32.xlu0 %v3733, 94
      %v5041 = vpop.permute.xlu0 %5040
      %5042 = vrot.lane.b32.xlu0 %v3737, 94
      %v5043 = vpop.permute.xlu0 %5042
      %5044 = vrot.lane.b32.xlu0 %v3734, 94
      %v5045 = vpop.permute.xlu0 %5044
      %5046 = vrot.lane.b32.xlu0 %v3738, 94
      %v5047 = vpop.permute.xlu0 %5046
      %5048 = vrot.lane.b32.xlu0 %v3735, 94
      %v5049 = vpop.permute.xlu0 %5048
      %5050 = vrot.lane.b32.xlu0 %v3739, 94
      %v5051 = vpop.permute.xlu0 %5050
      %5052 = vrot.lane.b32.xlu0 %v3736, 94
      %v5053 = vpop.permute.xlu0 %5052
      %5054 = vrot.lane.b32.xlu0 %v3740, 94
      %v5055 = vpop.permute.xlu0 %5054
      %v5056 = vsel %vm2357, %v5049, %v5053
      %v5057 = vsel %vm2357, %v5051, %v5055
      %v5058 = vsel %vm2357, %v5045, %v5049
      %v5059 = vsel %vm2357, %v5047, %v5051
      %v5060 = vsel %vm2357, %v5041, %v5045
      %v5061 = vsel %vm2357, %v5043, %v5047
      %v5062 = vsel %vm2357, %v5053, %v5041
      %v5063 = vsel %vm2357, %v5055, %v5043
      %s5064 = scalar_lea.vmem %s11, 96
      %v5065 = vld [vmem:[%s5064] sm:$0xf]
      %v5067 = vlaneseq
      %v5068 = vshrl.u32 %v5067, 7
      %v5069 = vsub.s32 0, %v5068
      %v5070 = vrot.slane %v5065, %v5069
      %v5071 = vlaneseq
      %v5072 = vshrl.u32 %v5071, 7
      %v5073 = vsub.s32 1, %v5072
      %v5074 = vrot.slane %v5065, %v5073
      %v5075 = vlaneseq
      %v5076 = vshrl.u32 %v5075, 7
      %v5077 = vsub.s32 2, %v5076
      %v5078 = vrot.slane %v5065, %v5077
      %v5079 = vlaneseq
      %v5080 = vshrl.u32 %v5079, 7
      %v5081 = vsub.s32 3, %v5080
      %v5082 = vrot.slane %v5065, %v5081
      %v5087 = vmul.f32 %v5060, %v5070
      %v5088 = vmul.f32 %v5058, %v5074
      %v5089 = vmul.f32 %v5056, %v5078
      %v5090 = vmul.f32 %v5062, %v5082
      %v5091 = vmul.f32 %v5061, %v5070
      %v5092 = vmul.f32 %v5059, %v5074
      %v5093 = vmul.f32 %v5057, %v5078
      %v5094 = vmul.f32 %v5063, %v5082
      %v5095 = vld [vmem:[%s7] sm:$0xff]
      %v5096 = vld [vmem:[%s8] sm:$0x3]
      %5098 = vset.pattern.permute.xlu0 0
      %5099 = vperm.xlu0 %5098, %v5096
      %v5100 = vpop.permute.xlu0 %5099
      %v5103 = vcombine.high %v5095, %v5095
      %v5105 = vunpack.c.l.s4 1983009808
      %v5106 = vunpack.c.0.s8 %v5105
      %v5107 = vlaneseq
      %v5108 = vshrl.u32 %v5107, 7
      %v5109 = vsub.s32 %v5106, %v5108
      %v5110 = vrot.slane %v5095, %v5109
      %v5112 = vunpack.c.l.s4 1983009808
      %v5113 = vunpack.c.0.s8 %v5112
      %v5114 = vlaneseq
      %v5115 = vshrl.u32 %v5114, 7
      %v5116 = vsub.s32 %v5113, %v5115
      %v5117 = vrot.slane %v5103, %v5116
      %v5118 = vcombine.high %v5110, %v5110
      %v5119 = vcombine.high %v5117, %v5117
      %v5123 = vsel %vm1272, %v5119, 0
      %5125 = vmatprep.subr.mxu0 %v3788
      %5126 = vmatpush1.msra.mxu0 %v3787
      %5127 = vmatprep.subr.mxu0 %v3792
      %5128 = vmatpush1.msra.mxu0 %v3791
      %5129 = vmatprep.subr.mxu0 %v3843
      %5130 = vmatpush1.msra.mxu0 %v3842
      %5131 = vmatprep.subr.mxu0 %v3847
      %5132 = vmatpush1.msra.mxu0 %v3846
      %5133 = vmatprep.subr.mxu0 %v3898
      %5134 = vmatpush1.msra.mxu0 %v3897
      %5135 = vmatprep.subr.mxu0 %v3902
      %5136 = vmatpush1.msra.mxu0 %v3901
      %5137 = vmatprep.subr.mxu0 %v3953
      %5138 = vmatpush1.msra.mxu0 %v3952
      %5139 = vmatprep.subr.mxu0 %v3957
      %5140 = vmatpush1.msra.mxu0 %v3956
      %5141 = vmatprep.subr.mxu0 %v4008
      %5142 = vmatpush1.msra.mxu0 %v4007
      %5143 = vmatprep.subr.mxu0 %v4012
      %5144 = vmatpush1.msra.mxu0 %v4011
      %5145 = vmatprep.subr.mxu0 %v4063
      %5146 = vmatpush1.msra.mxu0 %v4062
      %5147 = vmatprep.subr.mxu0 %v4067
      %5148 = vmatpush1.msra.mxu0 %v4066
      %5149 = vmatprep.subr.mxu0 %v4118
      %5150 = vmatpush1.msra.mxu0 %v4117
      %5151 = vmatprep.subr.mxu0 %v4122
      %5152 = vmatpush1.msra.mxu0 %v4121
      %5153 = vmatprep.subr.mxu0 %v4173
      %5154 = vmatpush1.msra.mxu0 %v4172
      %5155 = vmatprep.subr.mxu0 %v4177
      %5156 = vmatpush1.msra.mxu0 %v4176
      %5157 = vmatprep.subr.mxu0 %v4228
      %5158 = vmatpush1.msra.mxu0 %v4227
      %5159 = vmatprep.subr.mxu0 %v4232
      %5160 = vmatpush1.msra.mxu0 %v4231
      %5161 = vmatprep.subr.mxu0 %v4284
      %5162 = vmatpush1.msra.mxu0 %v4283
      %5163 = vmatprep.subr.mxu0 %v4288
      %5164 = vmatpush1.msra.mxu0 %v4287
      %5165 = vmatprep.subr.mxu0 %v4339
      %5166 = vmatpush1.msra.mxu0 %v4338
      %5167 = vmatprep.subr.mxu0 %v4343
      %5168 = vmatpush1.msra.mxu0 %v4342
      %5169 = vmatprep.subr.mxu0 %v4394
      %5170 = vmatpush1.msra.mxu0 %v4393
      %5171 = vmatprep.subr.mxu0 %v4398
      %5172 = vmatpush1.msra.mxu0 %v4397
      %5173 = vmatprep.subr.mxu0 %v4425
      %5174 = vmatpush1.msra.mxu0 %v4424
      %5175 = vmatprep.subr.mxu0 %v4429
      %5176 = vmatpush1.msra.mxu0 %v4428
      %5177 = vmatprep.subr.mxu0 %v4480
      %5178 = vmatpush1.msra.mxu0 %v4479
      %5179 = vmatprep.subr.mxu0 %v4484
      %5180 = vmatpush1.msra.mxu0 %v4483
      %5181 = vmatprep.subr.mxu0 %v4535
      %5182 = vmatpush1.msra.mxu0 %v4534
      %5183 = vmatprep.subr.mxu0 %v4539
      %5184 = vmatpush1.msra.mxu0 %v4538
      %5185 = vmatprep.subr.mxu0 %v4590
      %5186 = vmatpush1.msra.mxu0 %v4589
      %5187 = vmatprep.subr.mxu0 %v4594
      %5188 = vmatpush1.msra.mxu0 %v4593
      %5189 = vmatprep.mubr.f32.mxu0 %v5118
      %5190 = vmatmul.mubr.f32.gmra.mrb[0].mxu0 %v5110
      %v5191 = vpop.f32.mrb[0].mxu0
      %v5192 = vadd.f32 %v5100, %v5191
      %v5193 = vpop.f32.mrb[0].mxu0
      %v5194 = vadd.f32 %v5100, %v5193
      %5195 = vdwg.mxu0
      %5196 = vmatprep.subr.mxu0 %v4645
      %5197 = vmatpush1.msra.mxu0 %v4644
      %5198 = vmatprep.subr.mxu0 %v4649
      %5199 = vmatpush1.msra.mxu0 %v4648
      %5200 = vmatprep.subr.mxu0 %v4700
      %5201 = vmatpush1.msra.mxu0 %v4699
      %5202 = vmatprep.subr.mxu0 %v4704
      %5203 = vmatpush1.msra.mxu0 %v4703
      %5204 = vmatprep.subr.mxu0 %v4755
      %5205 = vmatpush1.msra.mxu0 %v4754
      %5206 = vmatprep.subr.mxu0 %v4759
      %5207 = vmatpush1.msra.mxu0 %v4758
      %5208 = vmatprep.subr.mxu0 %v4811
      %5209 = vmatpush1.msra.mxu0 %v4810
      %5210 = vmatprep.subr.mxu0 %v4815
      %5211 = vmatpush1.msra.mxu0 %v4814
      %5212 = vmatprep.subr.mxu0 %v4866
      %5213 = vmatpush1.msra.mxu0 %v4865
      %5214 = vmatprep.subr.mxu0 %v4870
      %5215 = vmatpush1.msra.mxu0 %v4869
      %5216 = vmatprep.subr.mxu0 %v4922
      %5217 = vmatpush1.msra.mxu0 %v4921
      %5218 = vmatprep.subr.mxu0 %v4926
      %5219 = vmatpush1.msra.mxu0 %v4925
      %5220 = vmatprep.subr.mxu0 %v4977
      %5221 = vmatpush1.msra.mxu0 %v4976
      %5222 = vmatprep.subr.mxu0 %v4981
      %5223 = vmatpush1.msra.mxu0 %v4980
      %5224 = vmatprep.subr.mxu0 %v5033
      %5225 = vmatpush1.msra.mxu0 %v5032
      %5226 = vmatprep.subr.mxu0 %v5037
      %5227 = vmatpush1.msra.mxu0 %v5036
      %5228 = vmatprep.subr.mxu0 %v5088
      %5229 = vmatpush1.msra.mxu0 %v5087
      %5230 = vmatprep.subr.mxu0 %v5092
      %5231 = vmatpush1.msra.mxu0 %v5091
      %5232 = vmatprep.subr.mxu0 0.0
      %5233 = vmatpush1.msra.mxu0 0.0
      %5234 = vmatprep.subr.mxu0 0.0
      %5235 = vmatpush1.msra.mxu0 0.0
      %5236 = vmatprep.subr.mxu0 0.0
      %5237 = vmatpush1.msra.mxu0 0.0
      %5238 = vmatprep.subr.mxu0 0.0
      %5239 = vmatpush1.msra.mxu0 0.0
      %5240 = vmatprep.subr.mxu0 0.0
      %5241 = vmatpush1.msra.mxu0 0.0
      %5242 = vmatprep.subr.mxu0 0.0
      %5243 = vmatpush1.msra.mxu0 0.0
      %5244 = vmatprep.subr.mxu0 0.0
      %5245 = vmatpush1.msra.mxu0 0.0
      %5246 = vmatprep.subr.mxu0 0.0
      %5247 = vmatpush1.msra.mxu0 0.0
      %5248 = vmatprep.subr.mxu0 0.0
      %5249 = vmatpush1.msra.mxu0 0.0
      %5250 = vmatprep.subr.mxu0 0.0
      %5251 = vmatpush1.msra.mxu0 0.0
      %5252 = vmatprep.subr.mxu0 0.0
      %5253 = vmatpush1.msra.mxu0 0.0
      %5254 = vmatprep.subr.mxu0 0.0
      %5255 = vmatpush1.msra.mxu0 0.0
      %5256 = vmatprep.subr.mxu0 0.0
      %5257 = vmatpush1.msra.mxu0 0.0
      %5258 = vmatprep.subr.mxu0 0.0
      %5259 = vmatpush1.msra.mxu0 0.0
      %5260 = vmatprep.mubr.f32.mxu0 %v5123
      %5261 = vmatmul.mubr.f32.gmra.mrb[0].mxu0 %v5117
      %v5262 = vpop.f32.mrb[0].mxu0
      %v5263 = vadd.f32 %v5192, %v5262
      %v5264 = vpop.f32.mrb[0].mxu0
      %v5265 = vadd.f32 %v5194, %v5264
      %5266 = vdwg.mxu0
      %5267 = vmatprep.subr.mxu0 %v3790
      %5268 = vmatpush1.msra.mxu0 %v3789
      %5269 = vmatprep.subr.mxu0 %v3794
      %5270 = vmatpush1.msra.mxu0 %v3793
      %5271 = vmatprep.subr.mxu0 %v3845
      %5272 = vmatpush1.msra.mxu0 %v3844
      %5273 = vmatprep.subr.mxu0 %v3849
      %5274 = vmatpush1.msra.mxu0 %v3848
      %5275 = vmatprep.subr.mxu0 %v3900
      %5276 = vmatpush1.msra.mxu0 %v3899
      %5277 = vmatprep.subr.mxu0 %v3904
      %5278 = vmatpush1.msra.mxu0 %v3903
      %5279 = vmatprep.subr.mxu0 %v3955
      %5280 = vmatpush1.msra.mxu0 %v3954
      %5281 = vmatprep.subr.mxu0 %v3959
      %5282 = vmatpush1.msra.mxu0 %v3958
      %5283 = vmatprep.subr.mxu0 %v4010
      %5284 = vmatpush1.msra.mxu0 %v4009
      %5285 = vmatprep.subr.mxu0 %v4014
      %5286 = vmatpush1.msra.mxu0 %v4013
      %5287 = vmatprep.subr.mxu0 %v4065
      %5288 = vmatpush1.msra.mxu0 %v4064
      %5289 = vmatprep.subr.mxu0 %v4069
      %5290 = vmatpush1.msra.mxu0 %v4068
      %5291 = vmatprep.subr.mxu0 %v4120
      %5292 = vmatpush1.msra.mxu0 %v4119
      %5293 = vmatprep.subr.mxu0 %v4124
      %5294 = vmatpush1.msra.mxu0 %v4123
      %5295 = vmatprep.subr.mxu0 %v4175
      %5296 = vmatpush1.msra.mxu0 %v4174
      %5297 = vmatprep.subr.mxu0 %v4179
      %5298 = vmatpush1.msra.mxu0 %v4178
      %5299 = vmatprep.subr.mxu0 %v4230
      %5300 = vmatpush1.msra.mxu0 %v4229
      %5301 = vmatprep.subr.mxu0 %v4234
      %5302 = vmatpush1.msra.mxu0 %v4233
      %5303 = vmatprep.subr.mxu0 %v4286
      %5304 = vmatpush1.msra.mxu0 %v4285
      %5305 = vmatprep.subr.mxu0 %v4290
      %5306 = vmatpush1.msra.mxu0 %v4289
      %5307 = vmatprep.subr.mxu0 %v4341
      %5308 = vmatpush1.msra.mxu0 %v4340
      %5309 = vmatprep.subr.mxu0 %v4345
      %5310 = vmatpush1.msra.mxu0 %v4344
      %5311 = vmatprep.subr.mxu0 %v4396
      %5312 = vmatpush1.msra.mxu0 %v4395
      %5313 = vmatprep.subr.mxu0 %v4400
      %5314 = vmatpush1.msra.mxu0 %v4399
      %5315 = vmatprep.subr.mxu0 %v4427
      %5316 = vmatpush1.msra.mxu0 %v4426
      %5317 = vmatprep.subr.mxu0 %v4431
      %5318 = vmatpush1.msra.mxu0 %v4430
      %5319 = vmatprep.subr.mxu0 %v4482
      %5320 = vmatpush1.msra.mxu0 %v4481
      %5321 = vmatprep.subr.mxu0 %v4486
      %5322 = vmatpush1.msra.mxu0 %v4485
      %5323 = vmatprep.subr.mxu0 %v4537
      %5324 = vmatpush1.msra.mxu0 %v4536
      %5325 = vmatprep.subr.mxu0 %v4541
      %5326 = vmatpush1.msra.mxu0 %v4540
      %5327 = vmatprep.subr.mxu0 %v4592
      %5328 = vmatpush1.msra.mxu0 %v4591
      %5329 = vmatprep.subr.mxu0 %v4596
      %5330 = vmatpush1.msra.mxu0 %v4595
      %5331 = vmatprep.mubr.f32.mxu0 %v5118
      %5332 = vmatmul.mubr.f32.gmra.mrb[0].mxu0 %v5110
      %v5333 = vpop.f32.mrb[0].mxu0
      %v5334 = vadd.f32 %v5100, %v5333
      %v5335 = vpop.f32.mrb[0].mxu0
      %v5336 = vadd.f32 %v5100, %v5335
      %5337 = vdwg.mxu0
      %5338 = vmatprep.subr.mxu0 %v4647
      %5339 = vmatpush1.msra.mxu0 %v4646
      %5340 = vmatprep.subr.mxu0 %v4651
      %5341 = vmatpush1.msra.mxu0 %v4650
      %5342 = vmatprep.subr.mxu0 %v4702
      %5343 = vmatpush1.msra.mxu0 %v4701
      %5344 = vmatprep.subr.mxu0 %v4706
      %5345 = vmatpush1.msra.mxu0 %v4705
      %5346 = vmatprep.subr.mxu0 %v4757
      %5347 = vmatpush1.msra.mxu0 %v4756
      %5348 = vmatprep.subr.mxu0 %v4761
      %5349 = vmatpush1.msra.mxu0 %v4760
      %5350 = vmatprep.subr.mxu0 %v4813
      %5351 = vmatpush1.msra.mxu0 %v4812
      %5352 = vmatprep.subr.mxu0 %v4817
      %5353 = vmatpush1.msra.mxu0 %v4816
      %5354 = vmatprep.subr.mxu0 %v4868
      %5355 = vmatpush1.msra.mxu0 %v4867
      %5356 = vmatprep.subr.mxu0 %v4872
      %5357 = vmatpush1.msra.mxu0 %v4871
      %5358 = vmatprep.subr.mxu0 %v4924
      %5359 = vmatpush1.msra.mxu0 %v4923
      %5360 = vmatprep.subr.mxu0 %v4928
      %5361 = vmatpush1.msra.mxu0 %v4927
      %5362 = vmatprep.subr.mxu0 %v4979
      %5363 = vmatpush1.msra.mxu0 %v4978
      %5364 = vmatprep.subr.mxu0 %v4983
      %5365 = vmatpush1.msra.mxu0 %v4982
      %5366 = vmatprep.subr.mxu0 %v5035
      %5367 = vmatpush1.msra.mxu0 %v5034
      %5368 = vmatprep.subr.mxu0 %v5039
      %5369 = vmatpush1.msra.mxu0 %v5038
      %5370 = vmatprep.subr.mxu0 %v5090
      %5371 = vmatpush1.msra.mxu0 %v5089
      %5372 = vmatprep.subr.mxu0 %v5094
      %5373 = vmatpush1.msra.mxu0 %v5093
      %5374 = vmatprep.subr.mxu0 0.0
      %5375 = vmatpush1.msra.mxu0 0.0
      %5376 = vmatprep.subr.mxu0 0.0
      %5377 = vmatpush1.msra.mxu0 0.0
      %5378 = vmatprep.subr.mxu0 0.0
      %5379 = vmatpush1.msra.mxu0 0.0
      %5380 = vmatprep.subr.mxu0 0.0
      %5381 = vmatpush1.msra.mxu0 0.0
      %5382 = vmatprep.subr.mxu0 0.0
      %5383 = vmatpush1.msra.mxu0 0.0
      %5384 = vmatprep.subr.mxu0 0.0
      %5385 = vmatpush1.msra.mxu0 0.0
      %5386 = vmatprep.subr.mxu0 0.0
      %5387 = vmatpush1.msra.mxu0 0.0
      %5388 = vmatprep.subr.mxu0 0.0
      %5389 = vmatpush1.msra.mxu0 0.0
      %5390 = vmatprep.subr.mxu0 0.0
      %5391 = vmatpush1.msra.mxu0 0.0
      %5392 = vmatprep.subr.mxu0 0.0
      %5393 = vmatpush1.msra.mxu0 0.0
      %5394 = vmatprep.subr.mxu0 0.0
      %5395 = vmatpush1.msra.mxu0 0.0
      %5396 = vmatprep.subr.mxu0 0.0
      %5397 = vmatpush1.msra.mxu0 0.0
      %5398 = vmatprep.subr.mxu0 0.0
      %5399 = vmatpush1.msra.mxu0 0.0
      %5400 = vmatprep.subr.mxu0 0.0
      %5401 = vmatpush1.msra.mxu0 0.0
      %5402 = vmatprep.mubr.f32.mxu0 %v5123
      %5403 = vmatmul.mubr.f32.gmra.mrb[0].mxu0 %v5117
      %v5404 = vpop.f32.mrb[0].mxu0
      %v5405 = vadd.f32 %v5334, %v5404
      %v5406 = vpop.f32.mrb[0].mxu0
      %v5407 = vadd.f32 %v5336, %v5406
      %5408 = vdwg.mxu0
      %v5413 = vrot.slane %v5263, 1
      %v5414 = vrot.slane %v5265, 1
      %v5415 = vrot.slane %v5405, 1
      %v5416 = vrot.slane %v5407, 1
      %v5421 = vmax.f32 %v5263, %v5413
      %v5422 = vmax.f32 %v5265, %v5414
      %v5423 = vmax.f32 %v5405, %v5415
      %v5424 = vmax.f32 %v5407, %v5416
      %v5425 = vsub.f32 %v5263, %v5421
      %v5426 = vsub.f32 %v5265, %v5422
      %v5427 = vsub.f32 %v5405, %v5423
      %v5428 = vsub.f32 %v5407, %v5424
      %v5429 = vmul.f32 %v5425, 1.442695
      %v5430 = vpow.pop %v5429
      %v5431 = vmul.f32 %v5426, 1.442695
      %v5432 = vpow.pop %v5431
      %v5433 = vmul.f32 %v5427, 1.442695
      %v5434 = vpow.pop %v5433
      %v5435 = vmul.f32 %v5428, 1.442695
      %v5436 = vpow.pop %v5435
      %v5441 = vrot.slane %v5421, 7
      %v5442 = vrot.slane %v5422, 7
      %v5443 = vrot.slane %v5423, 7
      %v5444 = vrot.slane %v5424, 7
      %v5449 = vsub.f32 %v5263, %v5441
      %v5450 = vsub.f32 %v5265, %v5442
      %v5451 = vsub.f32 %v5405, %v5443
      %v5452 = vsub.f32 %v5407, %v5444
      %v5453 = vmul.f32 %v5449, 1.442695
      %v5454 = vpow.pop %v5453
      %v5455 = vmul.f32 %v5450, 1.442695
      %v5456 = vpow.pop %v5455
      %v5457 = vmul.f32 %v5451, 1.442695
      %v5458 = vpow.pop %v5457
      %v5459 = vmul.f32 %v5452, 1.442695
      %v5460 = vpow.pop %v5459
      %v5465 = vrot.slane %v5454, 1
      %v5466 = vrot.slane %v5456, 1
      %v5467 = vrot.slane %v5458, 1
      %v5468 = vrot.slane %v5460, 1
      %v5473 = vadd.f32 %v5430, %v5465
      %v5474 = vadd.f32 %v5432, %v5466
      %v5475 = vadd.f32 %v5434, %v5467
      %v5476 = vadd.f32 %v5436, %v5468
      %v5477 = vrcp.pop %v5473
      %v5478 = vrcp.pop %v5474
      %v5479 = vrcp.pop %v5475
      %v5480 = vrcp.pop %v5476
      %v5481 = vmul.f32 %v5430, %v5477
      %v5482 = vmul.f32 %v5432, %v5478
      %v5483 = vmul.f32 %v5434, %v5479
      %v5484 = vmul.f32 %v5436, %v5480
      %v5485 = vsub.f32 1.0, %v5481
      %v5486 = vsub.f32 1.0, %v5482
      %v5487 = vsub.f32 1.0, %v5483
      %v5488 = vsub.f32 1.0, %v5484
      %v5493 = vrot.slane %v5485, 7
      %v5494 = vrot.slane %v5486, 7
      %v5495 = vrot.slane %v5487, 7
      %v5496 = vrot.slane %v5488, 7
      %vm5501 = vcmask 1040384
      %v5502 = vsel %vm5501, %v5481, %v5493
      %v5503 = vsel %vm5501, %v5482, %v5494
      %v5504 = vsel %vm5501, %v5483, %v5495
      %v5505 = vsel %vm5501, %v5484, %v5496
      %v5510 = vcombine.low %v5502, %v5503
      %v5511 = vcombine.low %v5504, %v5505
      %v5513 = vunpack.c.l.s4 1983009808
      %v5514 = vunpack.c.0.s8 %v5513
      %v5515 = vlaneseq
      %v5516 = vshrl.u32 %v5515, 7
      %v5517 = vsub.s32 %v5514, %v5516
      %v5518 = vrot.slane %v5510, %v5517
      %v5520 = vunpack.c.l.s4 1983009808
      %v5521 = vunpack.c.0.s8 %v5520
      %v5522 = vlaneseq
      %v5523 = vshrl.u32 %v5522, 7
      %v5524 = vsub.s32 %v5521, %v5523
      %v5525 = vrot.slane %v5511, %v5524
      %v5526 = vcombine.low %v5518, %v5525
      %5528 = vst [vmem:[%s440] sm:$0xff] %v5526
      %p5529 = scmp.lt.s32.totalorder %s24, 1
      %s5530 = scalar_select %p5529, %s24, 1
      %s5531 = smul.addr %s5530, 4
      %s5532 = smul.addr %s5531, 2
      %s5533 = scalar_lea.vmem %s13, %s5532
      // Predicated region
      $region73: #{net_forward.1} parent=71 // pred_check
        %p5534 = pneg %p320
      $region74: #{net_forward.1} parent=71 // pred_check_branch
        %5536 = sbr.rel (%p5534) target = $region76
      $region75: #{net_forward.1} parent=71 // pred_region
        _
      $region76: #{net_forward.1} parent=71 // pred_fallthru
        _
    $region72: #{net_forward.1} parent=5 // pred_fallthru
      _
    %p5537 = scmp.le.s32.totalorder 2, %s19
    // Predicated region
    $region77: #{net_forward.1} parent=5 // pred_check
      %p5538 = pneg %p5537
    $region78: #{net_forward.1} parent=5 // pred_check_branch
      %5540 = sbr.rel (%p5538) target = $region80
    $region79: #{net_forward.1} parent=5 // pred_region
      %s5541 = ssub.s32 %s19, 2
      // Predicated region
      $region81: #{net_forward.1} parent=79 // pred_check
        %p5542 = pneg %p326
      $region82: #{net_forward.1} parent=79 // pred_check_branch
        %5544 = sbr.rel (%p5542) target = $region84
      $region83: #{net_forward.1} parent=79 // pred_region
        %p5545 = scmp.lt.s32.totalorder %s25, 1
        %s5546 = scalar_select %p5545, %s25, 1
        %s5547 = smul.addr %s5546, 4
        %s5548 = smul.addr %s5547, 2
        %s5549 = scalar_lea.vmem %s13, %s5548
      $region84: #{net_forward.1} parent=79 // pred_fallthru
        _
    $region80: #{net_forward.1} parent=5 // pred_fallthru
      _
  $region6: #{net_forward.1} parent=0 // loop_footer
    %s23 = sadd.s32 1, %s19
  $region7: #{net_forward.1} parent=0 // loop_footer_branch
    %18 = sbr.rel target = $region3
  $region8: #{net_forward.1} parent=0 // loop_exit
    _

</llo_original>
